<compile_context>
chip_gen: v7x
topology: tpu7x:2x2x1
jax: 0.10.0
libtpu: 0.0.40
codegen_flags: <defaults>
</compile_context>

<pallas_src>
import functools

import jax
import jax.numpy as jnp
import numpy as np
from jax.experimental import pallas as pl
from jax.experimental.pallas import tpu as pltpu


def _modconv_kernel(x_ref, srow_ref, srep_ref, bsq_ref, w_ref, o_ref, halo_ref,
                    *, K, H, W, pad, Hout, Wout):
    # x_ref:    (1, H, W, Cin)          unpadded NHWC sample, bf16
    # srow_ref: (1, 1, Cin)             style modulation (row), f32
    # srep_ref: (1, K*K*Cin, 1)         style modulation replicated per tap, f32
    # bsq_ref:  (Cin, Cout_p)           sum_taps (scale*W)^2, f32 (constant)
    # w_ref:    (K*K*Cin, Cout_p)       shared pre-scaled weight, bf16 (constant)
    # o_ref:    (1, Hout*Wout, Cout_p)  lane-dense output block
    # halo_ref: (Hp, Wp, Cin) f32       VMEM scratch for the zero halo
    Hp, Wp, Cin = halo_ref.shape
    Cout_p = w_ref.shape[-1]

    # ---- per-sample demodulation factor (all f32: v5e has no bf16 VPU/EUP) ----
    s_row = srow_ref[0]                                               # (1, Cin)
    d_row = jax.lax.rsqrt(
        jnp.dot(s_row * s_row, bsq_ref[...],
                preferred_element_type=jnp.float32) + 1e-8)           # (1, Cout_p)

    # ---- fold modulation (Cin) + demodulation (Cout) into the small weight.
    #      srep rows repeat the style per tap, so this is one broadcasted
    #      multiply against the matmul-ready weight (no in-kernel tile/reshape).
    sd = srep_ref[0] * d_row                                          # (K*K*Cin, Cout_p) f32
    w_mod = (w_ref[...] * sd).astype(jnp.bfloat16)                    # bf16 MXU operand

    # ---- zero halo built in VMEM (replaces the wrapper jnp.pad HBM pass) ----
    halo_ref[...] = jnp.zeros_like(halo_ref)
    halo_ref[pad:pad + H, pad:pad + W, :] = x_ref[0].astype(jnp.float32)
    xh = halo_ref[...]                                                # (Hp, Wp, Cin) f32

    # ---- im2col: ONE (Hout*Wout, K*K*Cin) patch -> ONE MXU matmul per sample.
    #      Per-kw slice + flatten is layout preserving when Wout % 8 == 0
    #      (asserted in the wrapper); the kh windows are sublane-aligned row
    #      slices; packing happens on the lane axis (idle XLU), not the VPU.
    cols = [xh[:, kw:kw + Wout, :].reshape(Hp * Wout, Cin) for kw in range(K)]
    big = jnp.concatenate(cols, axis=-1)                              # (Hp*Wout, K*Cin)
    patch = jnp.concatenate(
        [big[kh * Wout:kh * Wout + Hout * Wout, :] for kh in range(K)],
        axis=-1).astype(jnp.bfloat16)                                 # (Hout*Wout, K*K*Cin)

    acc = jnp.dot(patch, w_mod, preferred_element_type=jnp.float32)   # (Hout*Wout, Cout_p)
    o_ref[0] = acc.astype(o_ref.dtype)                                # lane-dense store


def modulated_conv2d(x, w_lat, conv_w, style_w, style_b, scale, *, padding=1,
                     out_dtype=jnp.bfloat16):
    """x: (B, Cin, H, W) NCHW, w_lat: (B, w_dim).  Returns (B, Cout, Hout, Wout)."""
    B, Cin, H, W = x.shape
    Cout, _, K, _ = conv_w.shape
    Hp, Wp = H + 2 * padding, W + 2 * padding
    Hout, Wout = Hp - K + 1, Wp - K + 1
    # Layout/perf assumption for the layout-preserving im2col flatten (review ask).
    assert Wout % 8 == 0, "Wout must be a multiple of 8 for the fast im2col path"
    Cout_p = ((Cout + 127) // 128) * 128        # lane-dense (multiple of 128) output

    # ---- one-time parameter re-layout + zero-pad Cout to the lane width ----
    base = (conv_w * scale).astype(jnp.float32)                       # (Cout, Cin, K, K)
    base = jnp.transpose(base, (2, 3, 1, 0)).reshape(K * K, Cin, Cout)
    base = jnp.pad(base, ((0, 0), (0, 0), (0, Cout_p - Cout)))        # (K*K, Cin, Cout_p)
    bsq = jnp.sum(base * base, axis=0)                                # (Cin, Cout_p), f32
    w_flat = base.reshape(K * K * Cin, Cout_p).astype(jnp.bfloat16)   # matmul-ready bf16

    # ---- style FC: tiny (B x w_dim x Cin) wrapper glue (f32).  Shipped both as
    #      a row vector (demod dot) and replicated per tap as a column vector
    #      (weight fold), so the kernel never transposes lanes <-> sublanes.
    s = jnp.dot(w_lat.astype(jnp.float32),
                jnp.transpose(style_w).astype(jnp.float32),
                precision=jax.lax.Precision.HIGHEST) + style_b.astype(jnp.float32)
    s_row = s.reshape(B, 1, Cin)
    s_rep = jnp.tile(s, (1, K * K)).reshape(B, K * K * Cin, 1)

    # ---- activations: NCHW -> NHWC (channels on lanes), bf16.  No jnp.pad —
    #      the halo is built in-kernel.
    # TODO(synk): in a full NHWC/bf16 model this transpose (and the final
    # NHWC->NCHW one) disappear; they only exist to honor the NCHW module API.
    x_nhwc = jnp.transpose(x, (0, 2, 3, 1)).astype(jnp.bfloat16)

    # ---- per-generation VMEM budget: ~7/8 of physical, capped at 100 MiB
    #      (~56 MiB on v7x's 64 MiB, 100 MiB on v5e/v6e's 128 MiB).
    try:
        phys_vmem = int(pltpu.get_tpu_info().vmem_capacity_bytes)
    except Exception:
        phys_vmem = 64 * 1024 * 1024
    if phys_vmem < 32 * 1024 * 1024:
        phys_vmem = 64 * 1024 * 1024
    vmem_limit = int(min(phys_vmem - phys_vmem // 8, 100 * 1024 * 1024))

    kernel = functools.partial(_modconv_kernel, K=K, H=H, W=W, pad=padding,
                               Hout=Hout, Wout=Wout)

    def run(single_buffer_consts):
        # Constant-index blocks (weight, bsq) don't need double-buffering.
        const_kw = dict(pipeline_mode=pl.Buffered(1)) if single_buffer_consts else {}
        call = pl.pallas_call(
            kernel,
            out_shape=jax.ShapeDtypeStruct((B, Hout * Wout, Cout_p), out_dtype),
            grid=(B,),
            in_specs=[
                pl.BlockSpec((1, H, W, Cin), lambda b: (b, 0, 0, 0)),      # activations
                pl.BlockSpec((1, 1, Cin), lambda b: (b, 0, 0)),            # style (row)
                pl.BlockSpec((1, K * K * Cin, 1), lambda b: (b, 0, 0)),    # style (col, per tap)
                pl.BlockSpec((Cin, Cout_p), lambda b: (0, 0), **const_kw),         # bsq
                pl.BlockSpec((K * K * Cin, Cout_p), lambda b: (0, 0), **const_kw),  # weight
            ],
            out_specs=pl.BlockSpec((1, Hout * Wout, Cout_p), lambda b: (b, 0, 0)),
            scratch_shapes=[pltpu.VMEM((Hp, Wp, Cin), jnp.float32)],       # halo
            compiler_params=pltpu.CompilerParams(
                dimension_semantics=("parallel",),   # batch across TCs on v7x (B>=2)
                vmem_limit_bytes=vmem_limit,
            ),
        )
        out = call(x_nhwc, s_row, s_rep, bsq, w_flat)
        return jax.block_until_ready(out)

    try:
        out2d = run(True)
    except Exception:
        # pipeline_mode / pl.Buffered(1) not supported on this Pallas version:
        # fall back to default double-buffering (identical numerics).
        out2d = run(False)

    out = out2d[..., :Cout].reshape(B, Hout, Wout, Cout)
    return jnp.transpose(out, (0, 3, 1, 2))                           # back to NCHW API


def reference(x, w_lat, conv_w, style_w, style_b, scale, *, padding=1):
    """Pure-JAX transcription of the PyTorch forward (per-sample weights + conv)."""
    s = jnp.dot(w_lat, style_w.T, precision=jax.lax.Precision.HIGHEST) + style_b
    weight = conv_w * scale                                    # (Cout, Cin, K, K)
    weight = weight[None] * s[:, None, :, None, None]          # (B, Cout, Cin, K, K)
    demod = jax.lax.rsqrt(
        jnp.sum(weight ** 2, axis=(2, 3, 4), keepdims=True) + 1e-8
    )
    weight = weight * demod
    outs = []
    for b in range(x.shape[0]):
        o = jax.lax.conv_general_dilated(
            x[b:b + 1],
            weight[b],
            window_strides=(1, 1),
            padding=((padding, padding), (padding, padding)),
            dimension_numbers=("NCHW", "OIHW", "NCHW"),
            precision=jax.lax.Precision.HIGHEST,
        )
        outs.append(o)
    return jnp.concatenate(outs, axis=0)


if __name__ == "__main__":
    B, Cin, Cout, H, W, K, w_dim, pad = 2, 4, 8, 16, 16, 3, 32, 1

    key = jax.random.PRNGKey(0)
    k1, k2, k3, k4, k5 = jax.random.split(key, 5)

    fan_in = Cin * K * K
    gain = np.sqrt(2.0 / (1.0 + 0.2 ** 2))                 # kaiming_normal_(a=0.2)
    conv_w = (gain / np.sqrt(fan_in)) * jax.random.normal(
        k1, (Cout, Cin, K, K), jnp.float32
    )
    lim = 1.0 / np.sqrt(w_dim)                             # nn.Linear default init
    style_w = jax.random.uniform(k2, (Cin, w_dim), jnp.float32, -lim, lim)
    style_b = jax.random.uniform(k3, (Cin,), jnp.float32, -lim, lim)
    scale = jnp.float32(1.0 / np.sqrt(fan_in))
    # conv bias is zero-initialized and unused by the PyTorch forward (F.conv2d
    # is called with the modulated weight only), so it is omitted here.

    x = jax.random.normal(k4, (B, Cin, H, W), jnp.float32)
    w_lat = jax.random.normal(k5, (B, w_dim), jnp.float32)

    out = modulated_conv2d(x, w_lat, conv_w, style_w, style_b, scale, padding=pad)
    out = jax.block_until_ready(out)

    ref = reference(x, w_lat, conv_w, style_w, style_b, scale, padding=pad)
    # bf16 MXU operands + bf16 output store (f32 accumulation) vs an all-f32
    # HIGHEST-precision reference: per-element error is a few 1e-3 for the
    # unit-scale (demodulated) outputs, so use a bf16-appropriate tolerance.
    np.testing.assert_allclose(np.asarray(out.astype(jnp.float32)),
                               np.asarray(ref), rtol=2e-2, atol=4e-2)

    print("KERNEL_OK")
</pallas_src>

<mosaic_0001>
module attributes {stable_mosaic.version = 11 : i64} {
  func.func @_modconv_kernel(%arg0: i32, %arg1: memref<1x16x16x4xbf16, #tpu.memory_space<vmem>>, %arg2: memref<1x1x4xf32, #tpu.memory_space<vmem>>, %arg3: memref<1x36x1xf32, #tpu.memory_space<vmem>>, %arg4: memref<4x128xf32, #tpu.memory_space<vmem>>, %arg5: memref<36x128xbf16, #tpu.memory_space<vmem>>, %arg6: memref<1x256x128xbf16, #tpu.memory_space<vmem>>, %arg7: memref<18x18x4xf32, #tpu.memory_space<vmem>>) attributes {dimension_semantics = [#tpu.dimension_semantics<parallel>], iteration_bounds = array<i64: 2>, scalar_prefetch = 0 : i64, scratch_operands = 1 : i64, tpu.core_type = #tpu.core_type<tc>, window_params = [{transform_indices = @transform_0, window_bounds = array<i64: 1, 16, 16, 4>}, {transform_indices = @transform_1, window_bounds = array<i64: 1, 1, 4>}, {transform_indices = @transform_2, window_bounds = array<i64: 1, 36, 1>}, {pipeline_mode = #tpu.pipeline_mode<synchronous>, transform_indices = @transform_3, window_bounds = array<i64: 4, 128>}, {pipeline_mode = #tpu.pipeline_mode<synchronous>, transform_indices = @transform_4, window_bounds = array<i64: 36, 128>}, {transform_indices = @transform_5, window_bounds = array<i64: 1, 256, 128>}]} {
    %c0 = arith.constant 0 : index
    %c0_0 = arith.constant 0 : index
    %c0_1 = arith.constant 0 : index
    %0 = vector.load %arg2[%c0, %c0_0, %c0_1] : memref<1x1x4xf32, #tpu.memory_space<vmem>>, vector<1x1x4xf32>
    %1 = vector.shape_cast %0 : vector<1x1x4xf32> to vector<1x4xf32>
    %2 = arith.mulf %1, %1 : vector<1x4xf32>
    %c0_2 = arith.constant 0 : index
    %c0_3 = arith.constant 0 : index
    %3 = vector.load %arg4[%c0_2, %c0_3] : memref<4x128xf32, #tpu.memory_space<vmem>>, vector<4x128xf32>
    %cst = arith.constant dense<0.000000e+00> : vector<1x128xf32>
    %4 = tpu.matmul %2, %3, %cst {dimension_numbers = #tpu.dot_dimension_numbers<[1], [0], [0], [1], [0, 0, 1, 1], [], []>} : vector<1x4xf32>, vector<4x128xf32>, vector<1x128xf32> -> vector<1x128xf32>
    %cst_4 = arith.constant 9.99999993E-9 : f32
    %5 = vector.broadcast %cst_4 : f32 to vector<1x128xf32>
    %6 = arith.addf %4, %5 : vector<1x128xf32>
    %7 = math.rsqrt %6 : vector<1x128xf32>
    %c0_5 = arith.constant 0 : index
    %c0_6 = arith.constant 0 : index
    %c0_7 = arith.constant 0 : index
    %8 = vector.load %arg3[%c0_5, %c0_6, %c0_7] : memref<1x36x1xf32, #tpu.memory_space<vmem>>, vector<1x36x1xf32>
    %9 = vector.shape_cast %8 : vector<1x36x1xf32> to vector<36x1xf32>
    %10 = vector.broadcast %9 : vector<36x1xf32> to vector<36x128xf32>
    %11 = vector.broadcast %7 : vector<1x128xf32> to vector<36x128xf32>
    %12 = arith.mulf %10, %11 : vector<36x128xf32>
    %c0_8 = arith.constant 0 : index
    %c0_9 = arith.constant 0 : index
    %13 = vector.load %arg5[%c0_8, %c0_9] : memref<36x128xbf16, #tpu.memory_space<vmem>>, vector<36x128xbf16>
    %14 = arith.extf %13 : vector<36x128xbf16> to vector<36x128xf32>
    %15 = arith.mulf %14, %12 : vector<36x128xf32>
    %16 = arith.truncf %15 : vector<36x128xf32> to vector<36x128xbf16>
    %cst_10 = arith.constant 0.000000e+00 : f32
    %17 = vector.broadcast %cst_10 : f32 to vector<18x18x4xf32>
    %c0_11 = arith.constant 0 : index
    %c0_12 = arith.constant 0 : index
    %c0_13 = arith.constant 0 : index
    %18 = vector.load %arg7[%c0_11, %c0_12, %c0_13] : memref<18x18x4xf32, #tpu.memory_space<vmem>>, vector<18x18x4xf32>
    tpu.vector_store %arg7[%c0_11, %c0_12, %c0_13], %17 {strides = array<i32>} : memref<18x18x4xf32, #tpu.memory_space<vmem>>, vector<18x18x4xf32>,
    %c0_14 = arith.constant 0 : index
    %c0_15 = arith.constant 0 : index
    %c0_16 = arith.constant 0 : index
    %c0_17 = arith.constant 0 : index
    %19 = vector.load %arg1[%c0_14, %c0_15, %c0_16, %c0_17] : memref<1x16x16x4xbf16, #tpu.memory_space<vmem>>, vector<1x16x16x4xbf16>
    %20 = vector.shape_cast %19 : vector<1x16x16x4xbf16> to vector<16x16x4xbf16>
    %21 = arith.extf %20 : vector<16x16x4xbf16> to vector<16x16x4xf32>
    %c1 = arith.constant 1 : index
    %c1_18 = arith.constant 1 : index
    %c0_19 = arith.constant 0 : index
    %22 = vector.load %arg7[%c1, %c1_18, %c0_19] : memref<18x18x4xf32, #tpu.memory_space<vmem>>, vector<16x16x4xf32>
    tpu.vector_store %arg7[%c1, %c1_18, %c0_19], %21 {strides = array<i32>} : memref<18x18x4xf32, #tpu.memory_space<vmem>>, vector<16x16x4xf32>,
    %c0_20 = arith.constant 0 : index
    %c0_21 = arith.constant 0 : index
    %c0_22 = arith.constant 0 : index
    %23 = vector.load %arg7[%c0_20, %c0_21, %c0_22] : memref<18x18x4xf32, #tpu.memory_space<vmem>>, vector<18x18x4xf32>
    %24 = vector.extract_strided_slice %23 {offsets = [0, 0, 0], sizes = [18, 16, 4], strides = [1, 1, 1]} : vector<18x18x4xf32> to vector<18x16x4xf32>
    %25 = vector.shape_cast %24 : vector<18x16x4xf32> to vector<288x4xf32>
    %26 = vector.extract_strided_slice %23 {offsets = [0, 1, 0], sizes = [18, 16, 4], strides = [1, 1, 1]} : vector<18x18x4xf32> to vector<18x16x4xf32>
    %27 = vector.shape_cast %26 : vector<18x16x4xf32> to vector<288x4xf32>
    %28 = vector.extract_strided_slice %23 {offsets = [0, 2, 0], sizes = [18, 16, 4], strides = [1, 1, 1]} : vector<18x18x4xf32> to vector<18x16x4xf32>
    %29 = vector.shape_cast %28 : vector<18x16x4xf32> to vector<288x4xf32>
    %30 = tpu.concatenate %25, %27, %29 in 1 : vector<288x4xf32>, vector<288x4xf32>, vector<288x4xf32> -> vector<288x12xf32>
    %31 = vector.extract_strided_slice %30 {offsets = [0, 0], sizes = [256, 12], strides = [1, 1]} : vector<288x12xf32> to vector<256x12xf32>
    %32 = vector.extract_strided_slice %30 {offsets = [16, 0], sizes = [256, 12], strides = [1, 1]} : vector<288x12xf32> to vector<256x12xf32>
    %33 = vector.extract_strided_slice %30 {offsets = [32, 0], sizes = [256, 12], strides = [1, 1]} : vector<288x12xf32> to vector<256x12xf32>
    %34 = tpu.concatenate %31, %32, %33 in 1 : vector<256x12xf32>, vector<256x12xf32>, vector<256x12xf32> -> vector<256x36xf32>
    %35 = arith.truncf %34 : vector<256x36xf32> to vector<256x36xbf16>
    %cst_23 = arith.constant dense<0.000000e+00> : vector<256x128xf32>
    %36 = tpu.matmul %35, %16, %cst_23 {dimension_numbers = #tpu.dot_dimension_numbers<[1], [0], [0], [1], [0, 0, 1, 1], [], []>} : vector<256x36xbf16>, vector<36x128xbf16>, vector<256x128xf32> -> vector<256x128xf32>
    %37 = arith.truncf %36 : vector<256x128xf32> to vector<256x128xbf16>
    %c0_24 = arith.constant 0 : index
    %c0_25 = arith.constant 0 : index
    %c0_26 = arith.constant 0 : index
    %38 = vector.load %arg6[%c0_24, %c0_25, %c0_26] : memref<1x256x128xbf16, #tpu.memory_space<vmem>>, vector<1x256x128xbf16>
    %39 = vector.shape_cast %38 : vector<1x256x128xbf16> to vector<256x128xbf16>
    %40 = vector.shape_cast %37 : vector<256x128xbf16> to vector<1x256x128xbf16>
    tpu.vector_store %arg6[%c0_24, %c0_25, %c0_26], %40 {strides = array<i32>} : memref<1x256x128xbf16, #tpu.memory_space<vmem>>, vector<1x256x128xbf16>,
    return
  }
  func.func @transform_0(%arg0: i32) -> (i32, i32, i32, i32) {
    %c0_i32 = arith.constant 0 : i32
    %c0_i32_0 = arith.constant 0 : i32
    %c0_i32_1 = arith.constant 0 : i32
    %c0_i32_2 = arith.constant 0 : i32
    return %arg0, %c0_i32, %c0_i32_0, %c0_i32_1 : i32, i32, i32, i32
  }
  func.func @transform_1(%arg0: i32) -> (i32, i32, i32) {
    %c0_i32 = arith.constant 0 : i32
    %c0_i32_0 = arith.constant 0 : i32
    %c0_i32_1 = arith.constant 0 : i32
    return %arg0, %c0_i32, %c0_i32_0 : i32, i32, i32
  }
  func.func @transform_2(%arg0: i32) -> (i32, i32, i32) {
    %c0_i32 = arith.constant 0 : i32
    %c0_i32_0 = arith.constant 0 : i32
    %c0_i32_1 = arith.constant 0 : i32
    return %arg0, %c0_i32, %c0_i32_0 : i32, i32, i32
  }
  func.func @transform_3(%arg0: i32) -> (i32, i32) {
    %c0_i32 = arith.constant 0 : i32
    %c0_i32_0 = arith.constant 0 : i32
    %c0_i32_1 = arith.constant 0 : i32
    return %c0_i32, %c0_i32_0 : i32, i32
  }
  func.func @transform_4(%arg0: i32) -> (i32, i32) {
    %c0_i32 = arith.constant 0 : i32
    %c0_i32_0 = arith.constant 0 : i32
    %c0_i32_1 = arith.constant 0 : i32
    return %c0_i32, %c0_i32_0 : i32, i32
  }
  func.func @transform_5(%arg0: i32) -> (i32, i32, i32) {
    %c0_i32 = arith.constant 0 : i32
    %c0_i32_0 = arith.constant 0 : i32
    %c0_i32_1 = arith.constant 0 : i32
    return %arg0, %c0_i32, %c0_i32_0 : i32, i32, i32
  }
}

module attributes {stable_mosaic.version = 11 : i64} {
  func.func @_modconv_kernel(%arg0: i32, %arg1: memref<1x16x16x4xbf16, #tpu.memory_space<vmem>>, %arg2: memref<1x1x4xf32, #tpu.memory_space<vmem>>, %arg3: memref<1x36x1xf32, #tpu.memory_space<vmem>>, %arg4: memref<4x128xf32, #tpu.memory_space<vmem>>, %arg5: memref<36x128xbf16, #tpu.memory_space<vmem>>, %arg6: memref<1x256x128xbf16, #tpu.memory_space<vmem>>, %arg7: memref<18x18x4xf32, #tpu.memory_space<vmem>>) attributes {dimension_semantics = [#tpu.dimension_semantics<parallel>], iteration_bounds = array<i64: 2>, scalar_prefetch = 0 : i64, scratch_operands = 1 : i64, tpu.core_type = #tpu.core_type<tc>, window_params = [{transform_indices = @transform_0, window_bounds = array<i64: 1, 16, 16, 4>}, {transform_indices = @transform_1, window_bounds = array<i64: 1, 1, 4>}, {transform_indices = @transform_2, window_bounds = array<i64: 1, 36, 1>}, {pipeline_mode = #tpu.pipeline_mode<synchronous>, transform_indices = @transform_3, window_bounds = array<i64: 4, 128>}, {pipeline_mode = #tpu.pipeline_mode<synchronous>, transform_indices = @transform_4, window_bounds = array<i64: 36, 128>}, {transform_indices = @transform_5, window_bounds = array<i64: 1, 256, 128>}]} {
    %c0 = arith.constant 0 : index
    %c0_0 = arith.constant 0 : index
    %c0_1 = arith.constant 0 : index
    %0 = vector.load %arg2[%c0, %c0_0, %c0_1] : memref<1x1x4xf32, #tpu.memory_space<vmem>>, vector<1x1x4xf32>
    %1 = vector.shape_cast %0 : vector<1x1x4xf32> to vector<1x4xf32>
    %2 = arith.mulf %1, %1 : vector<1x4xf32>
    %c0_2 = arith.constant 0 : index
    %c0_3 = arith.constant 0 : index
    %3 = vector.load %arg4[%c0_2, %c0_3] : memref<4x128xf32, #tpu.memory_space<vmem>>, vector<4x128xf32>
    %cst = arith.constant dense<0.000000e+00> : vector<1x128xf32>
    %4 = tpu.matmul %2, %3, %cst {dimension_numbers = #tpu.dot_dimension_numbers<[1], [0], [0], [1], [0, 0, 1, 1], [], []>} : vector<1x4xf32>, vector<4x128xf32>, vector<1x128xf32> -> vector<1x128xf32>
    %cst_4 = arith.constant 9.99999993E-9 : f32
    %5 = vector.broadcast %cst_4 : f32 to vector<1x128xf32>
    %6 = arith.addf %4, %5 : vector<1x128xf32>
    %7 = math.rsqrt %6 : vector<1x128xf32>
    %c0_5 = arith.constant 0 : index
    %c0_6 = arith.constant 0 : index
    %c0_7 = arith.constant 0 : index
    %8 = vector.load %arg3[%c0_5, %c0_6, %c0_7] : memref<1x36x1xf32, #tpu.memory_space<vmem>>, vector<1x36x1xf32>
    %9 = vector.shape_cast %8 : vector<1x36x1xf32> to vector<36x1xf32>
    %10 = vector.broadcast %9 : vector<36x1xf32> to vector<36x128xf32>
    %11 = vector.broadcast %7 : vector<1x128xf32> to vector<36x128xf32>
    %12 = arith.mulf %10, %11 : vector<36x128xf32>
    %c0_8 = arith.constant 0 : index
    %c0_9 = arith.constant 0 : index
    %13 = vector.load %arg5[%c0_8, %c0_9] : memref<36x128xbf16, #tpu.memory_space<vmem>>, vector<36x128xbf16>
    %14 = arith.extf %13 : vector<36x128xbf16> to vector<36x128xf32>
    %15 = arith.mulf %14, %12 : vector<36x128xf32>
    %16 = arith.truncf %15 : vector<36x128xf32> to vector<36x128xbf16>
    %cst_10 = arith.constant 0.000000e+00 : f32
    %17 = vector.broadcast %cst_10 : f32 to vector<18x18x4xf32>
    %c0_11 = arith.constant 0 : index
    %c0_12 = arith.constant 0 : index
    %c0_13 = arith.constant 0 : index
    %18 = vector.load %arg7[%c0_11, %c0_12, %c0_13] : memref<18x18x4xf32, #tpu.memory_space<vmem>>, vector<18x18x4xf32>
    tpu.vector_store %arg7[%c0_11, %c0_12, %c0_13], %17 {strides = array<i32>} : memref<18x18x4xf32, #tpu.memory_space<vmem>>, vector<18x18x4xf32>,
    %c0_14 = arith.constant 0 : index
    %c0_15 = arith.constant 0 : index
    %c0_16 = arith.constant 0 : index
    %c0_17 = arith.constant 0 : index
    %19 = vector.load %arg1[%c0_14, %c0_15, %c0_16, %c0_17] : memref<1x16x16x4xbf16, #tpu.memory_space<vmem>>, vector<1x16x16x4xbf16>
    %20 = vector.shape_cast %19 : vector<1x16x16x4xbf16> to vector<16x16x4xbf16>
    %21 = arith.extf %20 : vector<16x16x4xbf16> to vector<16x16x4xf32>
    %c1 = arith.constant 1 : index
    %c1_18 = arith.constant 1 : index
    %c0_19 = arith.constant 0 : index
    %22 = vector.load %arg7[%c1, %c1_18, %c0_19] : memref<18x18x4xf32, #tpu.memory_space<vmem>>, vector<16x16x4xf32>
    tpu.vector_store %arg7[%c1, %c1_18, %c0_19], %21 {strides = array<i32>} : memref<18x18x4xf32, #tpu.memory_space<vmem>>, vector<16x16x4xf32>,
    %c0_20 = arith.constant 0 : index
    %c0_21 = arith.constant 0 : index
    %c0_22 = arith.constant 0 : index
    %23 = vector.load %arg7[%c0_20, %c0_21, %c0_22] : memref<18x18x4xf32, #tpu.memory_space<vmem>>, vector<18x18x4xf32>
    %24 = vector.extract_strided_slice %23 {offsets = [0, 0, 0], sizes = [18, 16, 4], strides = [1, 1, 1]} : vector<18x18x4xf32> to vector<18x16x4xf32>
    %25 = vector.shape_cast %24 : vector<18x16x4xf32> to vector<288x4xf32>
    %26 = vector.extract_strided_slice %23 {offsets = [0, 1, 0], sizes = [18, 16, 4], strides = [1, 1, 1]} : vector<18x18x4xf32> to vector<18x16x4xf32>
    %27 = vector.shape_cast %26 : vector<18x16x4xf32> to vector<288x4xf32>
    %28 = vector.extract_strided_slice %23 {offsets = [0, 2, 0], sizes = [18, 16, 4], strides = [1, 1, 1]} : vector<18x18x4xf32> to vector<18x16x4xf32>
    %29 = vector.shape_cast %28 : vector<18x16x4xf32> to vector<288x4xf32>
    %30 = tpu.concatenate %25, %27, %29 in 1 : vector<288x4xf32>, vector<288x4xf32>, vector<288x4xf32> -> vector<288x12xf32>
    %31 = vector.extract_strided_slice %30 {offsets = [0, 0], sizes = [256, 12], strides = [1, 1]} : vector<288x12xf32> to vector<256x12xf32>
    %32 = vector.extract_strided_slice %30 {offsets = [16, 0], sizes = [256, 12], strides = [1, 1]} : vector<288x12xf32> to vector<256x12xf32>
    %33 = vector.extract_strided_slice %30 {offsets = [32, 0], sizes = [256, 12], strides = [1, 1]} : vector<288x12xf32> to vector<256x12xf32>
    %34 = tpu.concatenate %31, %32, %33 in 1 : vector<256x12xf32>, vector<256x12xf32>, vector<256x12xf32> -> vector<256x36xf32>
    %35 = arith.truncf %34 : vector<256x36xf32> to vector<256x36xbf16>
    %cst_23 = arith.constant dense<0.000000e+00> : vector<256x128xf32>
    %36 = tpu.matmul %35, %16, %cst_23 {dimension_numbers = #tpu.dot_dimension_numbers<[1], [0], [0], [1], [0, 0, 1, 1], [], []>} : vector<256x36xbf16>, vector<36x128xbf16>, vector<256x128xf32> -> vector<256x128xf32>
    %37 = arith.truncf %36 : vector<256x128xf32> to vector<256x128xbf16>
    %c0_24 = arith.constant 0 : index
    %c0_25 = arith.constant 0 : index
    %c0_26 = arith.constant 0 : index
    %38 = vector.load %arg6[%c0_24, %c0_25, %c0_26] : memref<1x256x128xbf16, #tpu.memory_space<vmem>>, vector<1x256x128xbf16>
    %39 = vector.shape_cast %38 : vector<1x256x128xbf16> to vector<256x128xbf16>
    %40 = vector.shape_cast %37 : vector<256x128xbf16> to vector<1x256x128xbf16>
    tpu.vector_store %arg6[%c0_24, %c0_25, %c0_26], %40 {strides = array<i32>} : memref<1x256x128xbf16, #tpu.memory_space<vmem>>, vector<1x256x128xbf16>,
    return
  }
  func.func @transform_0(%arg0: i32) -> (i32, i32, i32, i32) {
    %c0_i32 = arith.constant 0 : i32
    %c0_i32_0 = arith.constant 0 : i32
    %c0_i32_1 = arith.constant 0 : i32
    %c0_i32_2 = arith.constant 0 : i32
    return %arg0, %c0_i32, %c0_i32_0, %c0_i32_1 : i32, i32, i32, i32
  }
  func.func @transform_1(%arg0: i32) -> (i32, i32, i32) {
    %c0_i32 = arith.constant 0 : i32
    %c0_i32_0 = arith.constant 0 : i32
    %c0_i32_1 = arith.constant 0 : i32
    return %arg0, %c0_i32, %c0_i32_0 : i32, i32, i32
  }
  func.func @transform_2(%arg0: i32) -> (i32, i32, i32) {
    %c0_i32 = arith.constant 0 : i32
    %c0_i32_0 = arith.constant 0 : i32
    %c0_i32_1 = arith.constant 0 : i32
    return %arg0, %c0_i32, %c0_i32_0 : i32, i32, i32
  }
  func.func @transform_3(%arg0: i32) -> (i32, i32) {
    %c0_i32 = arith.constant 0 : i32
    %c0_i32_0 = arith.constant 0 : i32
    %c0_i32_1 = arith.constant 0 : i32
    return %c0_i32, %c0_i32_0 : i32, i32
  }
  func.func @transform_4(%arg0: i32) -> (i32, i32) {
    %c0_i32 = arith.constant 0 : i32
    %c0_i32_0 = arith.constant 0 : i32
    %c0_i32_1 = arith.constant 0 : i32
    return %c0_i32, %c0_i32_0 : i32, i32
  }
  func.func @transform_5(%arg0: i32) -> (i32, i32, i32) {
    %c0_i32 = arith.constant 0 : i32
    %c0_i32_0 = arith.constant 0 : i32
    %c0_i32_1 = arith.constant 0 : i32
    return %arg0, %c0_i32, %c0_i32_0 : i32, i32, i32
  }
}

</mosaic_0001>

<llo_original>
// kernel: tpu_custom_call.1
$region0: #{tpu_custom_call.1}
  #allocation0 [shape = 'u32[]', space=smem, size = 0x4, offset = 0x4, fixed_abs, tag = 'smem constant byte address 0x4 - core index']
  #allocation1 [shape = 'u32[144,128]{1,0:T(1,128)}', space=vmem, size = 0x12000, scoped, tag = 'internal scratch']
  #allocation2 [shape = 'f32[18,18,4]{2,1,0:T(8,128)}', space=vmem, size = 0x36000, scoped, tag = 'scratch operand']
  %s0 = inlined_call_operand.vmem [shape: bf16[2,16,16,4], index: 0, kind: input, shape index: {}]
  %s1 = inlined_call_operand.vmem [shape: f32[2,1,4], index: 1, kind: input, shape index: {}]
  %s2 = inlined_call_operand.vmem [shape: f32[2,36,1], index: 2, kind: input, shape index: {}]
  %s3 = inlined_call_operand.vmem [shape: f32[4,128], index: 3, kind: input, shape index: {}]
  %s4 = inlined_call_operand.vmem [shape: bf16[36,128], index: 4, kind: input, shape index: {}]
  %s5 = inlined_call_operand.hbm [shape: bf16[2,256,128], index: 5, kind: output, shape index: {}]
  %s6 = sld [smem:[#allocation0]]
  $region53: #{tpu_custom_call.1} parent=0
    _
  %s8 = ssub.s32 1, %s6
  %s9 = scalar_select 0, %s8, %s6
  $region1: #{tpu_custom_call.1} parent=0
    #allocation3 [shape = 'u8[131072]{0}', space=vmem, size = 0x20000, scoped, tag = 'output window, operand 0']
    #allocation4 [shape = 's32[2]{0}', space=sflag, size = 0x8, scoped, tag = 'scoped memory for tpu_custom_call.1']
    %10 = vsyncpa [#allocation4], 0
    %s11 = scalar_lea.sflag [#allocation4], 1
    %12 = vsyncpa %s11, 0
    loop: start=0, step=1, limit=4
    $region2: #{tpu_custom_call.1} parent=1 // loop_pre_header
      _
    $region3: #{tpu_custom_call.1} parent=1 // loop_header
      %s14 = sphi 0, %s18
      %p15 = scmp.ge.s32.totalorder %s14, 4
      %s24 = sphi 0, %s26
      %s27 = sphi 0, %s24
      %s28 = sphi 0, %s27
      %s44 = sphi 0, %s28
      %s50 = sphi 0, %s52
      %s53 = sphi 0, %s50
      %s54 = sphi 0, %s53
      %s70 = sphi 0, %s54
      %s76 = sphi 0, %s78
      %s79 = sphi 0, %s76
      %s80 = sphi 0, %s79
      %s96 = sphi 0, %s80
      %s100 = sphi 0, %s100
      %s102 = sphi 0, %s100
      %s103 = sphi 0, %s102
      %s117 = sphi 0, %s103
      %s121 = sphi 0, %s121
      %s123 = sphi 0, %s121
      %s124 = sphi 0, %s123
      %s138 = sphi 0, %s124
      %s144 = sphi 0, %s146
      %s147 = sphi 0, %s144
      %s148 = sphi 0, %s147
      %s164 = sphi 0, %s148
    $region4: #{tpu_custom_call.1} parent=1 // loop_header_branch
      %17 = sbr.rel (%p15) target = $region8
    $region5: #{tpu_custom_call.1} parent=1 // loop_body
      %s19 = ssub.s32 %s14, 1
      %s20 = ssub.s32 %s14, 2
      %s21 = sadd.s32 %s14, 1
      %s22 = ssub.s32 %s14, %s21
      %p23 = scmp.eq.s32.totalorder %s22, 0
      %s25 = sadd.s32 %s24, 1
      %s26 = scalar_select %p23, %s24, %s25
      %p29 = pneg %p23
      %p30 = scmp.eq.s32.totalorder %s14, 1
      %p31 = por %p29, %p30
      %p32 = scmp.ne.s32.totalorder %s24, %s27
      %p33 = scmp.eq.s32.totalorder %s14, 0
      %p34 = por %p32, %p33
      %p35 = scmp.ne.s32.totalorder %s24, %s27
      %p36 = scmp.eq.s32.totalorder %s19, 1
      %p37 = por %p35, %p36
      %p38 = scmp.ne.s32.totalorder %s27, %s28
      %p39 = scmp.eq.s32.totalorder %s19, 0
      %p40 = por %p38, %p39
      %p41 = scmp.ne.s32.totalorder %s27, %s28
      %p42 = scmp.eq.s32.totalorder %s20, 1
      %p43 = por %p41, %p42
      %p45 = scmp.ne.s32.totalorder %s28, %s44
      %p46 = scmp.eq.s32.totalorder %s20, 0
      %p47 = por %p45, %p46
      %s48 = ssub.s32 %s14, %s21
      %p49 = scmp.eq.s32.totalorder %s48, 0
      %s51 = sadd.s32 %s50, 1
      %s52 = scalar_select %p49, %s50, %s51
      %p55 = pneg %p49
      %p56 = scmp.eq.s32.totalorder %s14, 1
      %p57 = por %p55, %p56
      %p58 = scmp.ne.s32.totalorder %s50, %s53
      %p59 = scmp.eq.s32.totalorder %s14, 0
      %p60 = por %p58, %p59
      %p61 = scmp.ne.s32.totalorder %s50, %s53
      %p62 = scmp.eq.s32.totalorder %s19, 1
      %p63 = por %p61, %p62
      %p64 = scmp.ne.s32.totalorder %s53, %s54
      %p65 = scmp.eq.s32.totalorder %s19, 0
      %p66 = por %p64, %p65
      %p67 = scmp.ne.s32.totalorder %s53, %s54
      %p68 = scmp.eq.s32.totalorder %s20, 1
      %p69 = por %p67, %p68
      %p71 = scmp.ne.s32.totalorder %s54, %s70
      %p72 = scmp.eq.s32.totalorder %s20, 0
      %p73 = por %p71, %p72
      %s74 = ssub.s32 %s14, %s21
      %p75 = scmp.eq.s32.totalorder %s74, 0
      %s77 = sadd.s32 %s76, 1
      %s78 = scalar_select %p75, %s76, %s77
      %p81 = pneg %p75
      %p82 = scmp.eq.s32.totalorder %s14, 1
      %p83 = por %p81, %p82
      %p84 = scmp.ne.s32.totalorder %s76, %s79
      %p85 = scmp.eq.s32.totalorder %s14, 0
      %p86 = por %p84, %p85
      %p87 = scmp.ne.s32.totalorder %s76, %s79
      %p88 = scmp.eq.s32.totalorder %s19, 1
      %p89 = por %p87, %p88
      %p90 = scmp.ne.s32.totalorder %s79, %s80
      %p91 = scmp.eq.s32.totalorder %s19, 0
      %p92 = por %p90, %p91
      %p93 = scmp.ne.s32.totalorder %s79, %s80
      %p94 = scmp.eq.s32.totalorder %s20, 1
      %p95 = por %p93, %p94
      %p97 = scmp.ne.s32.totalorder %s80, %s96
      %p98 = scmp.eq.s32.totalorder %s20, 0
      %p99 = por %p97, %p98
      %s101 = sadd.s32 %s100, 1
      %p104 = scmp.eq.s32.totalorder %s14, 1
      %p105 = scmp.ne.s32.totalorder %s100, %s102
      %p106 = scmp.eq.s32.totalorder %s14, 0
      %p107 = por %p105, %p106
      %p108 = scmp.ne.s32.totalorder %s100, %s102
      %p109 = scmp.eq.s32.totalorder %s19, 1
      %p110 = por %p108, %p109
      %p111 = scmp.ne.s32.totalorder %s102, %s103
      %p112 = scmp.eq.s32.totalorder %s19, 0
      %p113 = por %p111, %p112
      %p114 = scmp.ne.s32.totalorder %s102, %s103
      %p115 = scmp.eq.s32.totalorder %s20, 1
      %p116 = por %p114, %p115
      %p118 = scmp.ne.s32.totalorder %s103, %s117
      %p119 = scmp.eq.s32.totalorder %s20, 0
      %p120 = por %p118, %p119
      %s122 = sadd.s32 %s121, 1
      %p125 = scmp.eq.s32.totalorder %s14, 1
      %p126 = scmp.ne.s32.totalorder %s121, %s123
      %p127 = scmp.eq.s32.totalorder %s14, 0
      %p128 = por %p126, %p127
      %p129 = scmp.ne.s32.totalorder %s121, %s123
      %p130 = scmp.eq.s32.totalorder %s19, 1
      %p131 = por %p129, %p130
      %p132 = scmp.ne.s32.totalorder %s123, %s124
      %p133 = scmp.eq.s32.totalorder %s19, 0
      %p134 = por %p132, %p133
      %p135 = scmp.ne.s32.totalorder %s123, %s124
      %p136 = scmp.eq.s32.totalorder %s20, 1
      %p137 = por %p135, %p136
      %p139 = scmp.ne.s32.totalorder %s124, %s138
      %p140 = scmp.eq.s32.totalorder %s20, 0
      %p141 = por %p139, %p140
      %s142 = ssub.s32 %s14, %s21
      %p143 = scmp.eq.s32.totalorder %s142, 0
      %s145 = sadd.s32 %s144, 1
      %s146 = scalar_select %p143, %s144, %s145
      %p149 = pneg %p143
      %p150 = scmp.eq.s32.totalorder %s14, 1
      %p151 = por %p149, %p150
      %p152 = scmp.ne.s32.totalorder %s144, %s147
      %p153 = scmp.eq.s32.totalorder %s14, 0
      %p154 = por %p152, %p153
      %p155 = scmp.ne.s32.totalorder %s144, %s147
      %p156 = scmp.eq.s32.totalorder %s19, 1
      %p157 = por %p155, %p156
      %p158 = scmp.ne.s32.totalorder %s147, %s148
      %p159 = scmp.eq.s32.totalorder %s19, 0
      %p160 = por %p158, %p159
      %p161 = scmp.ne.s32.totalorder %s147, %s148
      %p162 = scmp.eq.s32.totalorder %s20, 1
      %p163 = por %p161, %p162
      %p165 = scmp.ne.s32.totalorder %s148, %s164
      %p166 = scmp.eq.s32.totalorder %s20, 0
      %p167 = por %p165, %p166
      %p168 = scmp.le.s32.totalorder 1, %s14
      %p169 = scmp.lt.s32.totalorder %s14, 3
      %p170 = pnand %p168, %p169
      %p171 = pneg %p170
      // Predicated region
      $region9: #{tpu_custom_call.1} parent=5 // pred_check
        _
      $region10: #{tpu_custom_call.1} parent=5 // pred_check_branch
        %173 = sbr.rel (%p170) target = $region12
      $region11: #{tpu_custom_call.1} parent=5 // pred_region
        %s174 = ssub.s32 %s14, 1
        // Predicated region
        $region13: #{tpu_custom_call.1} parent=11 // pred_check
          %p175 = pneg %p113
        $region14: #{tpu_custom_call.1} parent=11 // pred_check_branch
          %177 = sbr.rel (%p175) target = $region16
        $region15: #{tpu_custom_call.1} parent=11 // pred_region
          _
        $region16: #{tpu_custom_call.1} parent=11 // pred_fallthru
          _
        // Predicated region
        $region17: #{tpu_custom_call.1} parent=11 // pred_check
          %p178 = pneg %p134
        $region18: #{tpu_custom_call.1} parent=11 // pred_check_branch
          %180 = sbr.rel (%p178) target = $region20
        $region19: #{tpu_custom_call.1} parent=11 // pred_region
          _
        $region20: #{tpu_custom_call.1} parent=11 // pred_fallthru
          _
      $region12: #{tpu_custom_call.1} parent=5 // pred_fallthru
        _
      %p181 = scmp.lt.s32.totalorder %s14, 2
      // Predicated region
      $region21: #{tpu_custom_call.1} parent=5 // pred_check
        %p182 = pneg %p181
      $region22: #{tpu_custom_call.1} parent=5 // pred_check_branch
        %184 = sbr.rel (%p182) target = $region24
      $region23: #{tpu_custom_call.1} parent=5 // pred_region
        // Predicated region
        $region25: #{tpu_custom_call.1} parent=23 // pred_check
          %p185 = pneg %p34
        $region26: #{tpu_custom_call.1} parent=23 // pred_check_branch
          %187 = sbr.rel (%p185) target = $region28
        $region27: #{tpu_custom_call.1} parent=23 // pred_region
          %p188 = scmp.lt.s32.totalorder %s14, 1
          %s189 = scalar_select %p188, %s14, 1
          %s190 = smul.addr %s189, 32
          %s191 = smul.addr %s190, 4
          %s192 = scalar_lea.vmem %s0, %s191
        $region28: #{tpu_custom_call.1} parent=23 // pred_fallthru
          _
        // Predicated region
        $region29: #{tpu_custom_call.1} parent=23 // pred_check
          %p193 = pneg %p60
        $region30: #{tpu_custom_call.1} parent=23 // pred_check_branch
          %195 = sbr.rel (%p193) target = $region32
        $region31: #{tpu_custom_call.1} parent=23 // pred_region
          %p196 = scmp.lt.s32.totalorder %s14, 1
          %s197 = scalar_select %p196, %s14, 1
          %s198 = scalar_lea.vmem %s1, %s197
        $region32: #{tpu_custom_call.1} parent=23 // pred_fallthru
          _
        // Predicated region
        $region33: #{tpu_custom_call.1} parent=23 // pred_check
          %p199 = pneg %p86
        $region34: #{tpu_custom_call.1} parent=23 // pred_check_branch
          %201 = sbr.rel (%p199) target = $region36
        $region35: #{tpu_custom_call.1} parent=23 // pred_region
          %p202 = scmp.lt.s32.totalorder %s14, 1
          %s203 = scalar_select %p202, %s14, 1
          %s204 = smul.addr %s203, 5
          %s205 = smul.addr %s204, 8
          %s206 = scalar_lea.vmem %s2, %s205
        $region36: #{tpu_custom_call.1} parent=23 // pred_fallthru
          _
      $region24: #{tpu_custom_call.1} parent=5 // pred_fallthru
        _
      %p207 = scmp.le.s32.totalorder 1, %s14
      %p208 = scmp.lt.s32.totalorder %s14, 3
      %p209 = pnand %p207, %p208
      %p210 = pneg %p209
      // Predicated region
      $region37: #{tpu_custom_call.1} parent=5 // pred_check
        _
      $region38: #{tpu_custom_call.1} parent=5 // pred_check_branch
        %212 = sbr.rel (%p209) target = $region40
      $region39: #{tpu_custom_call.1} parent=5 // pred_region
        %s213 = ssub.s32 %s14, 1
        %p214 = scmp.lt.s32.totalorder %s19, 1
        %s215 = scalar_select %p214, %s19, 1
        %s216 = smul.addr %s215, 32
        %s217 = smul.addr %s216, 4
        %s218 = scalar_lea.vmem %s0, %s217
        %p219 = pneg %p40
        %p220 = pneg %p37
        %p221 = scmp.lt.s32.totalorder %s19, 1
        %s222 = scalar_select %p221, %s19, 1
        %s223 = scalar_lea.vmem %s1, %s222
        %p224 = pneg %p66
        %p225 = pneg %p63
        %p226 = scmp.lt.s32.totalorder %s19, 1
        %s227 = scalar_select %p226, %s19, 1
        %s228 = smul.addr %s227, 5
        %s229 = smul.addr %s228, 8
        %s230 = scalar_lea.vmem %s2, %s229
        %p231 = pneg %p92
        %p232 = pneg %p89
        %p233 = pneg %p113
        %p234 = pneg %p110
        %p235 = pneg %p134
        %p236 = pneg %p131
        %p237 = pneg %p160
        %p238 = pneg %p157
        %s239 = sand.u32 %s147, 1
        %s240 = scalar_lea.sflag [#allocation4], %s239
        %s241 = sand.u32 %s147, 1
        %s242 = smul.addr %s241, 128
        %s243 = scalar_lea.vmem [#allocation3], %s242
        %p244 = scmp.lt.s32.totalorder %s19, 1
        %s245 = scalar_select %p244, %s19, 1
        %s246 = smul.addr %s245, 32
        %s247 = smul.addr %s246, 4
        %s248 = scalar_lea.vmem %s0, %s247
        %p249 = scmp.lt.s32.totalorder %s19, 1
        %s250 = scalar_select %p249, %s19, 1
        %s251 = scalar_lea.vmem %s1, %s250
        %p252 = scmp.lt.s32.totalorder %s19, 1
        %s253 = scalar_select %p252, %s19, 1
        %s254 = smul.addr %s253, 5
        %s255 = smul.addr %s254, 8
        %s256 = scalar_lea.vmem %s2, %s255
        %v258 = vld [vmem:[%s251] sm:$0x1]
        %v259 = vmul.f32 %v258, %v258
        %v260 = vld [vmem:[%s3] sm:$0xf]
        %vm261 = vcmask 31744
        %v263 = vsel %vm261, %v259, 0
        %vm265 = vcmask 1043456
        %v267 = vsel %vm265, %v260, 0
        %269 = vmatprep.subr.mxu0 0.0
        %270 = vmatpush1.msra.mxu0 %v267
        %271 = vmatprep.subr.mxu0 0.0
        %272 = vmatpush1.msra.mxu0 0.0
        %273 = vmatprep.subr.mxu0 0.0
        %274 = vmatpush1.msra.mxu0 0.0
        %275 = vmatprep.subr.mxu0 0.0
        %276 = vmatpush1.msra.mxu0 0.0
        %277 = vmatprep.subr.mxu0 0.0
        %278 = vmatpush1.msra.mxu0 0.0
        %279 = vmatprep.subr.mxu0 0.0
        %280 = vmatpush1.msra.mxu0 0.0
        %281 = vmatprep.subr.mxu0 0.0
        %282 = vmatpush1.msra.mxu0 0.0
        %283 = vmatprep.subr.mxu0 0.0
        %284 = vmatpush1.msra.mxu0 0.0
        %285 = vmatprep.subr.mxu0 0.0
        %286 = vmatpush1.msra.mxu0 0.0
        %287 = vmatprep.subr.mxu0 0.0
        %288 = vmatpush1.msra.mxu0 0.0
        %289 = vmatprep.subr.mxu0 0.0
        %290 = vmatpush1.msra.mxu0 0.0
        %291 = vmatprep.subr.mxu0 0.0
        %292 = vmatpush1.msra.mxu0 0.0
        %293 = vmatprep.subr.mxu0 0.0
        %294 = vmatpush1.msra.mxu0 0.0
        %295 = vmatprep.subr.mxu0 0.0
        %296 = vmatpush1.msra.mxu0 0.0
        %297 = vmatprep.subr.mxu0 0.0
        %298 = vmatpush1.msra.mxu0 0.0
        %299 = vmatprep.subr.mxu0 0.0
        %300 = vmatpush1.msra.mxu0 0.0
        %301 = vmatprep.subr.mxu0 0.0
        %302 = vmatpush1.msra.mxu0 0.0
        %303 = vmatprep.subr.mxu0 0.0
        %304 = vmatpush1.msra.mxu0 0.0
        %305 = vmatprep.subr.mxu0 0.0
        %306 = vmatpush1.msra.mxu0 0.0
        %307 = vmatprep.subr.mxu0 0.0
        %308 = vmatpush1.msra.mxu0 0.0
        %309 = vmatprep.subr.mxu0 0.0
        %310 = vmatpush1.msra.mxu0 0.0
        %311 = vmatprep.subr.mxu0 0.0
        %312 = vmatpush1.msra.mxu0 0.0
        %313 = vmatprep.subr.mxu0 0.0
        %314 = vmatpush1.msra.mxu0 0.0
        %315 = vmatprep.subr.mxu0 0.0
        %316 = vmatpush1.msra.mxu0 0.0
        %317 = vmatprep.subr.mxu0 0.0
        %318 = vmatpush1.msra.mxu0 0.0
        %319 = vmatprep.subr.mxu0 0.0
        %320 = vmatpush1.msra.mxu0 0.0
        %321 = vmatprep.subr.mxu0 0.0
        %322 = vmatpush1.msra.mxu0 0.0
        %323 = vmatprep.subr.mxu0 0.0
        %324 = vmatpush1.msra.mxu0 0.0
        %325 = vmatprep.subr.mxu0 0.0
        %326 = vmatpush1.msra.mxu0 0.0
        %327 = vmatprep.subr.mxu0 0.0
        %328 = vmatpush1.msra.mxu0 0.0
        %329 = vmatprep.subr.mxu0 0.0
        %330 = vmatpush1.msra.mxu0 0.0
        %331 = vmatprep.subr.mxu0 0.0
        %332 = vmatpush1.msra.mxu0 0.0
        %333 = vmatprep.mubr.f32.mxu0 0.0
        %334 = vmatmul.mubr.f32.gmra.mrb[0].mxu0 %v263
        %v335 = vpop.f32.mrb[0].mxu0
        %v336 = vadd.f32 1e-08, %v335
        %v337 = vpop.f32.mrb[0].mxu0
        %338 = vdwg.mxu0
        %v339 = vrsqrt.pop %v336
        %v340 = vld [vmem:[%s256] sm:$0xff]
        %v341 = vld [vmem:[%s256 + $0x8] sm:$0xff]
        %v342 = vld [vmem:[%s256 + $0x10] sm:$0xff]
        %v343 = vld [vmem:[%s256 + $0x18] sm:$0xff]
        %v344 = vld [vmem:[%s256 + $0x20] sm:$0xf]
        %346 = vset.pattern.permute.xlu0 0
        %347 = vperm.xlu0 %346, %v340
        %v348 = vpop.permute.xlu0 %347
        %351 = vset.pattern.permute.xlu0 0
        %352 = vperm.xlu0 %351, %v341
        %v353 = vpop.permute.xlu0 %352
        %356 = vset.pattern.permute.xlu0 0
        %357 = vperm.xlu0 %356, %v342
        %v358 = vpop.permute.xlu0 %357
        %361 = vset.pattern.permute.xlu0 0
        %362 = vperm.xlu0 %361, %v343
        %v363 = vpop.permute.xlu0 %362
        %366 = vset.pattern.permute.xlu0 0
        %367 = vperm.xlu0 %366, %v344
        %v368 = vpop.permute.xlu0 %367
        %v370 = vlaneseq
        %v371 = vshrl.u32 %v370, 7
        %v372 = vsub.s32 0, %v371
        %v373 = vrot.slane %v339, %v372
        %v374 = vmul.f32 %v348, %v373
        %v375 = vmul.f32 %v353, %v373
        %v376 = vmul.f32 %v358, %v373
        %v377 = vmul.f32 %v363, %v373
        %v378 = vmul.f32 %v368, %v373
        %v379 = vld [vmem:[%s4] sm:$0xf]
        %v380 = vld [vmem:[%s4 + $0x4] sm:$0xf]
        %v381 = vld [vmem:[%s4 + $0x8] sm:$0xf]
        %v382 = vld [vmem:[%s4 + $0xc] sm:$0xf]
        %v383 = vld [vmem:[%s4 + $0x10] sm:$0x3]
        %v384 = vunpack.c.l.bf16 %v379
        %v385 = vunpack.c.l.bf16 %v380
        %v386 = vunpack.c.l.bf16 %v381
        %v387 = vunpack.c.l.bf16 %v382
        %v388 = vunpack.c.l.bf16 %v383
        %v389 = vmul.f32 %v384, %v374
        %v390 = vmul.f32 %v385, %v375
        %v391 = vmul.f32 %v386, %v376
        %v392 = vmul.f32 %v387, %v377
        %v393 = vmul.f32 %v388, %v378
        %v394 = vpack.c.bf16 %v390, %v389
        %v395 = vpack.c.bf16 %v392, %v391
        %v396 = vpack.c.bf16 %v393, %v393
        %397 = vst.msk [vmem:[#allocation2] sm:$0xff] %vm261, 0.0
        %398 = vst.msk [vmem:[#allocation2 + $0x8] sm:$0xff] %vm261, 0.0
        %vm399 = vcmask 25600
        %400 = vst.msk [vmem:[#allocation2 + $0x10] sm:$0x3] %vm399, 0.0
        %401 = vst.msk [vmem:[#allocation2 + $0x18] sm:$0xff] %vm261, 0.0
        %402 = vst.msk [vmem:[#allocation2 + $0x20] sm:$0xff] %vm261, 0.0
        %403 = vst.msk [vmem:[#allocation2 + $0x28] sm:$0x3] %vm399, 0.0
        %404 = vst.msk [vmem:[#allocation2 + $0x30] sm:$0xff] %vm261, 0.0
        %405 = vst.msk [vmem:[#allocation2 + $0x38] sm:$0xff] %vm261, 0.0
        %406 = vst.msk [vmem:[#allocation2 + $0x40] sm:$0x3] %vm399, 0.0
        %407 = vst.msk [vmem:[#allocation2 + $0x48] sm:$0xff] %vm261, 0.0
        %408 = vst.msk [vmem:[#allocation2 + $0x50] sm:$0xff] %vm261, 0.0
        %409 = vst.msk [vmem:[#allocation2 + $0x58] sm:$0x3] %vm399, 0.0
        %410 = vst.msk [vmem:[#allocation2 + $0x60] sm:$0xff] %vm261, 0.0
        %411 = vst.msk [vmem:[#allocation2 + $0x68] sm:$0xff] %vm261, 0.0
        %412 = vst.msk [vmem:[#allocation2 + $0x70] sm:$0x3] %vm399, 0.0
        %413 = vst.msk [vmem:[#allocation2 + $0x78] sm:$0xff] %vm261, 0.0
        %414 = vst.msk [vmem:[#allocation2 + $0x80] sm:$0xff] %vm261, 0.0
        %415 = vst.msk [vmem:[#allocation2 + $0x88] sm:$0x3] %vm399, 0.0
        %416 = vst.msk [vmem:[#allocation2 + $0x90] sm:$0xff] %vm261, 0.0
        %417 = vst.msk [vmem:[#allocation2 + $0x98] sm:$0xff] %vm261, 0.0
        %418 = vst.msk [vmem:[#allocation2 + $0xa0] sm:$0x3] %vm399, 0.0
        %419 = vst.msk [vmem:[#allocation2 + $0xa8] sm:$0xff] %vm261, 0.0
        %420 = vst.msk [vmem:[#allocation2 + $0xb0] sm:$0xff] %vm261, 0.0
        %421 = vst.msk [vmem:[#allocation2 + $0xb8] sm:$0x3] %vm399, 0.0
        %422 = vst.msk [vmem:[#allocation2 + $0xc0] sm:$0xff] %vm261, 0.0
        %423 = vst.msk [vmem:[#allocation2 + $0xc8] sm:$0xff] %vm261, 0.0
        %424 = vst.msk [vmem:[#allocation2 + $0xd0] sm:$0x3] %vm399, 0.0
        %425 = vst.msk [vmem:[#allocation2 + $0xd8] sm:$0xff] %vm261, 0.0
        %426 = vst.msk [vmem:[#allocation2 + $0xe0] sm:$0xff] %vm261, 0.0
        %427 = vst.msk [vmem:[#allocation2 + $0xe8] sm:$0x3] %vm399, 0.0
        %428 = vst.msk [vmem:[#allocation2 + $0xf0] sm:$0xff] %vm261, 0.0
        %429 = vst.msk [vmem:[#allocation2 + $0xf8] sm:$0xff] %vm261, 0.0
        %430 = vst.msk [vmem:[#allocation2 + $0x100] sm:$0x3] %vm399, 0.0
        %431 = vst.msk [vmem:[#allocation2 + $0x108] sm:$0xff] %vm261, 0.0
        %432 = vst.msk [vmem:[#allocation2 + $0x110] sm:$0xff] %vm261, 0.0
        %433 = vst.msk [vmem:[#allocation2 + $0x118] sm:$0x3] %vm399, 0.0
        %434 = vst.msk [vmem:[#allocation2 + $0x120] sm:$0xff] %vm261, 0.0
        %435 = vst.msk [vmem:[#allocation2 + $0x128] sm:$0xff] %vm261, 0.0
        %436 = vst.msk [vmem:[#allocation2 + $0x130] sm:$0x3] %vm399, 0.0
        %437 = vst.msk [vmem:[#allocation2 + $0x138] sm:$0xff] %vm261, 0.0
        %438 = vst.msk [vmem:[#allocation2 + $0x140] sm:$0xff] %vm261, 0.0
        %439 = vst.msk [vmem:[#allocation2 + $0x148] sm:$0x3] %vm399, 0.0
        %440 = vst.msk [vmem:[#allocation2 + $0x150] sm:$0xff] %vm261, 0.0
        %441 = vst.msk [vmem:[#allocation2 + $0x158] sm:$0xff] %vm261, 0.0
        %442 = vst.msk [vmem:[#allocation2 + $0x160] sm:$0x3] %vm399, 0.0
        %443 = vst.msk [vmem:[#allocation2 + $0x168] sm:$0xff] %vm261, 0.0
        %444 = vst.msk [vmem:[#allocation2 + $0x170] sm:$0xff] %vm261, 0.0
        %445 = vst.msk [vmem:[#allocation2 + $0x178] sm:$0x3] %vm399, 0.0
        %446 = vst.msk [vmem:[#allocation2 + $0x180] sm:$0xff] %vm261, 0.0
        %447 = vst.msk [vmem:[#allocation2 + $0x188] sm:$0xff] %vm261, 0.0
        %448 = vst.msk [vmem:[#allocation2 + $0x190] sm:$0x3] %vm399, 0.0
        %449 = vst.msk [vmem:[#allocation2 + $0x198] sm:$0xff] %vm261, 0.0
        %450 = vst.msk [vmem:[#allocation2 + $0x1a0] sm:$0xff] %vm261, 0.0
        %451 = vst.msk [vmem:[#allocation2 + $0x1a8] sm:$0x3] %vm399, 0.0
        %v452 = vld [vmem:[%s248] sm:$0xf]
        %v453 = vld [vmem:[%s248 + $0x4] sm:$0xf]
        %v454 = vld [vmem:[%s248 + $0x8] sm:$0xf]
        %v455 = vld [vmem:[%s248 + $0xc] sm:$0xf]
        %v456 = vld [vmem:[%s248 + $0x10] sm:$0xf]
        %v457 = vld [vmem:[%s248 + $0x14] sm:$0xf]
        %v458 = vld [vmem:[%s248 + $0x18] sm:$0xf]
        %v459 = vld [vmem:[%s248 + $0x1c] sm:$0xf]
        %v460 = vld [vmem:[%s248 + $0x20] sm:$0xf]
        %v461 = vld [vmem:[%s248 + $0x24] sm:$0xf]
        %v462 = vld [vmem:[%s248 + $0x28] sm:$0xf]
        %v463 = vld [vmem:[%s248 + $0x2c] sm:$0xf]
        %v464 = vld [vmem:[%s248 + $0x30] sm:$0xf]
        %v465 = vld [vmem:[%s248 + $0x34] sm:$0xf]
        %v466 = vld [vmem:[%s248 + $0x38] sm:$0xf]
        %v467 = vld [vmem:[%s248 + $0x3c] sm:$0xf]
        %v468 = vld [vmem:[%s248 + $0x40] sm:$0xf]
        %v469 = vld [vmem:[%s248 + $0x44] sm:$0xf]
        %v470 = vld [vmem:[%s248 + $0x48] sm:$0xf]
        %v471 = vld [vmem:[%s248 + $0x4c] sm:$0xf]
        %v472 = vld [vmem:[%s248 + $0x50] sm:$0xf]
        %v473 = vld [vmem:[%s248 + $0x54] sm:$0xf]
        %v474 = vld [vmem:[%s248 + $0x58] sm:$0xf]
        %v475 = vld [vmem:[%s248 + $0x5c] sm:$0xf]
        %v476 = vld [vmem:[%s248 + $0x60] sm:$0xf]
        %v477 = vld [vmem:[%s248 + $0x64] sm:$0xf]
        %v478 = vld [vmem:[%s248 + $0x68] sm:$0xf]
        %v479 = vld [vmem:[%s248 + $0x6c] sm:$0xf]
        %v480 = vld [vmem:[%s248 + $0x70] sm:$0xf]
        %v481 = vld [vmem:[%s248 + $0x74] sm:$0xf]
        %v482 = vld [vmem:[%s248 + $0x78] sm:$0xf]
        %v483 = vld [vmem:[%s248 + $0x7c] sm:$0xf]
        %v484 = vunpack.c.l.bf16 %v452
        %v485 = vunpack.c.l.bf16 %v453
        %v486 = vunpack.c.l.bf16 %v454
        %v487 = vunpack.c.l.bf16 %v455
        %v488 = vunpack.c.l.bf16 %v456
        %v489 = vunpack.c.l.bf16 %v457
        %v490 = vunpack.c.l.bf16 %v458
        %v491 = vunpack.c.l.bf16 %v459
        %v492 = vunpack.c.l.bf16 %v460
        %v493 = vunpack.c.l.bf16 %v461
        %v494 = vunpack.c.l.bf16 %v462
        %v495 = vunpack.c.l.bf16 %v463
        %v496 = vunpack.c.l.bf16 %v464
        %v497 = vunpack.c.l.bf16 %v465
        %v498 = vunpack.c.l.bf16 %v466
        %v499 = vunpack.c.l.bf16 %v467
        %v500 = vunpack.c.l.bf16 %v468
        %v501 = vunpack.c.l.bf16 %v469
        %v502 = vunpack.c.l.bf16 %v470
        %v503 = vunpack.c.l.bf16 %v471
        %v504 = vunpack.c.l.bf16 %v472
        %v505 = vunpack.c.l.bf16 %v473
        %v506 = vunpack.c.l.bf16 %v474
        %v507 = vunpack.c.l.bf16 %v475
        %v508 = vunpack.c.l.bf16 %v476
        %v509 = vunpack.c.l.bf16 %v477
        %v510 = vunpack.c.l.bf16 %v478
        %v511 = vunpack.c.l.bf16 %v479
        %v512 = vunpack.c.l.bf16 %v480
        %v513 = vunpack.c.l.bf16 %v481
        %v514 = vunpack.c.l.bf16 %v482
        %v515 = vunpack.c.l.bf16 %v483
        %s516 = scalar_lea.vmem [#allocation2], 24
        %517 = vst.msk [vmem:[%s516 + $0x1] sm:$0xff] %vm261, %v484
        %518 = vst.msk [vmem:[%s516 + $0x9] sm:$0xff] %vm261, %v485
        %519 = vst.msk [vmem:[%s516 + $0x19] sm:$0xff] %vm261, %v486
        %520 = vst.msk [vmem:[%s516 + $0x21] sm:$0xff] %vm261, %v487
        %521 = vst.msk [vmem:[%s516 + $0x31] sm:$0xff] %vm261, %v488
        %522 = vst.msk [vmem:[%s516 + $0x39] sm:$0xff] %vm261, %v489
        %523 = vst.msk [vmem:[%s516 + $0x49] sm:$0xff] %vm261, %v490
        %524 = vst.msk [vmem:[%s516 + $0x51] sm:$0xff] %vm261, %v491
        %525 = vst.msk [vmem:[%s516 + $0x61] sm:$0xff] %vm261, %v492
        %526 = vst.msk [vmem:[%s516 + $0x69] sm:$0xff] %vm261, %v493
        %527 = vst.msk [vmem:[%s516 + $0x79] sm:$0xff] %vm261, %v494
        %528 = vst.msk [vmem:[%s516 + $0x81] sm:$0xff] %vm261, %v495
        %529 = vst.msk [vmem:[%s516 + $0x91] sm:$0xff] %vm261, %v496
        %530 = vst.msk [vmem:[%s516 + $0x99] sm:$0xff] %vm261, %v497
        %531 = vst.msk [vmem:[%s516 + $0xa9] sm:$0xff] %vm261, %v498
        %532 = vst.msk [vmem:[%s516 + $0xb1] sm:$0xff] %vm261, %v499
        %533 = vst.msk [vmem:[%s516 + $0xc1] sm:$0xff] %vm261, %v500
        %534 = vst.msk [vmem:[%s516 + $0xc9] sm:$0xff] %vm261, %v501
        %535 = vst.msk [vmem:[%s516 + $0xd9] sm:$0xff] %vm261, %v502
        %536 = vst.msk [vmem:[%s516 + $0xe1] sm:$0xff] %vm261, %v503
        %537 = vst.msk [vmem:[%s516 + $0xf1] sm:$0xff] %vm261, %v504
        %538 = vst.msk [vmem:[%s516 + $0xf9] sm:$0xff] %vm261, %v505
        %539 = vst.msk [vmem:[%s516 + $0x109] sm:$0xff] %vm261, %v506
        %540 = vst.msk [vmem:[%s516 + $0x111] sm:$0xff] %vm261, %v507
        %541 = vst.msk [vmem:[%s516 + $0x121] sm:$0xff] %vm261, %v508
        %542 = vst.msk [vmem:[%s516 + $0x129] sm:$0xff] %vm261, %v509
        %543 = vst.msk [vmem:[%s516 + $0x139] sm:$0xff] %vm261, %v510
        %544 = vst.msk [vmem:[%s516 + $0x141] sm:$0xff] %vm261, %v511
        %545 = vst.msk [vmem:[%s516 + $0x151] sm:$0xff] %vm261, %v512
        %546 = vst.msk [vmem:[%s516 + $0x159] sm:$0xff] %vm261, %v513
        %547 = vst.msk [vmem:[%s516 + $0x169] sm:$0xff] %vm261, %v514
        %548 = vst.msk [vmem:[%s516 + $0x171] sm:$0xff] %vm261, %v515
        %v549 = vld [vmem:[#allocation2] sm:$0xff]
        %v550 = vld [vmem:[#allocation2 + $0x8] sm:$0xff]
        %v551 = vld [vmem:[#allocation2 + $0x10] sm:$0x3]
        %v552 = vld [vmem:[#allocation2 + $0x18] sm:$0xff]
        %v553 = vld [vmem:[#allocation2 + $0x20] sm:$0xff]
        %v554 = vld [vmem:[#allocation2 + $0x28] sm:$0x3]
        %v555 = vld [vmem:[#allocation2 + $0x30] sm:$0xff]
        %v556 = vld [vmem:[#allocation2 + $0x38] sm:$0xff]
        %v557 = vld [vmem:[#allocation2 + $0x40] sm:$0x3]
        %v558 = vld [vmem:[#allocation2 + $0x48] sm:$0xff]
        %v559 = vld [vmem:[#allocation2 + $0x50] sm:$0xff]
        %v560 = vld [vmem:[#allocation2 + $0x58] sm:$0x3]
        %v561 = vld [vmem:[#allocation2 + $0x60] sm:$0xff]
        %v562 = vld [vmem:[#allocation2 + $0x68] sm:$0xff]
        %v563 = vld [vmem:[#allocation2 + $0x70] sm:$0x3]
        %v564 = vld [vmem:[#allocation2 + $0x78] sm:$0xff]
        %v565 = vld [vmem:[#allocation2 + $0x80] sm:$0xff]
        %v566 = vld [vmem:[#allocation2 + $0x88] sm:$0x3]
        %v567 = vld [vmem:[#allocation2 + $0x90] sm:$0xff]
        %v568 = vld [vmem:[#allocation2 + $0x98] sm:$0xff]
        %v569 = vld [vmem:[#allocation2 + $0xa0] sm:$0x3]
        %v570 = vld [vmem:[#allocation2 + $0xa8] sm:$0xff]
        %v571 = vld [vmem:[#allocation2 + $0xb0] sm:$0xff]
        %v572 = vld [vmem:[#allocation2 + $0xb8] sm:$0x3]
        %v573 = vld [vmem:[#allocation2 + $0xc0] sm:$0xff]
        %v574 = vld [vmem:[#allocation2 + $0xc8] sm:$0xff]
        %v575 = vld [vmem:[#allocation2 + $0xd0] sm:$0x3]
        %v576 = vld [vmem:[#allocation2 + $0xd8] sm:$0xff]
        %v577 = vld [vmem:[#allocation2 + $0xe0] sm:$0xff]
        %v578 = vld [vmem:[#allocation2 + $0xe8] sm:$0x3]
        %v579 = vld [vmem:[#allocation2 + $0xf0] sm:$0xff]
        %v580 = vld [vmem:[#allocation2 + $0xf8] sm:$0xff]
        %v581 = vld [vmem:[#allocation2 + $0x100] sm:$0x3]
        %v582 = vld [vmem:[#allocation2 + $0x108] sm:$0xff]
        %v583 = vld [vmem:[#allocation2 + $0x110] sm:$0xff]
        %v584 = vld [vmem:[#allocation2 + $0x118] sm:$0x3]
        %v585 = vld [vmem:[#allocation2 + $0x120] sm:$0xff]
        %v586 = vld [vmem:[#allocation2 + $0x128] sm:$0xff]
        %v587 = vld [vmem:[#allocation2 + $0x130] sm:$0x3]
        %v588 = vld [vmem:[#allocation2 + $0x138] sm:$0xff]
        %v589 = vld [vmem:[#allocation2 + $0x140] sm:$0xff]
        %v590 = vld [vmem:[#allocation2 + $0x148] sm:$0x3]
        %v591 = vld [vmem:[#allocation2 + $0x150] sm:$0xff]
        %v592 = vld [vmem:[#allocation2 + $0x158] sm:$0xff]
        %v593 = vld [vmem:[#allocation2 + $0x160] sm:$0x3]
        %v594 = vld [vmem:[#allocation2 + $0x168] sm:$0xff]
        %v595 = vld [vmem:[#allocation2 + $0x170] sm:$0xff]
        %v596 = vld [vmem:[#allocation2 + $0x178] sm:$0x3]
        %v597 = vld [vmem:[#allocation2 + $0x180] sm:$0xff]
        %v598 = vld [vmem:[#allocation2 + $0x188] sm:$0xff]
        %v599 = vld [vmem:[#allocation2 + $0x190] sm:$0x3]
        %v600 = vld [vmem:[#allocation2 + $0x198] sm:$0xff]
        %v601 = vld [vmem:[#allocation2 + $0x1a0] sm:$0xff]
        %v602 = vld [vmem:[#allocation2 + $0x1a8] sm:$0x3]
        %vm657 = vcmask 1046528
        %v658 = vrot.slane %v549, 1
        %v659 = vrot.slane %v550, 1
        %v660 = vsel %vm657, %v658, %v659
        %v661 = vrot.slane %v551, 1
        %v662 = vsel %vm657, %v659, %v661
        %v663 = vrot.slane %v552, 1
        %v664 = vrot.slane %v553, 1
        %v665 = vsel %vm657, %v663, %v664
        %v666 = vrot.slane %v554, 1
        %v667 = vsel %vm657, %v664, %v666
        %v668 = vrot.slane %v555, 1
        %v669 = vrot.slane %v556, 1
        %v670 = vsel %vm657, %v668, %v669
        %v671 = vrot.slane %v557, 1
        %v672 = vsel %vm657, %v669, %v671
        %v673 = vrot.slane %v558, 1
        %v674 = vrot.slane %v559, 1
        %v675 = vsel %vm657, %v673, %v674
        %v676 = vrot.slane %v560, 1
        %v677 = vsel %vm657, %v674, %v676
        %v678 = vrot.slane %v561, 1
        %v679 = vrot.slane %v562, 1
        %v680 = vsel %vm657, %v678, %v679
        %v681 = vrot.slane %v563, 1
        %v682 = vsel %vm657, %v679, %v681
        %v683 = vrot.slane %v564, 1
        %v684 = vrot.slane %v565, 1
        %v685 = vsel %vm657, %v683, %v684
        %v686 = vrot.slane %v566, 1
        %v687 = vsel %vm657, %v684, %v686
        %v688 = vrot.slane %v567, 1
        %v689 = vrot.slane %v568, 1
        %v690 = vsel %vm657, %v688, %v689
        %v691 = vrot.slane %v569, 1
        %v692 = vsel %vm657, %v689, %v691
        %v693 = vrot.slane %v570, 1
        %v694 = vrot.slane %v571, 1
        %v695 = vsel %vm657, %v693, %v694
        %v696 = vrot.slane %v572, 1
        %v697 = vsel %vm657, %v694, %v696
        %v698 = vrot.slane %v573, 1
        %v699 = vrot.slane %v574, 1
        %v700 = vsel %vm657, %v698, %v699
        %v701 = vrot.slane %v575, 1
        %v702 = vsel %vm657, %v699, %v701
        %v703 = vrot.slane %v576, 1
        %v704 = vrot.slane %v577, 1
        %v705 = vsel %vm657, %v703, %v704
        %v706 = vrot.slane %v578, 1
        %v707 = vsel %vm657, %v704, %v706
        %v708 = vrot.slane %v579, 1
        %v709 = vrot.slane %v580, 1
        %v710 = vsel %vm657, %v708, %v709
        %v711 = vrot.slane %v581, 1
        %v712 = vsel %vm657, %v709, %v711
        %v713 = vrot.slane %v582, 1
        %v714 = vrot.slane %v583, 1
        %v715 = vsel %vm657, %v713, %v714
        %v716 = vrot.slane %v584, 1
        %v717 = vsel %vm657, %v714, %v716
        %v718 = vrot.slane %v585, 1
        %v719 = vrot.slane %v586, 1
        %v720 = vsel %vm657, %v718, %v719
        %v721 = vrot.slane %v587, 1
        %v722 = vsel %vm657, %v719, %v721
        %v723 = vrot.slane %v588, 1
        %v724 = vrot.slane %v589, 1
        %v725 = vsel %vm657, %v723, %v724
        %v726 = vrot.slane %v590, 1
        %v727 = vsel %vm657, %v724, %v726
        %v728 = vrot.slane %v591, 1
        %v729 = vrot.slane %v592, 1
        %v730 = vsel %vm657, %v728, %v729
        %v731 = vrot.slane %v593, 1
        %v732 = vsel %vm657, %v729, %v731
        %v733 = vrot.slane %v594, 1
        %v734 = vrot.slane %v595, 1
        %v735 = vsel %vm657, %v733, %v734
        %v736 = vrot.slane %v596, 1
        %v737 = vsel %vm657, %v734, %v736
        %v738 = vrot.slane %v597, 1
        %v739 = vrot.slane %v598, 1
        %v740 = vsel %vm657, %v738, %v739
        %v741 = vrot.slane %v599, 1
        %v742 = vsel %vm657, %v739, %v741
        %v743 = vrot.slane %v600, 1
        %v744 = vrot.slane %v601, 1
        %v745 = vsel %vm657, %v743, %v744
        %v746 = vrot.slane %v602, 1
        %v747 = vsel %vm657, %v744, %v746
        %vm748 = vcmask 1045504
        %v749 = vrot.slane %v549, 2
        %v750 = vrot.slane %v550, 2
        %v751 = vsel %vm748, %v749, %v750
        %v752 = vrot.slane %v551, 2
        %v753 = vsel %vm748, %v750, %v752
        %v754 = vrot.slane %v552, 2
        %v755 = vrot.slane %v553, 2
        %v756 = vsel %vm748, %v754, %v755
        %v757 = vrot.slane %v554, 2
        %v758 = vsel %vm748, %v755, %v757
        %v759 = vrot.slane %v555, 2
        %v760 = vrot.slane %v556, 2
        %v761 = vsel %vm748, %v759, %v760
        %v762 = vrot.slane %v557, 2
        %v763 = vsel %vm748, %v760, %v762
        %v764 = vrot.slane %v558, 2
        %v765 = vrot.slane %v559, 2
        %v766 = vsel %vm748, %v764, %v765
        %v767 = vrot.slane %v560, 2
        %v768 = vsel %vm748, %v765, %v767
        %v769 = vrot.slane %v561, 2
        %v770 = vrot.slane %v562, 2
        %v771 = vsel %vm748, %v769, %v770
        %v772 = vrot.slane %v563, 2
        %v773 = vsel %vm748, %v770, %v772
        %v774 = vrot.slane %v564, 2
        %v775 = vrot.slane %v565, 2
        %v776 = vsel %vm748, %v774, %v775
        %v777 = vrot.slane %v566, 2
        %v778 = vsel %vm748, %v775, %v777
        %v779 = vrot.slane %v567, 2
        %v780 = vrot.slane %v568, 2
        %v781 = vsel %vm748, %v779, %v780
        %v782 = vrot.slane %v569, 2
        %v783 = vsel %vm748, %v780, %v782
        %v784 = vrot.slane %v570, 2
        %v785 = vrot.slane %v571, 2
        %v786 = vsel %vm748, %v784, %v785
        %v787 = vrot.slane %v572, 2
        %v788 = vsel %vm748, %v785, %v787
        %v789 = vrot.slane %v573, 2
        %v790 = vrot.slane %v574, 2
        %v791 = vsel %vm748, %v789, %v790
        %v792 = vrot.slane %v575, 2
        %v793 = vsel %vm748, %v790, %v792
        %v794 = vrot.slane %v576, 2
        %v795 = vrot.slane %v577, 2
        %v796 = vsel %vm748, %v794, %v795
        %v797 = vrot.slane %v578, 2
        %v798 = vsel %vm748, %v795, %v797
        %v799 = vrot.slane %v579, 2
        %v800 = vrot.slane %v580, 2
        %v801 = vsel %vm748, %v799, %v800
        %v802 = vrot.slane %v581, 2
        %v803 = vsel %vm748, %v800, %v802
        %v804 = vrot.slane %v582, 2
        %v805 = vrot.slane %v583, 2
        %v806 = vsel %vm748, %v804, %v805
        %v807 = vrot.slane %v584, 2
        %v808 = vsel %vm748, %v805, %v807
        %v809 = vrot.slane %v585, 2
        %v810 = vrot.slane %v586, 2
        %v811 = vsel %vm748, %v809, %v810
        %v812 = vrot.slane %v587, 2
        %v813 = vsel %vm748, %v810, %v812
        %v814 = vrot.slane %v588, 2
        %v815 = vrot.slane %v589, 2
        %v816 = vsel %vm748, %v814, %v815
        %v817 = vrot.slane %v590, 2
        %v818 = vsel %vm748, %v815, %v817
        %v819 = vrot.slane %v591, 2
        %v820 = vrot.slane %v592, 2
        %v821 = vsel %vm748, %v819, %v820
        %v822 = vrot.slane %v593, 2
        %v823 = vsel %vm748, %v820, %v822
        %v824 = vrot.slane %v594, 2
        %v825 = vrot.slane %v595, 2
        %v826 = vsel %vm748, %v824, %v825
        %v827 = vrot.slane %v596, 2
        %v828 = vsel %vm748, %v825, %v827
        %v829 = vrot.slane %v597, 2
        %v830 = vrot.slane %v598, 2
        %v831 = vsel %vm748, %v829, %v830
        %v832 = vrot.slane %v599, 2
        %v833 = vsel %vm748, %v830, %v832
        %v834 = vrot.slane %v600, 2
        %v835 = vrot.slane %v601, 2
        %v836 = vsel %vm748, %v834, %v835
        %v837 = vrot.slane %v602, 2
        %v838 = vsel %vm748, %v835, %v837
        %839 = vrot.lane.b32.xlu0 %v660, 4
        %v840 = vpop.permute.xlu0 %839
        %841 = vrot.lane.b32.xlu0 %v662, 4
        %v842 = vpop.permute.xlu0 %841
        %843 = vrot.lane.b32.xlu0 %v665, 4
        %v844 = vpop.permute.xlu0 %843
        %845 = vrot.lane.b32.xlu0 %v667, 4
        %v846 = vpop.permute.xlu0 %845
        %847 = vrot.lane.b32.xlu0 %v670, 4
        %v848 = vpop.permute.xlu0 %847
        %849 = vrot.lane.b32.xlu0 %v672, 4
        %v850 = vpop.permute.xlu0 %849
        %851 = vrot.lane.b32.xlu0 %v675, 4
        %v852 = vpop.permute.xlu0 %851
        %853 = vrot.lane.b32.xlu0 %v677, 4
        %v854 = vpop.permute.xlu0 %853
        %855 = vrot.lane.b32.xlu0 %v680, 4
        %v856 = vpop.permute.xlu0 %855
        %857 = vrot.lane.b32.xlu0 %v682, 4
        %v858 = vpop.permute.xlu0 %857
        %859 = vrot.lane.b32.xlu0 %v685, 4
        %v860 = vpop.permute.xlu0 %859
        %861 = vrot.lane.b32.xlu0 %v687, 4
        %v862 = vpop.permute.xlu0 %861
        %863 = vrot.lane.b32.xlu0 %v690, 4
        %v864 = vpop.permute.xlu0 %863
        %865 = vrot.lane.b32.xlu0 %v692, 4
        %v866 = vpop.permute.xlu0 %865
        %867 = vrot.lane.b32.xlu0 %v695, 4
        %v868 = vpop.permute.xlu0 %867
        %869 = vrot.lane.b32.xlu0 %v697, 4
        %v870 = vpop.permute.xlu0 %869
        %871 = vrot.lane.b32.xlu0 %v700, 4
        %v872 = vpop.permute.xlu0 %871
        %873 = vrot.lane.b32.xlu0 %v702, 4
        %v874 = vpop.permute.xlu0 %873
        %875 = vrot.lane.b32.xlu0 %v705, 4
        %v876 = vpop.permute.xlu0 %875
        %877 = vrot.lane.b32.xlu0 %v707, 4
        %v878 = vpop.permute.xlu0 %877
        %879 = vrot.lane.b32.xlu0 %v710, 4
        %v880 = vpop.permute.xlu0 %879
        %881 = vrot.lane.b32.xlu0 %v712, 4
        %v882 = vpop.permute.xlu0 %881
        %883 = vrot.lane.b32.xlu0 %v715, 4
        %v884 = vpop.permute.xlu0 %883
        %885 = vrot.lane.b32.xlu0 %v717, 4
        %v886 = vpop.permute.xlu0 %885
        %887 = vrot.lane.b32.xlu0 %v720, 4
        %v888 = vpop.permute.xlu0 %887
        %889 = vrot.lane.b32.xlu0 %v722, 4
        %v890 = vpop.permute.xlu0 %889
        %891 = vrot.lane.b32.xlu0 %v725, 4
        %v892 = vpop.permute.xlu0 %891
        %893 = vrot.lane.b32.xlu0 %v727, 4
        %v894 = vpop.permute.xlu0 %893
        %895 = vrot.lane.b32.xlu0 %v730, 4
        %v896 = vpop.permute.xlu0 %895
        %897 = vrot.lane.b32.xlu0 %v732, 4
        %v898 = vpop.permute.xlu0 %897
        %899 = vrot.lane.b32.xlu0 %v735, 4
        %v900 = vpop.permute.xlu0 %899
        %901 = vrot.lane.b32.xlu0 %v737, 4
        %v902 = vpop.permute.xlu0 %901
        %903 = vrot.lane.b32.xlu0 %v740, 4
        %v904 = vpop.permute.xlu0 %903
        %905 = vrot.lane.b32.xlu0 %v742, 4
        %v906 = vpop.permute.xlu0 %905
        %907 = vrot.lane.b32.xlu0 %v745, 4
        %v908 = vpop.permute.xlu0 %907
        %909 = vrot.lane.b32.xlu0 %v747, 4
        %v910 = vpop.permute.xlu0 %909
        %947 = vrot.lane.b32.xlu0 %v751, 8
        %v948 = vpop.permute.xlu0 %947
        %949 = vrot.lane.b32.xlu0 %v753, 8
        %v950 = vpop.permute.xlu0 %949
        %951 = vrot.lane.b32.xlu0 %v756, 8
        %v952 = vpop.permute.xlu0 %951
        %953 = vrot.lane.b32.xlu0 %v758, 8
        %v954 = vpop.permute.xlu0 %953
        %955 = vrot.lane.b32.xlu0 %v761, 8
        %v956 = vpop.permute.xlu0 %955
        %957 = vrot.lane.b32.xlu0 %v763, 8
        %v958 = vpop.permute.xlu0 %957
        %959 = vrot.lane.b32.xlu0 %v766, 8
        %v960 = vpop.permute.xlu0 %959
        %961 = vrot.lane.b32.xlu0 %v768, 8
        %v962 = vpop.permute.xlu0 %961
        %963 = vrot.lane.b32.xlu0 %v771, 8
        %v964 = vpop.permute.xlu0 %963
        %965 = vrot.lane.b32.xlu0 %v773, 8
        %v966 = vpop.permute.xlu0 %965
        %967 = vrot.lane.b32.xlu0 %v776, 8
        %v968 = vpop.permute.xlu0 %967
        %969 = vrot.lane.b32.xlu0 %v778, 8
        %v970 = vpop.permute.xlu0 %969
        %971 = vrot.lane.b32.xlu0 %v781, 8
        %v972 = vpop.permute.xlu0 %971
        %973 = vrot.lane.b32.xlu0 %v783, 8
        %v974 = vpop.permute.xlu0 %973
        %975 = vrot.lane.b32.xlu0 %v786, 8
        %v976 = vpop.permute.xlu0 %975
        %977 = vrot.lane.b32.xlu0 %v788, 8
        %v978 = vpop.permute.xlu0 %977
        %979 = vrot.lane.b32.xlu0 %v791, 8
        %v980 = vpop.permute.xlu0 %979
        %981 = vrot.lane.b32.xlu0 %v793, 8
        %v982 = vpop.permute.xlu0 %981
        %983 = vrot.lane.b32.xlu0 %v796, 8
        %v984 = vpop.permute.xlu0 %983
        %985 = vrot.lane.b32.xlu0 %v798, 8
        %v986 = vpop.permute.xlu0 %985
        %987 = vrot.lane.b32.xlu0 %v801, 8
        %v988 = vpop.permute.xlu0 %987
        %989 = vrot.lane.b32.xlu0 %v803, 8
        %v990 = vpop.permute.xlu0 %989
        %991 = vrot.lane.b32.xlu0 %v806, 8
        %v992 = vpop.permute.xlu0 %991
        %993 = vrot.lane.b32.xlu0 %v808, 8
        %v994 = vpop.permute.xlu0 %993
        %995 = vrot.lane.b32.xlu0 %v811, 8
        %v996 = vpop.permute.xlu0 %995
        %997 = vrot.lane.b32.xlu0 %v813, 8
        %v998 = vpop.permute.xlu0 %997
        %999 = vrot.lane.b32.xlu0 %v816, 8
        %v1000 = vpop.permute.xlu0 %999
        %1001 = vrot.lane.b32.xlu0 %v818, 8
        %v1002 = vpop.permute.xlu0 %1001
        %1003 = vrot.lane.b32.xlu0 %v821, 8
        %v1004 = vpop.permute.xlu0 %1003
        %1005 = vrot.lane.b32.xlu0 %v823, 8
        %v1006 = vpop.permute.xlu0 %1005
        %1007 = vrot.lane.b32.xlu0 %v826, 8
        %v1008 = vpop.permute.xlu0 %1007
        %1009 = vrot.lane.b32.xlu0 %v828, 8
        %v1010 = vpop.permute.xlu0 %1009
        %1011 = vrot.lane.b32.xlu0 %v831, 8
        %v1012 = vpop.permute.xlu0 %1011
        %1013 = vrot.lane.b32.xlu0 %v833, 8
        %v1014 = vpop.permute.xlu0 %1013
        %1015 = vrot.lane.b32.xlu0 %v836, 8
        %v1016 = vpop.permute.xlu0 %1015
        %1017 = vrot.lane.b32.xlu0 %v838, 8
        %v1018 = vpop.permute.xlu0 %1017
        %v1055 = vsel %vm261, %v549, %v840
        %v1056 = vsel %vm261, %v550, %v842
        %v1057 = vsel %vm261, %v552, %v844
        %v1058 = vsel %vm261, %v553, %v846
        %v1059 = vsel %vm261, %v555, %v848
        %v1060 = vsel %vm261, %v556, %v850
        %v1061 = vsel %vm261, %v558, %v852
        %v1062 = vsel %vm261, %v559, %v854
        %v1063 = vsel %vm261, %v561, %v856
        %v1064 = vsel %vm261, %v562, %v858
        %v1065 = vsel %vm261, %v564, %v860
        %v1066 = vsel %vm261, %v565, %v862
        %v1067 = vsel %vm261, %v567, %v864
        %v1068 = vsel %vm261, %v568, %v866
        %v1069 = vsel %vm261, %v570, %v868
        %v1070 = vsel %vm261, %v571, %v870
        %v1071 = vsel %vm261, %v573, %v872
        %v1072 = vsel %vm261, %v574, %v874
        %v1073 = vsel %vm261, %v576, %v876
        %v1074 = vsel %vm261, %v577, %v878
        %v1075 = vsel %vm261, %v579, %v880
        %v1076 = vsel %vm261, %v580, %v882
        %v1077 = vsel %vm261, %v582, %v884
        %v1078 = vsel %vm261, %v583, %v886
        %v1079 = vsel %vm261, %v585, %v888
        %v1080 = vsel %vm261, %v586, %v890
        %v1081 = vsel %vm261, %v588, %v892
        %v1082 = vsel %vm261, %v589, %v894
        %v1083 = vsel %vm261, %v591, %v896
        %v1084 = vsel %vm261, %v592, %v898
        %v1085 = vsel %vm261, %v594, %v900
        %v1086 = vsel %vm261, %v595, %v902
        %v1087 = vsel %vm261, %v597, %v904
        %v1088 = vsel %vm261, %v598, %v906
        %v1089 = vsel %vm261, %v600, %v908
        %v1090 = vsel %vm261, %v601, %v910
        %vm1091 = vcmask 64512
        %v1092 = vsel %vm1091, %v1055, %v948
        %v1093 = vsel %vm1091, %v1056, %v950
        %v1094 = vsel %vm1091, %v1057, %v952
        %v1095 = vsel %vm1091, %v1058, %v954
        %v1096 = vsel %vm1091, %v1059, %v956
        %v1097 = vsel %vm1091, %v1060, %v958
        %v1098 = vsel %vm1091, %v1061, %v960
        %v1099 = vsel %vm1091, %v1062, %v962
        %v1100 = vsel %vm1091, %v1063, %v964
        %v1101 = vsel %vm1091, %v1064, %v966
        %v1102 = vsel %vm1091, %v1065, %v968
        %v1103 = vsel %vm1091, %v1066, %v970
        %v1104 = vsel %vm1091, %v1067, %v972
        %v1105 = vsel %vm1091, %v1068, %v974
        %v1106 = vsel %vm1091, %v1069, %v976
        %v1107 = vsel %vm1091, %v1070, %v978
        %v1108 = vsel %vm1091, %v1071, %v980
        %v1109 = vsel %vm1091, %v1072, %v982
        %v1110 = vsel %vm1091, %v1073, %v984
        %v1111 = vsel %vm1091, %v1074, %v986
        %v1112 = vsel %vm1091, %v1075, %v988
        %v1113 = vsel %vm1091, %v1076, %v990
        %v1114 = vsel %vm1091, %v1077, %v992
        %v1115 = vsel %vm1091, %v1078, %v994
        %v1116 = vsel %vm1091, %v1079, %v996
        %v1117 = vsel %vm1091, %v1080, %v998
        %v1118 = vsel %vm1091, %v1081, %v1000
        %v1119 = vsel %vm1091, %v1082, %v1002
        %v1120 = vsel %vm1091, %v1083, %v1004
        %v1121 = vsel %vm1091, %v1084, %v1006
        %v1122 = vsel %vm1091, %v1085, %v1008
        %v1123 = vsel %vm1091, %v1086, %v1010
        %v1124 = vsel %vm1091, %v1087, %v1012
        %v1125 = vsel %vm1091, %v1088, %v1014
        %v1126 = vsel %vm1091, %v1089, %v1016
        %v1127 = vsel %vm1091, %v1090, %v1018
        %1160 = vrot.lane.b32.xlu0 %v1094, 12
        %v1161 = vpop.permute.xlu0 %1160
        %1162 = vrot.lane.b32.xlu0 %v1095, 12
        %v1163 = vpop.permute.xlu0 %1162
        %1164 = vrot.lane.b32.xlu0 %v1096, 12
        %v1165 = vpop.permute.xlu0 %1164
        %1166 = vrot.lane.b32.xlu0 %v1097, 12
        %v1167 = vpop.permute.xlu0 %1166
        %1168 = vrot.lane.b32.xlu0 %v1098, 12
        %v1169 = vpop.permute.xlu0 %1168
        %1170 = vrot.lane.b32.xlu0 %v1099, 12
        %v1171 = vpop.permute.xlu0 %1170
        %1172 = vrot.lane.b32.xlu0 %v1100, 12
        %v1173 = vpop.permute.xlu0 %1172
        %1174 = vrot.lane.b32.xlu0 %v1101, 12
        %v1175 = vpop.permute.xlu0 %1174
        %1176 = vrot.lane.b32.xlu0 %v1102, 12
        %v1177 = vpop.permute.xlu0 %1176
        %1178 = vrot.lane.b32.xlu0 %v1103, 12
        %v1179 = vpop.permute.xlu0 %1178
        %1180 = vrot.lane.b32.xlu0 %v1104, 12
        %v1181 = vpop.permute.xlu0 %1180
        %1182 = vrot.lane.b32.xlu0 %v1105, 12
        %v1183 = vpop.permute.xlu0 %1182
        %1184 = vrot.lane.b32.xlu0 %v1106, 12
        %v1185 = vpop.permute.xlu0 %1184
        %1186 = vrot.lane.b32.xlu0 %v1107, 12
        %v1187 = vpop.permute.xlu0 %1186
        %1188 = vrot.lane.b32.xlu0 %v1108, 12
        %v1189 = vpop.permute.xlu0 %1188
        %1190 = vrot.lane.b32.xlu0 %v1109, 12
        %v1191 = vpop.permute.xlu0 %1190
        %1192 = vrot.lane.b32.xlu0 %v1110, 12
        %v1193 = vpop.permute.xlu0 %1192
        %1194 = vrot.lane.b32.xlu0 %v1111, 12
        %v1195 = vpop.permute.xlu0 %1194
        %1196 = vrot.lane.b32.xlu0 %v1112, 12
        %v1197 = vpop.permute.xlu0 %1196
        %1198 = vrot.lane.b32.xlu0 %v1113, 12
        %v1199 = vpop.permute.xlu0 %1198
        %1200 = vrot.lane.b32.xlu0 %v1114, 12
        %v1201 = vpop.permute.xlu0 %1200
        %1202 = vrot.lane.b32.xlu0 %v1115, 12
        %v1203 = vpop.permute.xlu0 %1202
        %1204 = vrot.lane.b32.xlu0 %v1116, 12
        %v1205 = vpop.permute.xlu0 %1204
        %1206 = vrot.lane.b32.xlu0 %v1117, 12
        %v1207 = vpop.permute.xlu0 %1206
        %1208 = vrot.lane.b32.xlu0 %v1118, 12
        %v1209 = vpop.permute.xlu0 %1208
        %1210 = vrot.lane.b32.xlu0 %v1119, 12
        %v1211 = vpop.permute.xlu0 %1210
        %1212 = vrot.lane.b32.xlu0 %v1120, 12
        %v1213 = vpop.permute.xlu0 %1212
        %1214 = vrot.lane.b32.xlu0 %v1121, 12
        %v1215 = vpop.permute.xlu0 %1214
        %1216 = vrot.lane.b32.xlu0 %v1122, 12
        %v1217 = vpop.permute.xlu0 %1216
        %1218 = vrot.lane.b32.xlu0 %v1123, 12
        %v1219 = vpop.permute.xlu0 %1218
        %1220 = vrot.lane.b32.xlu0 %v1124, 12
        %v1221 = vpop.permute.xlu0 %1220
        %1222 = vrot.lane.b32.xlu0 %v1125, 12
        %v1223 = vpop.permute.xlu0 %1222
        %1258 = vrot.lane.b32.xlu0 %v1096, 24
        %v1259 = vpop.permute.xlu0 %1258
        %1260 = vrot.lane.b32.xlu0 %v1097, 24
        %v1261 = vpop.permute.xlu0 %1260
        %1262 = vrot.lane.b32.xlu0 %v1098, 24
        %v1263 = vpop.permute.xlu0 %1262
        %1264 = vrot.lane.b32.xlu0 %v1099, 24
        %v1265 = vpop.permute.xlu0 %1264
        %1266 = vrot.lane.b32.xlu0 %v1100, 24
        %v1267 = vpop.permute.xlu0 %1266
        %1268 = vrot.lane.b32.xlu0 %v1101, 24
        %v1269 = vpop.permute.xlu0 %1268
        %1270 = vrot.lane.b32.xlu0 %v1102, 24
        %v1271 = vpop.permute.xlu0 %1270
        %1272 = vrot.lane.b32.xlu0 %v1103, 24
        %v1273 = vpop.permute.xlu0 %1272
        %1274 = vrot.lane.b32.xlu0 %v1104, 24
        %v1275 = vpop.permute.xlu0 %1274
        %1276 = vrot.lane.b32.xlu0 %v1105, 24
        %v1277 = vpop.permute.xlu0 %1276
        %1278 = vrot.lane.b32.xlu0 %v1106, 24
        %v1279 = vpop.permute.xlu0 %1278
        %1280 = vrot.lane.b32.xlu0 %v1107, 24
        %v1281 = vpop.permute.xlu0 %1280
        %1282 = vrot.lane.b32.xlu0 %v1108, 24
        %v1283 = vpop.permute.xlu0 %1282
        %1284 = vrot.lane.b32.xlu0 %v1109, 24
        %v1285 = vpop.permute.xlu0 %1284
        %1286 = vrot.lane.b32.xlu0 %v1110, 24
        %v1287 = vpop.permute.xlu0 %1286
        %1288 = vrot.lane.b32.xlu0 %v1111, 24
        %v1289 = vpop.permute.xlu0 %1288
        %1290 = vrot.lane.b32.xlu0 %v1112, 24
        %v1291 = vpop.permute.xlu0 %1290
        %1292 = vrot.lane.b32.xlu0 %v1113, 24
        %v1293 = vpop.permute.xlu0 %1292
        %1294 = vrot.lane.b32.xlu0 %v1114, 24
        %v1295 = vpop.permute.xlu0 %1294
        %1296 = vrot.lane.b32.xlu0 %v1115, 24
        %v1297 = vpop.permute.xlu0 %1296
        %1298 = vrot.lane.b32.xlu0 %v1116, 24
        %v1299 = vpop.permute.xlu0 %1298
        %1300 = vrot.lane.b32.xlu0 %v1117, 24
        %v1301 = vpop.permute.xlu0 %1300
        %1302 = vrot.lane.b32.xlu0 %v1118, 24
        %v1303 = vpop.permute.xlu0 %1302
        %1304 = vrot.lane.b32.xlu0 %v1119, 24
        %v1305 = vpop.permute.xlu0 %1304
        %1306 = vrot.lane.b32.xlu0 %v1120, 24
        %v1307 = vpop.permute.xlu0 %1306
        %1308 = vrot.lane.b32.xlu0 %v1121, 24
        %v1309 = vpop.permute.xlu0 %1308
        %1310 = vrot.lane.b32.xlu0 %v1122, 24
        %v1311 = vpop.permute.xlu0 %1310
        %1312 = vrot.lane.b32.xlu0 %v1123, 24
        %v1313 = vpop.permute.xlu0 %1312
        %1314 = vrot.lane.b32.xlu0 %v1124, 24
        %v1315 = vpop.permute.xlu0 %1314
        %1316 = vrot.lane.b32.xlu0 %v1125, 24
        %v1317 = vpop.permute.xlu0 %1316
        %1318 = vrot.lane.b32.xlu0 %v1126, 24
        %v1319 = vpop.permute.xlu0 %1318
        %1320 = vrot.lane.b32.xlu0 %v1127, 24
        %v1321 = vpop.permute.xlu0 %1320
        %vm1354 = vcmask 97280
        %v1355 = vsel %vm1354, %v1092, %v1161
        %v1356 = vsel %vm1354, %v1093, %v1163
        %v1357 = vsel %vm1354, %v1094, %v1165
        %v1358 = vsel %vm1354, %v1095, %v1167
        %v1359 = vsel %vm1354, %v1096, %v1169
        %v1360 = vsel %vm1354, %v1097, %v1171
        %v1361 = vsel %vm1354, %v1098, %v1173
        %v1362 = vsel %vm1354, %v1099, %v1175
        %v1363 = vsel %vm1354, %v1100, %v1177
        %v1364 = vsel %vm1354, %v1101, %v1179
        %v1365 = vsel %vm1354, %v1102, %v1181
        %v1366 = vsel %vm1354, %v1103, %v1183
        %v1367 = vsel %vm1354, %v1104, %v1185
        %v1368 = vsel %vm1354, %v1105, %v1187
        %v1369 = vsel %vm1354, %v1106, %v1189
        %v1370 = vsel %vm1354, %v1107, %v1191
        %v1371 = vsel %vm1354, %v1108, %v1193
        %v1372 = vsel %vm1354, %v1109, %v1195
        %v1373 = vsel %vm1354, %v1110, %v1197
        %v1374 = vsel %vm1354, %v1111, %v1199
        %v1375 = vsel %vm1354, %v1112, %v1201
        %v1376 = vsel %vm1354, %v1113, %v1203
        %v1377 = vsel %vm1354, %v1114, %v1205
        %v1378 = vsel %vm1354, %v1115, %v1207
        %v1379 = vsel %vm1354, %v1116, %v1209
        %v1380 = vsel %vm1354, %v1117, %v1211
        %v1381 = vsel %vm1354, %v1118, %v1213
        %v1382 = vsel %vm1354, %v1119, %v1215
        %v1383 = vsel %vm1354, %v1120, %v1217
        %v1384 = vsel %vm1354, %v1121, %v1219
        %v1385 = vsel %vm1354, %v1122, %v1221
        %v1386 = vsel %vm1354, %v1123, %v1223
        %vm1387 = vcmask 195584
        %v1388 = vsel %vm1387, %v1355, %v1259
        %v1389 = vsel %vm1387, %v1356, %v1261
        %v1390 = vsel %vm1387, %v1357, %v1263
        %v1391 = vsel %vm1387, %v1358, %v1265
        %v1392 = vsel %vm1387, %v1359, %v1267
        %v1393 = vsel %vm1387, %v1360, %v1269
        %v1394 = vsel %vm1387, %v1361, %v1271
        %v1395 = vsel %vm1387, %v1362, %v1273
        %v1396 = vsel %vm1387, %v1363, %v1275
        %v1397 = vsel %vm1387, %v1364, %v1277
        %v1398 = vsel %vm1387, %v1365, %v1279
        %v1399 = vsel %vm1387, %v1366, %v1281
        %v1400 = vsel %vm1387, %v1367, %v1283
        %v1401 = vsel %vm1387, %v1368, %v1285
        %v1402 = vsel %vm1387, %v1369, %v1287
        %v1403 = vsel %vm1387, %v1370, %v1289
        %v1404 = vsel %vm1387, %v1371, %v1291
        %v1405 = vsel %vm1387, %v1372, %v1293
        %v1406 = vsel %vm1387, %v1373, %v1295
        %v1407 = vsel %vm1387, %v1374, %v1297
        %v1408 = vsel %vm1387, %v1375, %v1299
        %v1409 = vsel %vm1387, %v1376, %v1301
        %v1410 = vsel %vm1387, %v1377, %v1303
        %v1411 = vsel %vm1387, %v1378, %v1305
        %v1412 = vsel %vm1387, %v1379, %v1307
        %v1413 = vsel %vm1387, %v1380, %v1309
        %v1414 = vsel %vm1387, %v1381, %v1311
        %v1415 = vsel %vm1387, %v1382, %v1313
        %v1416 = vsel %vm1387, %v1383, %v1315
        %v1417 = vsel %vm1387, %v1384, %v1317
        %v1418 = vsel %vm1387, %v1385, %v1319
        %v1419 = vsel %vm1387, %v1386, %v1321
        %v1420 = vpack.c.bf16 %v1389, %v1388
        %v1421 = vpack.c.bf16 %v1391, %v1390
        %v1422 = vpack.c.bf16 %v1393, %v1392
        %v1423 = vpack.c.bf16 %v1395, %v1394
        %v1424 = vpack.c.bf16 %v1397, %v1396
        %v1425 = vpack.c.bf16 %v1399, %v1398
        %v1426 = vpack.c.bf16 %v1401, %v1400
        %v1427 = vpack.c.bf16 %v1403, %v1402
        %v1428 = vpack.c.bf16 %v1405, %v1404
        %v1429 = vpack.c.bf16 %v1407, %v1406
        %v1430 = vpack.c.bf16 %v1409, %v1408
        %v1431 = vpack.c.bf16 %v1411, %v1410
        %v1432 = vpack.c.bf16 %v1413, %v1412
        %v1433 = vpack.c.bf16 %v1415, %v1414
        %v1434 = vpack.c.bf16 %v1417, %v1416
        %v1435 = vpack.c.bf16 %v1419, %v1418
        %vm1436 = vcmask 293888
        %v1438 = vsel %vm1436, %v1420, 0
        %v1441 = vsel %vm1436, %v1421, 0
        %v1444 = vsel %vm1436, %v1422, 0
        %v1447 = vsel %vm1436, %v1423, 0
        %v1450 = vsel %vm1436, %v1424, 0
        %v1453 = vsel %vm1436, %v1425, 0
        %v1456 = vsel %vm1436, %v1426, 0
        %v1459 = vsel %vm1436, %v1427, 0
        %v1462 = vsel %vm1436, %v1428, 0
        %v1465 = vsel %vm1436, %v1429, 0
        %v1468 = vsel %vm1436, %v1430, 0
        %v1471 = vsel %vm1436, %v1431, 0
        %v1474 = vsel %vm1436, %v1432, 0
        %v1477 = vsel %vm1436, %v1433, 0
        %v1480 = vsel %vm1436, %v1434, 0
        %v1483 = vsel %vm1436, %v1435, 0
        %vm1485 = vcmask 1041408
        %v1487 = vsel %vm1485, %v396, 0
        %1489 = vmatprep.subr.bf16.mxu0 0
        %1490 = vmatpush1.bf16.msra.mxu0 %v394
        %1491 = vmatprep.subr.bf16.mxu0 0
        %1492 = vmatpush1.bf16.msra.mxu0 %v395
        %1493 = vmatprep.subr.bf16.mxu0 0
        %1494 = vmatpush1.bf16.msra.mxu0 %v1487
        %1495 = vmatprep.subr.bf16.mxu0 0
        %1496 = vmatpush1.bf16.msra.mxu0 0
        %1497 = vmatprep.subr.bf16.mxu0 0
        %1498 = vmatpush1.bf16.msra.mxu0 0
        %1499 = vmatprep.subr.bf16.mxu0 0
        %1500 = vmatpush1.bf16.msra.mxu0 0
        %1501 = vmatprep.subr.bf16.mxu0 0
        %1502 = vmatpush1.bf16.msra.mxu0 0
        %1503 = vmatprep.subr.bf16.mxu0 0
        %1504 = vmatpush1.bf16.msra.mxu0 0
        %1505 = vmatprep.subr.bf16.mxu0 0
        %1506 = vmatpush1.bf16.msra.mxu0 0
        %1507 = vmatprep.subr.bf16.mxu0 0
        %1508 = vmatpush1.bf16.msra.mxu0 0
        %1509 = vmatprep.subr.bf16.mxu0 0
        %1510 = vmatpush1.bf16.msra.mxu0 0
        %1511 = vmatprep.subr.bf16.mxu0 0
        %1512 = vmatpush1.bf16.msra.mxu0 0
        %1513 = vmatprep.subr.bf16.mxu0 0
        %1514 = vmatpush1.bf16.msra.mxu0 0
        %1515 = vmatprep.subr.bf16.mxu0 0
        %1516 = vmatpush1.bf16.msra.mxu0 0
        %1517 = vmatprep.subr.bf16.mxu0 0
        %1518 = vmatpush1.bf16.msra.mxu0 0
        %1519 = vmatprep.subr.bf16.mxu0 0
        %1520 = vmatpush1.bf16.msra.mxu0 0
        %1521 = vmatprep.mubr.bf16.mxu0 0
        %1522 = vmatmul.mubr.bf16.gmra.mrb[0].mxu0 %v1438
        %v1523 = vpop.f32.mrb[0].mxu0
        %v1524 = vadd.f32 0.0, %v1523
        %v1525 = vpop.f32.mrb[0].mxu0
        %v1526 = vpop.f32.mrb[0].mxu0
        %v1527 = vadd.f32 0.0, %v1526
        %v1528 = vpop.f32.mrb[0].mxu0
        %1529 = vmatprep.mubr.bf16.mxu0 0
        %1530 = vmatmul.mubr.bf16.gmra.mrb[0].mxu0 %v1441
        %v1531 = vpop.f32.mrb[0].mxu0
        %v1532 = vadd.f32 0.0, %v1531
        %v1533 = vpop.f32.mrb[0].mxu0
        %v1534 = vpop.f32.mrb[0].mxu0
        %v1535 = vadd.f32 0.0, %v1534
        %v1536 = vpop.f32.mrb[0].mxu0
        %1537 = vmatprep.mubr.bf16.mxu0 0
        %1538 = vmatmul.mubr.bf16.gmra.mrb[0].mxu0 %v1444
        %v1539 = vpop.f32.mrb[0].mxu0
        %v1540 = vadd.f32 0.0, %v1539
        %v1541 = vpop.f32.mrb[0].mxu0
        %v1542 = vpop.f32.mrb[0].mxu0
        %v1543 = vadd.f32 0.0, %v1542
        %v1544 = vpop.f32.mrb[0].mxu0
        %1545 = vmatprep.mubr.bf16.mxu0 0
        %1546 = vmatmul.mubr.bf16.gmra.mrb[0].mxu0 %v1447
        %v1547 = vpop.f32.mrb[0].mxu0
        %v1548 = vadd.f32 0.0, %v1547
        %v1549 = vpop.f32.mrb[0].mxu0
        %v1550 = vpop.f32.mrb[0].mxu0
        %v1551 = vadd.f32 0.0, %v1550
        %v1552 = vpop.f32.mrb[0].mxu0
        %1553 = vmatprep.mubr.bf16.mxu0 0
        %1554 = vmatmul.mubr.bf16.gmra.mrb[0].mxu0 %v1450
        %v1555 = vpop.f32.mrb[0].mxu0
        %v1556 = vadd.f32 0.0, %v1555
        %v1557 = vpop.f32.mrb[0].mxu0
        %v1558 = vpop.f32.mrb[0].mxu0
        %v1559 = vadd.f32 0.0, %v1558
        %v1560 = vpop.f32.mrb[0].mxu0
        %1561 = vmatprep.mubr.bf16.mxu0 0
        %1562 = vmatmul.mubr.bf16.gmra.mrb[0].mxu0 %v1453
        %v1563 = vpop.f32.mrb[0].mxu0
        %v1564 = vadd.f32 0.0, %v1563
        %v1565 = vpop.f32.mrb[0].mxu0
        %v1566 = vpop.f32.mrb[0].mxu0
        %v1567 = vadd.f32 0.0, %v1566
        %v1568 = vpop.f32.mrb[0].mxu0
        %1569 = vmatprep.mubr.bf16.mxu0 0
        %1570 = vmatmul.mubr.bf16.gmra.mrb[0].mxu0 %v1456
        %v1571 = vpop.f32.mrb[0].mxu0
        %v1572 = vadd.f32 0.0, %v1571
        %v1573 = vpop.f32.mrb[0].mxu0
        %v1574 = vpop.f32.mrb[0].mxu0
        %v1575 = vadd.f32 0.0, %v1574
        %v1576 = vpop.f32.mrb[0].mxu0
        %1577 = vmatprep.mubr.bf16.mxu0 0
        %1578 = vmatmul.mubr.bf16.gmra.mrb[0].mxu0 %v1459
        %v1579 = vpop.f32.mrb[0].mxu0
        %v1580 = vadd.f32 0.0, %v1579
        %v1581 = vpop.f32.mrb[0].mxu0
        %v1582 = vpop.f32.mrb[0].mxu0
        %v1583 = vadd.f32 0.0, %v1582
        %v1584 = vpop.f32.mrb[0].mxu0
        %1585 = vmatprep.mubr.bf16.mxu0 0
        %1586 = vmatmul.mubr.bf16.gmra.mrb[0].mxu0 %v1462
        %v1587 = vpop.f32.mrb[0].mxu0
        %v1588 = vadd.f32 0.0, %v1587
        %v1589 = vpop.f32.mrb[0].mxu0
        %v1590 = vpop.f32.mrb[0].mxu0
        %v1591 = vadd.f32 0.0, %v1590
        %v1592 = vpop.f32.mrb[0].mxu0
        %1593 = vmatprep.mubr.bf16.mxu0 0
        %1594 = vmatmul.mubr.bf16.gmra.mrb[0].mxu0 %v1465
        %v1595 = vpop.f32.mrb[0].mxu0
        %v1596 = vadd.f32 0.0, %v1595
        %v1597 = vpop.f32.mrb[0].mxu0
        %v1598 = vpop.f32.mrb[0].mxu0
        %v1599 = vadd.f32 0.0, %v1598
        %v1600 = vpop.f32.mrb[0].mxu0
        %1601 = vmatprep.mubr.bf16.mxu0 0
        %1602 = vmatmul.mubr.bf16.gmra.mrb[0].mxu0 %v1468
        %v1603 = vpop.f32.mrb[0].mxu0
        %v1604 = vadd.f32 0.0, %v1603
        %v1605 = vpop.f32.mrb[0].mxu0
        %v1606 = vpop.f32.mrb[0].mxu0
        %v1607 = vadd.f32 0.0, %v1606
        %v1608 = vpop.f32.mrb[0].mxu0
        %1609 = vmatprep.mubr.bf16.mxu0 0
        %1610 = vmatmul.mubr.bf16.gmra.mrb[0].mxu0 %v1471
        %v1611 = vpop.f32.mrb[0].mxu0
        %v1612 = vadd.f32 0.0, %v1611
        %v1613 = vpop.f32.mrb[0].mxu0
        %v1614 = vpop.f32.mrb[0].mxu0
        %v1615 = vadd.f32 0.0, %v1614
        %v1616 = vpop.f32.mrb[0].mxu0
        %1617 = vmatprep.mubr.bf16.mxu0 0
        %1618 = vmatmul.mubr.bf16.gmra.mrb[0].mxu0 %v1474
        %v1619 = vpop.f32.mrb[0].mxu0
        %v1620 = vadd.f32 0.0, %v1619
        %v1621 = vpop.f32.mrb[0].mxu0
        %v1622 = vpop.f32.mrb[0].mxu0
        %v1623 = vadd.f32 0.0, %v1622
        %v1624 = vpop.f32.mrb[0].mxu0
        %1625 = vmatprep.mubr.bf16.mxu0 0
        %1626 = vmatmul.mubr.bf16.gmra.mrb[0].mxu0 %v1477
        %v1627 = vpop.f32.mrb[0].mxu0
        %v1628 = vadd.f32 0.0, %v1627
        %v1629 = vpop.f32.mrb[0].mxu0
        %v1630 = vpop.f32.mrb[0].mxu0
        %v1631 = vadd.f32 0.0, %v1630
        %v1632 = vpop.f32.mrb[0].mxu0
        %1633 = vmatprep.mubr.bf16.mxu0 0
        %1634 = vmatmul.mubr.bf16.gmra.mrb[0].mxu0 %v1480
        %v1635 = vpop.f32.mrb[0].mxu0
        %v1636 = vadd.f32 0.0, %v1635
        %v1637 = vpop.f32.mrb[0].mxu0
        %v1638 = vpop.f32.mrb[0].mxu0
        %v1639 = vadd.f32 0.0, %v1638
        %v1640 = vpop.f32.mrb[0].mxu0
        %1641 = vmatprep.mubr.bf16.mxu0 0
        %1642 = vmatmul.mubr.bf16.gmra.mrb[0].mxu0 %v1483
        %v1643 = vpop.f32.mrb[0].mxu0
        %v1644 = vadd.f32 0.0, %v1643
        %v1645 = vpop.f32.mrb[0].mxu0
        %v1646 = vpop.f32.mrb[0].mxu0
        %v1647 = vadd.f32 0.0, %v1646
        %v1648 = vpop.f32.mrb[0].mxu0
        %1649 = vdwg.mxu0
        %v1650 = vpack.c.bf16 %v1527, %v1524
        %v1651 = vpack.c.bf16 %v1535, %v1532
        %v1652 = vpack.c.bf16 %v1543, %v1540
        %v1653 = vpack.c.bf16 %v1551, %v1548
        %v1654 = vpack.c.bf16 %v1559, %v1556
        %v1655 = vpack.c.bf16 %v1567, %v1564
        %v1656 = vpack.c.bf16 %v1575, %v1572
        %v1657 = vpack.c.bf16 %v1583, %v1580
        %v1658 = vpack.c.bf16 %v1591, %v1588
        %v1659 = vpack.c.bf16 %v1599, %v1596
        %v1660 = vpack.c.bf16 %v1607, %v1604
        %v1661 = vpack.c.bf16 %v1615, %v1612
        %v1662 = vpack.c.bf16 %v1623, %v1620
        %v1663 = vpack.c.bf16 %v1631, %v1628
        %v1664 = vpack.c.bf16 %v1639, %v1636
        %v1665 = vpack.c.bf16 %v1647, %v1644
        %v1682 = vunpack.c.l.b16 %v1650
        %v1683 = vunpack.c.h.b16 %v1650
        %v1684 = vunpack.c.l.b16 %v1651
        %v1685 = vunpack.c.h.b16 %v1651
        %v1686 = vunpack.c.l.b16 %v1652
        %v1687 = vunpack.c.h.b16 %v1652
        %v1688 = vunpack.c.l.b16 %v1653
        %v1689 = vunpack.c.h.b16 %v1653
        %v1690 = vunpack.c.l.b16 %v1654
        %v1691 = vunpack.c.h.b16 %v1654
        %v1692 = vunpack.c.l.b16 %v1655
        %v1693 = vunpack.c.h.b16 %v1655
        %v1694 = vunpack.c.l.b16 %v1656
        %v1695 = vunpack.c.h.b16 %v1656
        %v1696 = vunpack.c.l.b16 %v1657
        %v1697 = vunpack.c.h.b16 %v1657
        %v1698 = vunpack.c.l.b16 %v1658
        %v1699 = vunpack.c.h.b16 %v1658
        %v1700 = vunpack.c.l.b16 %v1659
        %v1701 = vunpack.c.h.b16 %v1659
        %v1702 = vunpack.c.l.b16 %v1660
        %v1703 = vunpack.c.h.b16 %v1660
        %v1704 = vunpack.c.l.b16 %v1661
        %v1705 = vunpack.c.h.b16 %v1661
        %v1706 = vunpack.c.l.b16 %v1662
        %v1707 = vunpack.c.h.b16 %v1662
        %v1708 = vunpack.c.l.b16 %v1663
        %v1709 = vunpack.c.h.b16 %v1663
        %v1710 = vunpack.c.l.b16 %v1664
        %v1711 = vunpack.c.h.b16 %v1664
        %v1712 = vunpack.c.l.b16 %v1665
        %v1713 = vunpack.c.h.b16 %v1665
        %v1714 = vpack.c.b16 %v1682, %v1682
        %v1715 = vpack.c.b16 %v1683, %v1683
        %v1716 = vpack.c.b16 %v1684, %v1684
        %v1717 = vpack.c.b16 %v1685, %v1685
        %v1718 = vpack.c.b16 %v1686, %v1686
        %v1719 = vpack.c.b16 %v1687, %v1687
        %v1720 = vpack.c.b16 %v1688, %v1688
        %v1721 = vpack.c.b16 %v1689, %v1689
        %v1722 = vpack.c.b16 %v1690, %v1690
        %v1723 = vpack.c.b16 %v1691, %v1691
        %v1724 = vpack.c.b16 %v1692, %v1692
        %v1725 = vpack.c.b16 %v1693, %v1693
        %v1726 = vpack.c.b16 %v1694, %v1694
        %v1727 = vpack.c.b16 %v1695, %v1695
        %v1728 = vpack.c.b16 %v1696, %v1696
        %v1729 = vpack.c.b16 %v1697, %v1697
        %v1730 = vpack.c.b16 %v1698, %v1698
        %v1731 = vpack.c.b16 %v1699, %v1699
        %v1732 = vpack.c.b16 %v1700, %v1700
        %v1733 = vpack.c.b16 %v1701, %v1701
        %v1734 = vpack.c.b16 %v1702, %v1702
        %v1735 = vpack.c.b16 %v1703, %v1703
        %v1736 = vpack.c.b16 %v1704, %v1704
        %v1737 = vpack.c.b16 %v1705, %v1705
        %v1738 = vpack.c.b16 %v1706, %v1706
        %v1739 = vpack.c.b16 %v1707, %v1707
        %v1740 = vpack.c.b16 %v1708, %v1708
        %v1741 = vpack.c.b16 %v1709, %v1709
        %v1742 = vpack.c.b16 %v1710, %v1710
        %v1743 = vpack.c.b16 %v1711, %v1711
        %v1744 = vpack.c.b16 %v1712, %v1712
        %v1745 = vpack.c.b16 %v1713, %v1713
        %1778 = vst [vmem:[%s243] sm:$0xf] %v1714
        %1779 = vst [vmem:[%s243 + $0x4] sm:$0xf] %v1715
        %1780 = vst [vmem:[%s243 + $0x8] sm:$0xf] %v1716
        %1781 = vst [vmem:[%s243 + $0xc] sm:$0xf] %v1717
        %1782 = vst [vmem:[%s243 + $0x10] sm:$0xf] %v1718
        %1783 = vst [vmem:[%s243 + $0x14] sm:$0xf] %v1719
        %1784 = vst [vmem:[%s243 + $0x18] sm:$0xf] %v1720
        %1785 = vst [vmem:[%s243 + $0x1c] sm:$0xf] %v1721
        %1786 = vst [vmem:[%s243 + $0x20] sm:$0xf] %v1722
        %1787 = vst [vmem:[%s243 + $0x24] sm:$0xf] %v1723
        %1788 = vst [vmem:[%s243 + $0x28] sm:$0xf] %v1724
        %1789 = vst [vmem:[%s243 + $0x2c] sm:$0xf] %v1725
        %1790 = vst [vmem:[%s243 + $0x30] sm:$0xf] %v1726
        %1791 = vst [vmem:[%s243 + $0x34] sm:$0xf] %v1727
        %1792 = vst [vmem:[%s243 + $0x38] sm:$0xf] %v1728
        %1793 = vst [vmem:[%s243 + $0x3c] sm:$0xf] %v1729
        %1794 = vst [vmem:[%s243 + $0x40] sm:$0xf] %v1730
        %1795 = vst [vmem:[%s243 + $0x44] sm:$0xf] %v1731
        %1796 = vst [vmem:[%s243 + $0x48] sm:$0xf] %v1732
        %1797 = vst [vmem:[%s243 + $0x4c] sm:$0xf] %v1733
        %1798 = vst [vmem:[%s243 + $0x50] sm:$0xf] %v1734
        %1799 = vst [vmem:[%s243 + $0x54] sm:$0xf] %v1735
        %1800 = vst [vmem:[%s243 + $0x58] sm:$0xf] %v1736
        %1801 = vst [vmem:[%s243 + $0x5c] sm:$0xf] %v1737
        %1802 = vst [vmem:[%s243 + $0x60] sm:$0xf] %v1738
        %1803 = vst [vmem:[%s243 + $0x64] sm:$0xf] %v1739
        %1804 = vst [vmem:[%s243 + $0x68] sm:$0xf] %v1740
        %1805 = vst [vmem:[%s243 + $0x6c] sm:$0xf] %v1741
        %1806 = vst [vmem:[%s243 + $0x70] sm:$0xf] %v1742
        %1807 = vst [vmem:[%s243 + $0x74] sm:$0xf] %v1743
        %1808 = vst [vmem:[%s243 + $0x78] sm:$0xf] %v1744
        %1809 = vst [vmem:[%s243 + $0x7c] sm:$0xf] %v1745
        %s1810 = sand.u32 %s147, 1
        %s1811 = scalar_lea.sflag [#allocation4], %s1810
        %s1812 = sand.u32 %s147, 1
        %s1813 = smul.addr %s1812, 128
        %s1814 = scalar_lea.vmem [#allocation3], %s1813
        // Predicated region
        $region41: #{tpu_custom_call.1} parent=39 // pred_check
          %p1815 = pneg %p157
        $region42: #{tpu_custom_call.1} parent=39 // pred_check_branch
          %1817 = sbr.rel (%p1815) target = $region44
        $region43: #{tpu_custom_call.1} parent=39 // pred_region
          %s1819 = ssub.s32 2048, 2048
          %1820 = vsyncadd %s1811, %s1819
          %s1821 = smul.addr %s19, 32
          %s1822 = smul.addr %s1821, 64
          %s1823 = scalar_lea.hbm %s5, %s1822
          %s1824 = sshll.u32 %s1814, 4
          %s1825 = int_to_ptr.vmem [resolvable:$true] %s1824
          %1830 = dma.vmem_to_hbm [thread:$0]  %s1825, 2048, %s1823, %s1811, 64, 64, 4
        $region44: #{tpu_custom_call.1} parent=39 // pred_fallthru
          _
      $region40: #{tpu_custom_call.1} parent=5 // pred_fallthru
        _
      %p1831 = scmp.le.s32.totalorder 2, %s14
      // Predicated region
      $region45: #{tpu_custom_call.1} parent=5 // pred_check
        %p1832 = pneg %p1831
      $region46: #{tpu_custom_call.1} parent=5 // pred_check_branch
        %1834 = sbr.rel (%p1832) target = $region48
      $region47: #{tpu_custom_call.1} parent=5 // pred_region
        %s1835 = ssub.s32 %s14, 2
        // Predicated region
        $region49: #{tpu_custom_call.1} parent=47 // pred_check
          %p1836 = pneg %p163
        $region50: #{tpu_custom_call.1} parent=47 // pred_check_branch
          %1838 = sbr.rel (%p1836) target = $region52
        $region51: #{tpu_custom_call.1} parent=47 // pred_region
          %s1839 = sand.u32 %s148, 1
          %s1840 = scalar_lea.sflag [#allocation4], %s1839
          %s1841 = sand.u32 %s148, 1
          %s1842 = smul.addr %s1841, 128
          %s1843 = scalar_lea.vmem [#allocation3], %s1842
          %1844 = dma.done %s1840, 2048
        $region52: #{tpu_custom_call.1} parent=47 // pred_fallthru
          _
      $region48: #{tpu_custom_call.1} parent=5 // pred_fallthru
        _
    $region6: #{tpu_custom_call.1} parent=1 // loop_footer
      %s18 = sadd.s32 1, %s14
    $region7: #{tpu_custom_call.1} parent=1 // loop_footer_branch
      %13 = sbr.rel target = $region3
    $region8: #{tpu_custom_call.1} parent=1 // loop_exit
      _
    %1845 = vsyncpa [#allocation4], 1
    %s1846 = scalar_lea.sflag [#allocation4], 1
    %1847 = vsyncpa %s1846, 1

// kernel: tpu_custom_call.1
$region0: #{tpu_custom_call.1}
  #allocation0 [shape = 'u32[]', space=smem, size = 0x4, offset = 0x4, fixed_abs, tag = 'smem constant byte address 0x4 - core index']
  #allocation1 [shape = 'u32[144,128]{1,0:T(1,128)}', space=vmem, size = 0x12000, scoped, tag = 'internal scratch']
  #allocation2 [shape = 'f32[18,18,4]{2,1,0:T(8,128)}', space=vmem, size = 0x36000, scoped, tag = 'scratch operand']
  %s0 = inlined_call_operand.vmem [shape: bf16[2,16,16,4], index: 0, kind: input, shape index: {}]
  %s1 = inlined_call_operand.vmem [shape: f32[2,1,4], index: 1, kind: input, shape index: {}]
  %s2 = inlined_call_operand.vmem [shape: f32[2,36,1], index: 2, kind: input, shape index: {}]
  %s3 = inlined_call_operand.vmem [shape: f32[4,128], index: 3, kind: input, shape index: {}]
  %s4 = inlined_call_operand.vmem [shape: bf16[36,128], index: 4, kind: input, shape index: {}]
  %s5 = inlined_call_operand.hbm [shape: bf16[2,256,128], index: 5, kind: output, shape index: {}]
  %s6 = sld [smem:[#allocation0]]
  $region53: #{tpu_custom_call.1} parent=0
    _
  %s8 = ssub.s32 1, %s6
  %s9 = scalar_select 0, %s8, %s6
  $region1: #{tpu_custom_call.1} parent=0
    #allocation3 [shape = 'u8[131072]{0}', space=vmem, size = 0x20000, scoped, tag = 'output window, operand 0']
    #allocation4 [shape = 's32[2]{0}', space=sflag, size = 0x8, scoped, tag = 'scoped memory for tpu_custom_call.1']
    %10 = vsyncpa [#allocation4], 0
    %s11 = scalar_lea.sflag [#allocation4], 1
    %12 = vsyncpa %s11, 0
    loop: start=0, step=1, limit=4
    $region2: #{tpu_custom_call.1} parent=1 // loop_pre_header
      _
    $region3: #{tpu_custom_call.1} parent=1 // loop_header
      %s14 = sphi 0, %s18
      %p15 = scmp.ge.s32.totalorder %s14, 4
      %s24 = sphi 0, %s26
      %s27 = sphi 0, %s24
      %s28 = sphi 0, %s27
      %s44 = sphi 0, %s28
      %s50 = sphi 0, %s52
      %s53 = sphi 0, %s50
      %s54 = sphi 0, %s53
      %s70 = sphi 0, %s54
      %s76 = sphi 0, %s78
      %s79 = sphi 0, %s76
      %s80 = sphi 0, %s79
      %s96 = sphi 0, %s80
      %s100 = sphi 0, %s100
      %s102 = sphi 0, %s100
      %s103 = sphi 0, %s102
      %s117 = sphi 0, %s103
      %s121 = sphi 0, %s121
      %s123 = sphi 0, %s121
      %s124 = sphi 0, %s123
      %s138 = sphi 0, %s124
      %s144 = sphi 0, %s146
      %s147 = sphi 0, %s144
      %s148 = sphi 0, %s147
      %s164 = sphi 0, %s148
    $region4: #{tpu_custom_call.1} parent=1 // loop_header_branch
      %17 = sbr.rel (%p15) target = $region8
    $region5: #{tpu_custom_call.1} parent=1 // loop_body
      %s19 = ssub.s32 %s14, 1
      %s20 = ssub.s32 %s14, 2
      %s21 = sadd.s32 %s14, 1
      %s22 = ssub.s32 %s14, %s21
      %p23 = scmp.eq.s32.totalorder %s22, 0
      %s25 = sadd.s32 %s24, 1
      %s26 = scalar_select %p23, %s24, %s25
      %p29 = pneg %p23
      %p30 = scmp.eq.s32.totalorder %s14, 1
      %p31 = por %p29, %p30
      %p32 = scmp.ne.s32.totalorder %s24, %s27
      %p33 = scmp.eq.s32.totalorder %s14, 0
      %p34 = por %p32, %p33
      %p35 = scmp.ne.s32.totalorder %s24, %s27
      %p36 = scmp.eq.s32.totalorder %s19, 1
      %p37 = por %p35, %p36
      %p38 = scmp.ne.s32.totalorder %s27, %s28
      %p39 = scmp.eq.s32.totalorder %s19, 0
      %p40 = por %p38, %p39
      %p41 = scmp.ne.s32.totalorder %s27, %s28
      %p42 = scmp.eq.s32.totalorder %s20, 1
      %p43 = por %p41, %p42
      %p45 = scmp.ne.s32.totalorder %s28, %s44
      %p46 = scmp.eq.s32.totalorder %s20, 0
      %p47 = por %p45, %p46
      %s48 = ssub.s32 %s14, %s21
      %p49 = scmp.eq.s32.totalorder %s48, 0
      %s51 = sadd.s32 %s50, 1
      %s52 = scalar_select %p49, %s50, %s51
      %p55 = pneg %p49
      %p56 = scmp.eq.s32.totalorder %s14, 1
      %p57 = por %p55, %p56
      %p58 = scmp.ne.s32.totalorder %s50, %s53
      %p59 = scmp.eq.s32.totalorder %s14, 0
      %p60 = por %p58, %p59
      %p61 = scmp.ne.s32.totalorder %s50, %s53
      %p62 = scmp.eq.s32.totalorder %s19, 1
      %p63 = por %p61, %p62
      %p64 = scmp.ne.s32.totalorder %s53, %s54
      %p65 = scmp.eq.s32.totalorder %s19, 0
      %p66 = por %p64, %p65
      %p67 = scmp.ne.s32.totalorder %s53, %s54
      %p68 = scmp.eq.s32.totalorder %s20, 1
      %p69 = por %p67, %p68
      %p71 = scmp.ne.s32.totalorder %s54, %s70
      %p72 = scmp.eq.s32.totalorder %s20, 0
      %p73 = por %p71, %p72
      %s74 = ssub.s32 %s14, %s21
      %p75 = scmp.eq.s32.totalorder %s74, 0
      %s77 = sadd.s32 %s76, 1
      %s78 = scalar_select %p75, %s76, %s77
      %p81 = pneg %p75
      %p82 = scmp.eq.s32.totalorder %s14, 1
      %p83 = por %p81, %p82
      %p84 = scmp.ne.s32.totalorder %s76, %s79
      %p85 = scmp.eq.s32.totalorder %s14, 0
      %p86 = por %p84, %p85
      %p87 = scmp.ne.s32.totalorder %s76, %s79
      %p88 = scmp.eq.s32.totalorder %s19, 1
      %p89 = por %p87, %p88
      %p90 = scmp.ne.s32.totalorder %s79, %s80
      %p91 = scmp.eq.s32.totalorder %s19, 0
      %p92 = por %p90, %p91
      %p93 = scmp.ne.s32.totalorder %s79, %s80
      %p94 = scmp.eq.s32.totalorder %s20, 1
      %p95 = por %p93, %p94
      %p97 = scmp.ne.s32.totalorder %s80, %s96
      %p98 = scmp.eq.s32.totalorder %s20, 0
      %p99 = por %p97, %p98
      %s101 = sadd.s32 %s100, 1
      %p104 = scmp.eq.s32.totalorder %s14, 1
      %p105 = scmp.ne.s32.totalorder %s100, %s102
      %p106 = scmp.eq.s32.totalorder %s14, 0
      %p107 = por %p105, %p106
      %p108 = scmp.ne.s32.totalorder %s100, %s102
      %p109 = scmp.eq.s32.totalorder %s19, 1
      %p110 = por %p108, %p109
      %p111 = scmp.ne.s32.totalorder %s102, %s103
      %p112 = scmp.eq.s32.totalorder %s19, 0
      %p113 = por %p111, %p112
      %p114 = scmp.ne.s32.totalorder %s102, %s103
      %p115 = scmp.eq.s32.totalorder %s20, 1
      %p116 = por %p114, %p115
      %p118 = scmp.ne.s32.totalorder %s103, %s117
      %p119 = scmp.eq.s32.totalorder %s20, 0
      %p120 = por %p118, %p119
      %s122 = sadd.s32 %s121, 1
      %p125 = scmp.eq.s32.totalorder %s14, 1
      %p126 = scmp.ne.s32.totalorder %s121, %s123
      %p127 = scmp.eq.s32.totalorder %s14, 0
      %p128 = por %p126, %p127
      %p129 = scmp.ne.s32.totalorder %s121, %s123
      %p130 = scmp.eq.s32.totalorder %s19, 1
      %p131 = por %p129, %p130
      %p132 = scmp.ne.s32.totalorder %s123, %s124
      %p133 = scmp.eq.s32.totalorder %s19, 0
      %p134 = por %p132, %p133
      %p135 = scmp.ne.s32.totalorder %s123, %s124
      %p136 = scmp.eq.s32.totalorder %s20, 1
      %p137 = por %p135, %p136
      %p139 = scmp.ne.s32.totalorder %s124, %s138
      %p140 = scmp.eq.s32.totalorder %s20, 0
      %p141 = por %p139, %p140
      %s142 = ssub.s32 %s14, %s21
      %p143 = scmp.eq.s32.totalorder %s142, 0
      %s145 = sadd.s32 %s144, 1
      %s146 = scalar_select %p143, %s144, %s145
      %p149 = pneg %p143
      %p150 = scmp.eq.s32.totalorder %s14, 1
      %p151 = por %p149, %p150
      %p152 = scmp.ne.s32.totalorder %s144, %s147
      %p153 = scmp.eq.s32.totalorder %s14, 0
      %p154 = por %p152, %p153
      %p155 = scmp.ne.s32.totalorder %s144, %s147
      %p156 = scmp.eq.s32.totalorder %s19, 1
      %p157 = por %p155, %p156
      %p158 = scmp.ne.s32.totalorder %s147, %s148
      %p159 = scmp.eq.s32.totalorder %s19, 0
      %p160 = por %p158, %p159
      %p161 = scmp.ne.s32.totalorder %s147, %s148
      %p162 = scmp.eq.s32.totalorder %s20, 1
      %p163 = por %p161, %p162
      %p165 = scmp.ne.s32.totalorder %s148, %s164
      %p166 = scmp.eq.s32.totalorder %s20, 0
      %p167 = por %p165, %p166
      %p168 = scmp.le.s32.totalorder 1, %s14
      %p169 = scmp.lt.s32.totalorder %s14, 3
      %p170 = pnand %p168, %p169
      %p171 = pneg %p170
      // Predicated region
      $region9: #{tpu_custom_call.1} parent=5 // pred_check
        _
      $region10: #{tpu_custom_call.1} parent=5 // pred_check_branch
        %173 = sbr.rel (%p170) target = $region12
      $region11: #{tpu_custom_call.1} parent=5 // pred_region
        %s174 = ssub.s32 %s14, 1
        // Predicated region
        $region13: #{tpu_custom_call.1} parent=11 // pred_check
          %p175 = pneg %p113
        $region14: #{tpu_custom_call.1} parent=11 // pred_check_branch
          %177 = sbr.rel (%p175) target = $region16
        $region15: #{tpu_custom_call.1} parent=11 // pred_region
          _
        $region16: #{tpu_custom_call.1} parent=11 // pred_fallthru
          _
        // Predicated region
        $region17: #{tpu_custom_call.1} parent=11 // pred_check
          %p178 = pneg %p134
        $region18: #{tpu_custom_call.1} parent=11 // pred_check_branch
          %180 = sbr.rel (%p178) target = $region20
        $region19: #{tpu_custom_call.1} parent=11 // pred_region
          _
        $region20: #{tpu_custom_call.1} parent=11 // pred_fallthru
          _
      $region12: #{tpu_custom_call.1} parent=5 // pred_fallthru
        _
      %p181 = scmp.lt.s32.totalorder %s14, 2
      // Predicated region
      $region21: #{tpu_custom_call.1} parent=5 // pred_check
        %p182 = pneg %p181
      $region22: #{tpu_custom_call.1} parent=5 // pred_check_branch
        %184 = sbr.rel (%p182) target = $region24
      $region23: #{tpu_custom_call.1} parent=5 // pred_region
        // Predicated region
        $region25: #{tpu_custom_call.1} parent=23 // pred_check
          %p185 = pneg %p34
        $region26: #{tpu_custom_call.1} parent=23 // pred_check_branch
          %187 = sbr.rel (%p185) target = $region28
        $region27: #{tpu_custom_call.1} parent=23 // pred_region
          %p188 = scmp.lt.s32.totalorder %s14, 1
          %s189 = scalar_select %p188, %s14, 1
          %s190 = smul.addr %s189, 32
          %s191 = smul.addr %s190, 4
          %s192 = scalar_lea.vmem %s0, %s191
        $region28: #{tpu_custom_call.1} parent=23 // pred_fallthru
          _
        // Predicated region
        $region29: #{tpu_custom_call.1} parent=23 // pred_check
          %p193 = pneg %p60
        $region30: #{tpu_custom_call.1} parent=23 // pred_check_branch
          %195 = sbr.rel (%p193) target = $region32
        $region31: #{tpu_custom_call.1} parent=23 // pred_region
          %p196 = scmp.lt.s32.totalorder %s14, 1
          %s197 = scalar_select %p196, %s14, 1
          %s198 = scalar_lea.vmem %s1, %s197
        $region32: #{tpu_custom_call.1} parent=23 // pred_fallthru
          _
        // Predicated region
        $region33: #{tpu_custom_call.1} parent=23 // pred_check
          %p199 = pneg %p86
        $region34: #{tpu_custom_call.1} parent=23 // pred_check_branch
          %201 = sbr.rel (%p199) target = $region36
        $region35: #{tpu_custom_call.1} parent=23 // pred_region
          %p202 = scmp.lt.s32.totalorder %s14, 1
          %s203 = scalar_select %p202, %s14, 1
          %s204 = smul.addr %s203, 5
          %s205 = smul.addr %s204, 8
          %s206 = scalar_lea.vmem %s2, %s205
        $region36: #{tpu_custom_call.1} parent=23 // pred_fallthru
          _
      $region24: #{tpu_custom_call.1} parent=5 // pred_fallthru
        _
      %p207 = scmp.le.s32.totalorder 1, %s14
      %p208 = scmp.lt.s32.totalorder %s14, 3
      %p209 = pnand %p207, %p208
      %p210 = pneg %p209
      // Predicated region
      $region37: #{tpu_custom_call.1} parent=5 // pred_check
        _
      $region38: #{tpu_custom_call.1} parent=5 // pred_check_branch
        %212 = sbr.rel (%p209) target = $region40
      $region39: #{tpu_custom_call.1} parent=5 // pred_region
        %s213 = ssub.s32 %s14, 1
        %p214 = scmp.lt.s32.totalorder %s19, 1
        %s215 = scalar_select %p214, %s19, 1
        %s216 = smul.addr %s215, 32
        %s217 = smul.addr %s216, 4
        %s218 = scalar_lea.vmem %s0, %s217
        %p219 = pneg %p40
        %p220 = pneg %p37
        %p221 = scmp.lt.s32.totalorder %s19, 1
        %s222 = scalar_select %p221, %s19, 1
        %s223 = scalar_lea.vmem %s1, %s222
        %p224 = pneg %p66
        %p225 = pneg %p63
        %p226 = scmp.lt.s32.totalorder %s19, 1
        %s227 = scalar_select %p226, %s19, 1
        %s228 = smul.addr %s227, 5
        %s229 = smul.addr %s228, 8
        %s230 = scalar_lea.vmem %s2, %s229
        %p231 = pneg %p92
        %p232 = pneg %p89
        %p233 = pneg %p113
        %p234 = pneg %p110
        %p235 = pneg %p134
        %p236 = pneg %p131
        %p237 = pneg %p160
        %p238 = pneg %p157
        %s239 = sand.u32 %s147, 1
        %s240 = scalar_lea.sflag [#allocation4], %s239
        %s241 = sand.u32 %s147, 1
        %s242 = smul.addr %s241, 128
        %s243 = scalar_lea.vmem [#allocation3], %s242
        %p244 = scmp.lt.s32.totalorder %s19, 1
        %s245 = scalar_select %p244, %s19, 1
        %s246 = smul.addr %s245, 32
        %s247 = smul.addr %s246, 4
        %s248 = scalar_lea.vmem %s0, %s247
        %p249 = scmp.lt.s32.totalorder %s19, 1
        %s250 = scalar_select %p249, %s19, 1
        %s251 = scalar_lea.vmem %s1, %s250
        %p252 = scmp.lt.s32.totalorder %s19, 1
        %s253 = scalar_select %p252, %s19, 1
        %s254 = smul.addr %s253, 5
        %s255 = smul.addr %s254, 8
        %s256 = scalar_lea.vmem %s2, %s255
        %v258 = vld [vmem:[%s251] sm:$0x1]
        %v259 = vmul.f32 %v258, %v258
        %v260 = vld [vmem:[%s3] sm:$0xf]
        %vm261 = vcmask 31744
        %v263 = vsel %vm261, %v259, 0
        %vm265 = vcmask 1043456
        %v267 = vsel %vm265, %v260, 0
        %269 = vmatprep.subr.mxu0 0.0
        %270 = vmatpush1.msra.mxu0 %v267
        %271 = vmatprep.subr.mxu0 0.0
        %272 = vmatpush1.msra.mxu0 0.0
        %273 = vmatprep.subr.mxu0 0.0
        %274 = vmatpush1.msra.mxu0 0.0
        %275 = vmatprep.subr.mxu0 0.0
        %276 = vmatpush1.msra.mxu0 0.0
        %277 = vmatprep.subr.mxu0 0.0
        %278 = vmatpush1.msra.mxu0 0.0
        %279 = vmatprep.subr.mxu0 0.0
        %280 = vmatpush1.msra.mxu0 0.0
        %281 = vmatprep.subr.mxu0 0.0
        %282 = vmatpush1.msra.mxu0 0.0
        %283 = vmatprep.subr.mxu0 0.0
        %284 = vmatpush1.msra.mxu0 0.0
        %285 = vmatprep.subr.mxu0 0.0
        %286 = vmatpush1.msra.mxu0 0.0
        %287 = vmatprep.subr.mxu0 0.0
        %288 = vmatpush1.msra.mxu0 0.0
        %289 = vmatprep.subr.mxu0 0.0
        %290 = vmatpush1.msra.mxu0 0.0
        %291 = vmatprep.subr.mxu0 0.0
        %292 = vmatpush1.msra.mxu0 0.0
        %293 = vmatprep.subr.mxu0 0.0
        %294 = vmatpush1.msra.mxu0 0.0
        %295 = vmatprep.subr.mxu0 0.0
        %296 = vmatpush1.msra.mxu0 0.0
        %297 = vmatprep.subr.mxu0 0.0
        %298 = vmatpush1.msra.mxu0 0.0
        %299 = vmatprep.subr.mxu0 0.0
        %300 = vmatpush1.msra.mxu0 0.0
        %301 = vmatprep.subr.mxu0 0.0
        %302 = vmatpush1.msra.mxu0 0.0
        %303 = vmatprep.subr.mxu0 0.0
        %304 = vmatpush1.msra.mxu0 0.0
        %305 = vmatprep.subr.mxu0 0.0
        %306 = vmatpush1.msra.mxu0 0.0
        %307 = vmatprep.subr.mxu0 0.0
        %308 = vmatpush1.msra.mxu0 0.0
        %309 = vmatprep.subr.mxu0 0.0
        %310 = vmatpush1.msra.mxu0 0.0
        %311 = vmatprep.subr.mxu0 0.0
        %312 = vmatpush1.msra.mxu0 0.0
        %313 = vmatprep.subr.mxu0 0.0
        %314 = vmatpush1.msra.mxu0 0.0
        %315 = vmatprep.subr.mxu0 0.0
        %316 = vmatpush1.msra.mxu0 0.0
        %317 = vmatprep.subr.mxu0 0.0
        %318 = vmatpush1.msra.mxu0 0.0
        %319 = vmatprep.subr.mxu0 0.0
        %320 = vmatpush1.msra.mxu0 0.0
        %321 = vmatprep.subr.mxu0 0.0
        %322 = vmatpush1.msra.mxu0 0.0
        %323 = vmatprep.subr.mxu0 0.0
        %324 = vmatpush1.msra.mxu0 0.0
        %325 = vmatprep.subr.mxu0 0.0
        %326 = vmatpush1.msra.mxu0 0.0
        %327 = vmatprep.subr.mxu0 0.0
        %328 = vmatpush1.msra.mxu0 0.0
        %329 = vmatprep.subr.mxu0 0.0
        %330 = vmatpush1.msra.mxu0 0.0
        %331 = vmatprep.subr.mxu0 0.0
        %332 = vmatpush1.msra.mxu0 0.0
        %333 = vmatprep.mubr.f32.mxu0 0.0
        %334 = vmatmul.mubr.f32.gmra.mrb[0].mxu0 %v263
        %v335 = vpop.f32.mrb[0].mxu0
        %v336 = vadd.f32 1e-08, %v335
        %v337 = vpop.f32.mrb[0].mxu0
        %338 = vdwg.mxu0
        %v339 = vrsqrt.pop %v336
        %v340 = vld [vmem:[%s256] sm:$0xff]
        %v341 = vld [vmem:[%s256 + $0x8] sm:$0xff]
        %v342 = vld [vmem:[%s256 + $0x10] sm:$0xff]
        %v343 = vld [vmem:[%s256 + $0x18] sm:$0xff]
        %v344 = vld [vmem:[%s256 + $0x20] sm:$0xf]
        %346 = vset.pattern.permute.xlu0 0
        %347 = vperm.xlu0 %346, %v340
        %v348 = vpop.permute.xlu0 %347
        %351 = vset.pattern.permute.xlu0 0
        %352 = vperm.xlu0 %351, %v341
        %v353 = vpop.permute.xlu0 %352
        %356 = vset.pattern.permute.xlu0 0
        %357 = vperm.xlu0 %356, %v342
        %v358 = vpop.permute.xlu0 %357
        %361 = vset.pattern.permute.xlu0 0
        %362 = vperm.xlu0 %361, %v343
        %v363 = vpop.permute.xlu0 %362
        %366 = vset.pattern.permute.xlu0 0
        %367 = vperm.xlu0 %366, %v344
        %v368 = vpop.permute.xlu0 %367
        %v370 = vlaneseq
        %v371 = vshrl.u32 %v370, 7
        %v372 = vsub.s32 0, %v371
        %v373 = vrot.slane %v339, %v372
        %v374 = vmul.f32 %v348, %v373
        %v375 = vmul.f32 %v353, %v373
        %v376 = vmul.f32 %v358, %v373
        %v377 = vmul.f32 %v363, %v373
        %v378 = vmul.f32 %v368, %v373
        %v379 = vld [vmem:[%s4] sm:$0xf]
        %v380 = vld [vmem:[%s4 + $0x4] sm:$0xf]
        %v381 = vld [vmem:[%s4 + $0x8] sm:$0xf]
        %v382 = vld [vmem:[%s4 + $0xc] sm:$0xf]
        %v383 = vld [vmem:[%s4 + $0x10] sm:$0x3]
        %v384 = vunpack.c.l.bf16 %v379
        %v385 = vunpack.c.l.bf16 %v380
        %v386 = vunpack.c.l.bf16 %v381
        %v387 = vunpack.c.l.bf16 %v382
        %v388 = vunpack.c.l.bf16 %v383
        %v389 = vmul.f32 %v384, %v374
        %v390 = vmul.f32 %v385, %v375
        %v391 = vmul.f32 %v386, %v376
        %v392 = vmul.f32 %v387, %v377
        %v393 = vmul.f32 %v388, %v378
        %v394 = vpack.c.bf16 %v390, %v389
        %v395 = vpack.c.bf16 %v392, %v391
        %v396 = vpack.c.bf16 %v393, %v393
        %397 = vst.msk [vmem:[#allocation2] sm:$0xff] %vm261, 0.0
        %398 = vst.msk [vmem:[#allocation2 + $0x8] sm:$0xff] %vm261, 0.0
        %vm399 = vcmask 25600
        %400 = vst.msk [vmem:[#allocation2 + $0x10] sm:$0x3] %vm399, 0.0
        %401 = vst.msk [vmem:[#allocation2 + $0x18] sm:$0xff] %vm261, 0.0
        %402 = vst.msk [vmem:[#allocation2 + $0x20] sm:$0xff] %vm261, 0.0
        %403 = vst.msk [vmem:[#allocation2 + $0x28] sm:$0x3] %vm399, 0.0
        %404 = vst.msk [vmem:[#allocation2 + $0x30] sm:$0xff] %vm261, 0.0
        %405 = vst.msk [vmem:[#allocation2 + $0x38] sm:$0xff] %vm261, 0.0
        %406 = vst.msk [vmem:[#allocation2 + $0x40] sm:$0x3] %vm399, 0.0
        %407 = vst.msk [vmem:[#allocation2 + $0x48] sm:$0xff] %vm261, 0.0
        %408 = vst.msk [vmem:[#allocation2 + $0x50] sm:$0xff] %vm261, 0.0
        %409 = vst.msk [vmem:[#allocation2 + $0x58] sm:$0x3] %vm399, 0.0
        %410 = vst.msk [vmem:[#allocation2 + $0x60] sm:$0xff] %vm261, 0.0
        %411 = vst.msk [vmem:[#allocation2 + $0x68] sm:$0xff] %vm261, 0.0
        %412 = vst.msk [vmem:[#allocation2 + $0x70] sm:$0x3] %vm399, 0.0
        %413 = vst.msk [vmem:[#allocation2 + $0x78] sm:$0xff] %vm261, 0.0
        %414 = vst.msk [vmem:[#allocation2 + $0x80] sm:$0xff] %vm261, 0.0
        %415 = vst.msk [vmem:[#allocation2 + $0x88] sm:$0x3] %vm399, 0.0
        %416 = vst.msk [vmem:[#allocation2 + $0x90] sm:$0xff] %vm261, 0.0
        %417 = vst.msk [vmem:[#allocation2 + $0x98] sm:$0xff] %vm261, 0.0
        %418 = vst.msk [vmem:[#allocation2 + $0xa0] sm:$0x3] %vm399, 0.0
        %419 = vst.msk [vmem:[#allocation2 + $0xa8] sm:$0xff] %vm261, 0.0
        %420 = vst.msk [vmem:[#allocation2 + $0xb0] sm:$0xff] %vm261, 0.0
        %421 = vst.msk [vmem:[#allocation2 + $0xb8] sm:$0x3] %vm399, 0.0
        %422 = vst.msk [vmem:[#allocation2 + $0xc0] sm:$0xff] %vm261, 0.0
        %423 = vst.msk [vmem:[#allocation2 + $0xc8] sm:$0xff] %vm261, 0.0
        %424 = vst.msk [vmem:[#allocation2 + $0xd0] sm:$0x3] %vm399, 0.0
        %425 = vst.msk [vmem:[#allocation2 + $0xd8] sm:$0xff] %vm261, 0.0
        %426 = vst.msk [vmem:[#allocation2 + $0xe0] sm:$0xff] %vm261, 0.0
        %427 = vst.msk [vmem:[#allocation2 + $0xe8] sm:$0x3] %vm399, 0.0
        %428 = vst.msk [vmem:[#allocation2 + $0xf0] sm:$0xff] %vm261, 0.0
        %429 = vst.msk [vmem:[#allocation2 + $0xf8] sm:$0xff] %vm261, 0.0
        %430 = vst.msk [vmem:[#allocation2 + $0x100] sm:$0x3] %vm399, 0.0
        %431 = vst.msk [vmem:[#allocation2 + $0x108] sm:$0xff] %vm261, 0.0
        %432 = vst.msk [vmem:[#allocation2 + $0x110] sm:$0xff] %vm261, 0.0
        %433 = vst.msk [vmem:[#allocation2 + $0x118] sm:$0x3] %vm399, 0.0
        %434 = vst.msk [vmem:[#allocation2 + $0x120] sm:$0xff] %vm261, 0.0
        %435 = vst.msk [vmem:[#allocation2 + $0x128] sm:$0xff] %vm261, 0.0
        %436 = vst.msk [vmem:[#allocation2 + $0x130] sm:$0x3] %vm399, 0.0
        %437 = vst.msk [vmem:[#allocation2 + $0x138] sm:$0xff] %vm261, 0.0
        %438 = vst.msk [vmem:[#allocation2 + $0x140] sm:$0xff] %vm261, 0.0
        %439 = vst.msk [vmem:[#allocation2 + $0x148] sm:$0x3] %vm399, 0.0
        %440 = vst.msk [vmem:[#allocation2 + $0x150] sm:$0xff] %vm261, 0.0
        %441 = vst.msk [vmem:[#allocation2 + $0x158] sm:$0xff] %vm261, 0.0
        %442 = vst.msk [vmem:[#allocation2 + $0x160] sm:$0x3] %vm399, 0.0
        %443 = vst.msk [vmem:[#allocation2 + $0x168] sm:$0xff] %vm261, 0.0
        %444 = vst.msk [vmem:[#allocation2 + $0x170] sm:$0xff] %vm261, 0.0
        %445 = vst.msk [vmem:[#allocation2 + $0x178] sm:$0x3] %vm399, 0.0
        %446 = vst.msk [vmem:[#allocation2 + $0x180] sm:$0xff] %vm261, 0.0
        %447 = vst.msk [vmem:[#allocation2 + $0x188] sm:$0xff] %vm261, 0.0
        %448 = vst.msk [vmem:[#allocation2 + $0x190] sm:$0x3] %vm399, 0.0
        %449 = vst.msk [vmem:[#allocation2 + $0x198] sm:$0xff] %vm261, 0.0
        %450 = vst.msk [vmem:[#allocation2 + $0x1a0] sm:$0xff] %vm261, 0.0
        %451 = vst.msk [vmem:[#allocation2 + $0x1a8] sm:$0x3] %vm399, 0.0
        %v452 = vld [vmem:[%s248] sm:$0xf]
        %v453 = vld [vmem:[%s248 + $0x4] sm:$0xf]
        %v454 = vld [vmem:[%s248 + $0x8] sm:$0xf]
        %v455 = vld [vmem:[%s248 + $0xc] sm:$0xf]
        %v456 = vld [vmem:[%s248 + $0x10] sm:$0xf]
        %v457 = vld [vmem:[%s248 + $0x14] sm:$0xf]
        %v458 = vld [vmem:[%s248 + $0x18] sm:$0xf]
        %v459 = vld [vmem:[%s248 + $0x1c] sm:$0xf]
        %v460 = vld [vmem:[%s248 + $0x20] sm:$0xf]
        %v461 = vld [vmem:[%s248 + $0x24] sm:$0xf]
        %v462 = vld [vmem:[%s248 + $0x28] sm:$0xf]
        %v463 = vld [vmem:[%s248 + $0x2c] sm:$0xf]
        %v464 = vld [vmem:[%s248 + $0x30] sm:$0xf]
        %v465 = vld [vmem:[%s248 + $0x34] sm:$0xf]
        %v466 = vld [vmem:[%s248 + $0x38] sm:$0xf]
        %v467 = vld [vmem:[%s248 + $0x3c] sm:$0xf]
        %v468 = vld [vmem:[%s248 + $0x40] sm:$0xf]
        %v469 = vld [vmem:[%s248 + $0x44] sm:$0xf]
        %v470 = vld [vmem:[%s248 + $0x48] sm:$0xf]
        %v471 = vld [vmem:[%s248 + $0x4c] sm:$0xf]
        %v472 = vld [vmem:[%s248 + $0x50] sm:$0xf]
        %v473 = vld [vmem:[%s248 + $0x54] sm:$0xf]
        %v474 = vld [vmem:[%s248 + $0x58] sm:$0xf]
        %v475 = vld [vmem:[%s248 + $0x5c] sm:$0xf]
        %v476 = vld [vmem:[%s248 + $0x60] sm:$0xf]
        %v477 = vld [vmem:[%s248 + $0x64] sm:$0xf]
        %v478 = vld [vmem:[%s248 + $0x68] sm:$0xf]
        %v479 = vld [vmem:[%s248 + $0x6c] sm:$0xf]
        %v480 = vld [vmem:[%s248 + $0x70] sm:$0xf]
        %v481 = vld [vmem:[%s248 + $0x74] sm:$0xf]
        %v482 = vld [vmem:[%s248 + $0x78] sm:$0xf]
        %v483 = vld [vmem:[%s248 + $0x7c] sm:$0xf]
        %v484 = vunpack.c.l.bf16 %v452
        %v485 = vunpack.c.l.bf16 %v453
        %v486 = vunpack.c.l.bf16 %v454
        %v487 = vunpack.c.l.bf16 %v455
        %v488 = vunpack.c.l.bf16 %v456
        %v489 = vunpack.c.l.bf16 %v457
        %v490 = vunpack.c.l.bf16 %v458
        %v491 = vunpack.c.l.bf16 %v459
        %v492 = vunpack.c.l.bf16 %v460
        %v493 = vunpack.c.l.bf16 %v461
        %v494 = vunpack.c.l.bf16 %v462
        %v495 = vunpack.c.l.bf16 %v463
        %v496 = vunpack.c.l.bf16 %v464
        %v497 = vunpack.c.l.bf16 %v465
        %v498 = vunpack.c.l.bf16 %v466
        %v499 = vunpack.c.l.bf16 %v467
        %v500 = vunpack.c.l.bf16 %v468
        %v501 = vunpack.c.l.bf16 %v469
        %v502 = vunpack.c.l.bf16 %v470
        %v503 = vunpack.c.l.bf16 %v471
        %v504 = vunpack.c.l.bf16 %v472
        %v505 = vunpack.c.l.bf16 %v473
        %v506 = vunpack.c.l.bf16 %v474
        %v507 = vunpack.c.l.bf16 %v475
        %v508 = vunpack.c.l.bf16 %v476
        %v509 = vunpack.c.l.bf16 %v477
        %v510 = vunpack.c.l.bf16 %v478
        %v511 = vunpack.c.l.bf16 %v479
        %v512 = vunpack.c.l.bf16 %v480
        %v513 = vunpack.c.l.bf16 %v481
        %v514 = vunpack.c.l.bf16 %v482
        %v515 = vunpack.c.l.bf16 %v483
        %s516 = scalar_lea.vmem [#allocation2], 24
        %517 = vst.msk [vmem:[%s516 + $0x1] sm:$0xff] %vm261, %v484
        %518 = vst.msk [vmem:[%s516 + $0x9] sm:$0xff] %vm261, %v485
        %519 = vst.msk [vmem:[%s516 + $0x19] sm:$0xff] %vm261, %v486
        %520 = vst.msk [vmem:[%s516 + $0x21] sm:$0xff] %vm261, %v487
        %521 = vst.msk [vmem:[%s516 + $0x31] sm:$0xff] %vm261, %v488
        %522 = vst.msk [vmem:[%s516 + $0x39] sm:$0xff] %vm261, %v489
        %523 = vst.msk [vmem:[%s516 + $0x49] sm:$0xff] %vm261, %v490
        %524 = vst.msk [vmem:[%s516 + $0x51] sm:$0xff] %vm261, %v491
        %525 = vst.msk [vmem:[%s516 + $0x61] sm:$0xff] %vm261, %v492
        %526 = vst.msk [vmem:[%s516 + $0x69] sm:$0xff] %vm261, %v493
        %527 = vst.msk [vmem:[%s516 + $0x79] sm:$0xff] %vm261, %v494
        %528 = vst.msk [vmem:[%s516 + $0x81] sm:$0xff] %vm261, %v495
        %529 = vst.msk [vmem:[%s516 + $0x91] sm:$0xff] %vm261, %v496
        %530 = vst.msk [vmem:[%s516 + $0x99] sm:$0xff] %vm261, %v497
        %531 = vst.msk [vmem:[%s516 + $0xa9] sm:$0xff] %vm261, %v498
        %532 = vst.msk [vmem:[%s516 + $0xb1] sm:$0xff] %vm261, %v499
        %533 = vst.msk [vmem:[%s516 + $0xc1] sm:$0xff] %vm261, %v500
        %534 = vst.msk [vmem:[%s516 + $0xc9] sm:$0xff] %vm261, %v501
        %535 = vst.msk [vmem:[%s516 + $0xd9] sm:$0xff] %vm261, %v502
        %536 = vst.msk [vmem:[%s516 + $0xe1] sm:$0xff] %vm261, %v503
        %537 = vst.msk [vmem:[%s516 + $0xf1] sm:$0xff] %vm261, %v504
        %538 = vst.msk [vmem:[%s516 + $0xf9] sm:$0xff] %vm261, %v505
        %539 = vst.msk [vmem:[%s516 + $0x109] sm:$0xff] %vm261, %v506
        %540 = vst.msk [vmem:[%s516 + $0x111] sm:$0xff] %vm261, %v507
        %541 = vst.msk [vmem:[%s516 + $0x121] sm:$0xff] %vm261, %v508
        %542 = vst.msk [vmem:[%s516 + $0x129] sm:$0xff] %vm261, %v509
        %543 = vst.msk [vmem:[%s516 + $0x139] sm:$0xff] %vm261, %v510
        %544 = vst.msk [vmem:[%s516 + $0x141] sm:$0xff] %vm261, %v511
        %545 = vst.msk [vmem:[%s516 + $0x151] sm:$0xff] %vm261, %v512
        %546 = vst.msk [vmem:[%s516 + $0x159] sm:$0xff] %vm261, %v513
        %547 = vst.msk [vmem:[%s516 + $0x169] sm:$0xff] %vm261, %v514
        %548 = vst.msk [vmem:[%s516 + $0x171] sm:$0xff] %vm261, %v515
        %v549 = vld [vmem:[#allocation2] sm:$0xff]
        %v550 = vld [vmem:[#allocation2 + $0x8] sm:$0xff]
        %v551 = vld [vmem:[#allocation2 + $0x10] sm:$0x3]
        %v552 = vld [vmem:[#allocation2 + $0x18] sm:$0xff]
        %v553 = vld [vmem:[#allocation2 + $0x20] sm:$0xff]
        %v554 = vld [vmem:[#allocation2 + $0x28] sm:$0x3]
        %v555 = vld [vmem:[#allocation2 + $0x30] sm:$0xff]
        %v556 = vld [vmem:[#allocation2 + $0x38] sm:$0xff]
        %v557 = vld [vmem:[#allocation2 + $0x40] sm:$0x3]
        %v558 = vld [vmem:[#allocation2 + $0x48] sm:$0xff]
        %v559 = vld [vmem:[#allocation2 + $0x50] sm:$0xff]
        %v560 = vld [vmem:[#allocation2 + $0x58] sm:$0x3]
        %v561 = vld [vmem:[#allocation2 + $0x60] sm:$0xff]
        %v562 = vld [vmem:[#allocation2 + $0x68] sm:$0xff]
        %v563 = vld [vmem:[#allocation2 + $0x70] sm:$0x3]
        %v564 = vld [vmem:[#allocation2 + $0x78] sm:$0xff]
        %v565 = vld [vmem:[#allocation2 + $0x80] sm:$0xff]
        %v566 = vld [vmem:[#allocation2 + $0x88] sm:$0x3]
        %v567 = vld [vmem:[#allocation2 + $0x90] sm:$0xff]
        %v568 = vld [vmem:[#allocation2 + $0x98] sm:$0xff]
        %v569 = vld [vmem:[#allocation2 + $0xa0] sm:$0x3]
        %v570 = vld [vmem:[#allocation2 + $0xa8] sm:$0xff]
        %v571 = vld [vmem:[#allocation2 + $0xb0] sm:$0xff]
        %v572 = vld [vmem:[#allocation2 + $0xb8] sm:$0x3]
        %v573 = vld [vmem:[#allocation2 + $0xc0] sm:$0xff]
        %v574 = vld [vmem:[#allocation2 + $0xc8] sm:$0xff]
        %v575 = vld [vmem:[#allocation2 + $0xd0] sm:$0x3]
        %v576 = vld [vmem:[#allocation2 + $0xd8] sm:$0xff]
        %v577 = vld [vmem:[#allocation2 + $0xe0] sm:$0xff]
        %v578 = vld [vmem:[#allocation2 + $0xe8] sm:$0x3]
        %v579 = vld [vmem:[#allocation2 + $0xf0] sm:$0xff]
        %v580 = vld [vmem:[#allocation2 + $0xf8] sm:$0xff]
        %v581 = vld [vmem:[#allocation2 + $0x100] sm:$0x3]
        %v582 = vld [vmem:[#allocation2 + $0x108] sm:$0xff]
        %v583 = vld [vmem:[#allocation2 + $0x110] sm:$0xff]
        %v584 = vld [vmem:[#allocation2 + $0x118] sm:$0x3]
        %v585 = vld [vmem:[#allocation2 + $0x120] sm:$0xff]
        %v586 = vld [vmem:[#allocation2 + $0x128] sm:$0xff]
        %v587 = vld [vmem:[#allocation2 + $0x130] sm:$0x3]
        %v588 = vld [vmem:[#allocation2 + $0x138] sm:$0xff]
        %v589 = vld [vmem:[#allocation2 + $0x140] sm:$0xff]
        %v590 = vld [vmem:[#allocation2 + $0x148] sm:$0x3]
        %v591 = vld [vmem:[#allocation2 + $0x150] sm:$0xff]
        %v592 = vld [vmem:[#allocation2 + $0x158] sm:$0xff]
        %v593 = vld [vmem:[#allocation2 + $0x160] sm:$0x3]
        %v594 = vld [vmem:[#allocation2 + $0x168] sm:$0xff]
        %v595 = vld [vmem:[#allocation2 + $0x170] sm:$0xff]
        %v596 = vld [vmem:[#allocation2 + $0x178] sm:$0x3]
        %v597 = vld [vmem:[#allocation2 + $0x180] sm:$0xff]
        %v598 = vld [vmem:[#allocation2 + $0x188] sm:$0xff]
        %v599 = vld [vmem:[#allocation2 + $0x190] sm:$0x3]
        %v600 = vld [vmem:[#allocation2 + $0x198] sm:$0xff]
        %v601 = vld [vmem:[#allocation2 + $0x1a0] sm:$0xff]
        %v602 = vld [vmem:[#allocation2 + $0x1a8] sm:$0x3]
        %vm657 = vcmask 1046528
        %v658 = vrot.slane %v549, 1
        %v659 = vrot.slane %v550, 1
        %v660 = vsel %vm657, %v658, %v659
        %v661 = vrot.slane %v551, 1
        %v662 = vsel %vm657, %v659, %v661
        %v663 = vrot.slane %v552, 1
        %v664 = vrot.slane %v553, 1
        %v665 = vsel %vm657, %v663, %v664
        %v666 = vrot.slane %v554, 1
        %v667 = vsel %vm657, %v664, %v666
        %v668 = vrot.slane %v555, 1
        %v669 = vrot.slane %v556, 1
        %v670 = vsel %vm657, %v668, %v669
        %v671 = vrot.slane %v557, 1
        %v672 = vsel %vm657, %v669, %v671
        %v673 = vrot.slane %v558, 1
        %v674 = vrot.slane %v559, 1
        %v675 = vsel %vm657, %v673, %v674
        %v676 = vrot.slane %v560, 1
        %v677 = vsel %vm657, %v674, %v676
        %v678 = vrot.slane %v561, 1
        %v679 = vrot.slane %v562, 1
        %v680 = vsel %vm657, %v678, %v679
        %v681 = vrot.slane %v563, 1
        %v682 = vsel %vm657, %v679, %v681
        %v683 = vrot.slane %v564, 1
        %v684 = vrot.slane %v565, 1
        %v685 = vsel %vm657, %v683, %v684
        %v686 = vrot.slane %v566, 1
        %v687 = vsel %vm657, %v684, %v686
        %v688 = vrot.slane %v567, 1
        %v689 = vrot.slane %v568, 1
        %v690 = vsel %vm657, %v688, %v689
        %v691 = vrot.slane %v569, 1
        %v692 = vsel %vm657, %v689, %v691
        %v693 = vrot.slane %v570, 1
        %v694 = vrot.slane %v571, 1
        %v695 = vsel %vm657, %v693, %v694
        %v696 = vrot.slane %v572, 1
        %v697 = vsel %vm657, %v694, %v696
        %v698 = vrot.slane %v573, 1
        %v699 = vrot.slane %v574, 1
        %v700 = vsel %vm657, %v698, %v699
        %v701 = vrot.slane %v575, 1
        %v702 = vsel %vm657, %v699, %v701
        %v703 = vrot.slane %v576, 1
        %v704 = vrot.slane %v577, 1
        %v705 = vsel %vm657, %v703, %v704
        %v706 = vrot.slane %v578, 1
        %v707 = vsel %vm657, %v704, %v706
        %v708 = vrot.slane %v579, 1
        %v709 = vrot.slane %v580, 1
        %v710 = vsel %vm657, %v708, %v709
        %v711 = vrot.slane %v581, 1
        %v712 = vsel %vm657, %v709, %v711
        %v713 = vrot.slane %v582, 1
        %v714 = vrot.slane %v583, 1
        %v715 = vsel %vm657, %v713, %v714
        %v716 = vrot.slane %v584, 1
        %v717 = vsel %vm657, %v714, %v716
        %v718 = vrot.slane %v585, 1
        %v719 = vrot.slane %v586, 1
        %v720 = vsel %vm657, %v718, %v719
        %v721 = vrot.slane %v587, 1
        %v722 = vsel %vm657, %v719, %v721
        %v723 = vrot.slane %v588, 1
        %v724 = vrot.slane %v589, 1
        %v725 = vsel %vm657, %v723, %v724
        %v726 = vrot.slane %v590, 1
        %v727 = vsel %vm657, %v724, %v726
        %v728 = vrot.slane %v591, 1
        %v729 = vrot.slane %v592, 1
        %v730 = vsel %vm657, %v728, %v729
        %v731 = vrot.slane %v593, 1
        %v732 = vsel %vm657, %v729, %v731
        %v733 = vrot.slane %v594, 1
        %v734 = vrot.slane %v595, 1
        %v735 = vsel %vm657, %v733, %v734
        %v736 = vrot.slane %v596, 1
        %v737 = vsel %vm657, %v734, %v736
        %v738 = vrot.slane %v597, 1
        %v739 = vrot.slane %v598, 1
        %v740 = vsel %vm657, %v738, %v739
        %v741 = vrot.slane %v599, 1
        %v742 = vsel %vm657, %v739, %v741
        %v743 = vrot.slane %v600, 1
        %v744 = vrot.slane %v601, 1
        %v745 = vsel %vm657, %v743, %v744
        %v746 = vrot.slane %v602, 1
        %v747 = vsel %vm657, %v744, %v746
        %vm748 = vcmask 1045504
        %v749 = vrot.slane %v549, 2
        %v750 = vrot.slane %v550, 2
        %v751 = vsel %vm748, %v749, %v750
        %v752 = vrot.slane %v551, 2
        %v753 = vsel %vm748, %v750, %v752
        %v754 = vrot.slane %v552, 2
        %v755 = vrot.slane %v553, 2
        %v756 = vsel %vm748, %v754, %v755
        %v757 = vrot.slane %v554, 2
        %v758 = vsel %vm748, %v755, %v757
        %v759 = vrot.slane %v555, 2
        %v760 = vrot.slane %v556, 2
        %v761 = vsel %vm748, %v759, %v760
        %v762 = vrot.slane %v557, 2
        %v763 = vsel %vm748, %v760, %v762
        %v764 = vrot.slane %v558, 2
        %v765 = vrot.slane %v559, 2
        %v766 = vsel %vm748, %v764, %v765
        %v767 = vrot.slane %v560, 2
        %v768 = vsel %vm748, %v765, %v767
        %v769 = vrot.slane %v561, 2
        %v770 = vrot.slane %v562, 2
        %v771 = vsel %vm748, %v769, %v770
        %v772 = vrot.slane %v563, 2
        %v773 = vsel %vm748, %v770, %v772
        %v774 = vrot.slane %v564, 2
        %v775 = vrot.slane %v565, 2
        %v776 = vsel %vm748, %v774, %v775
        %v777 = vrot.slane %v566, 2
        %v778 = vsel %vm748, %v775, %v777
        %v779 = vrot.slane %v567, 2
        %v780 = vrot.slane %v568, 2
        %v781 = vsel %vm748, %v779, %v780
        %v782 = vrot.slane %v569, 2
        %v783 = vsel %vm748, %v780, %v782
        %v784 = vrot.slane %v570, 2
        %v785 = vrot.slane %v571, 2
        %v786 = vsel %vm748, %v784, %v785
        %v787 = vrot.slane %v572, 2
        %v788 = vsel %vm748, %v785, %v787
        %v789 = vrot.slane %v573, 2
        %v790 = vrot.slane %v574, 2
        %v791 = vsel %vm748, %v789, %v790
        %v792 = vrot.slane %v575, 2
        %v793 = vsel %vm748, %v790, %v792
        %v794 = vrot.slane %v576, 2
        %v795 = vrot.slane %v577, 2
        %v796 = vsel %vm748, %v794, %v795
        %v797 = vrot.slane %v578, 2
        %v798 = vsel %vm748, %v795, %v797
        %v799 = vrot.slane %v579, 2
        %v800 = vrot.slane %v580, 2
        %v801 = vsel %vm748, %v799, %v800
        %v802 = vrot.slane %v581, 2
        %v803 = vsel %vm748, %v800, %v802
        %v804 = vrot.slane %v582, 2
        %v805 = vrot.slane %v583, 2
        %v806 = vsel %vm748, %v804, %v805
        %v807 = vrot.slane %v584, 2
        %v808 = vsel %vm748, %v805, %v807
        %v809 = vrot.slane %v585, 2
        %v810 = vrot.slane %v586, 2
        %v811 = vsel %vm748, %v809, %v810
        %v812 = vrot.slane %v587, 2
        %v813 = vsel %vm748, %v810, %v812
        %v814 = vrot.slane %v588, 2
        %v815 = vrot.slane %v589, 2
        %v816 = vsel %vm748, %v814, %v815
        %v817 = vrot.slane %v590, 2
        %v818 = vsel %vm748, %v815, %v817
        %v819 = vrot.slane %v591, 2
        %v820 = vrot.slane %v592, 2
        %v821 = vsel %vm748, %v819, %v820
        %v822 = vrot.slane %v593, 2
        %v823 = vsel %vm748, %v820, %v822
        %v824 = vrot.slane %v594, 2
        %v825 = vrot.slane %v595, 2
        %v826 = vsel %vm748, %v824, %v825
        %v827 = vrot.slane %v596, 2
        %v828 = vsel %vm748, %v825, %v827
        %v829 = vrot.slane %v597, 2
        %v830 = vrot.slane %v598, 2
        %v831 = vsel %vm748, %v829, %v830
        %v832 = vrot.slane %v599, 2
        %v833 = vsel %vm748, %v830, %v832
        %v834 = vrot.slane %v600, 2
        %v835 = vrot.slane %v601, 2
        %v836 = vsel %vm748, %v834, %v835
        %v837 = vrot.slane %v602, 2
        %v838 = vsel %vm748, %v835, %v837
        %839 = vrot.lane.b32.xlu0 %v660, 4
        %v840 = vpop.permute.xlu0 %839
        %841 = vrot.lane.b32.xlu0 %v662, 4
        %v842 = vpop.permute.xlu0 %841
        %843 = vrot.lane.b32.xlu0 %v665, 4
        %v844 = vpop.permute.xlu0 %843
        %845 = vrot.lane.b32.xlu0 %v667, 4
        %v846 = vpop.permute.xlu0 %845
        %847 = vrot.lane.b32.xlu0 %v670, 4
        %v848 = vpop.permute.xlu0 %847
        %849 = vrot.lane.b32.xlu0 %v672, 4
        %v850 = vpop.permute.xlu0 %849
        %851 = vrot.lane.b32.xlu0 %v675, 4
        %v852 = vpop.permute.xlu0 %851
        %853 = vrot.lane.b32.xlu0 %v677, 4
        %v854 = vpop.permute.xlu0 %853
        %855 = vrot.lane.b32.xlu0 %v680, 4
        %v856 = vpop.permute.xlu0 %855
        %857 = vrot.lane.b32.xlu0 %v682, 4
        %v858 = vpop.permute.xlu0 %857
        %859 = vrot.lane.b32.xlu0 %v685, 4
        %v860 = vpop.permute.xlu0 %859
        %861 = vrot.lane.b32.xlu0 %v687, 4
        %v862 = vpop.permute.xlu0 %861
        %863 = vrot.lane.b32.xlu0 %v690, 4
        %v864 = vpop.permute.xlu0 %863
        %865 = vrot.lane.b32.xlu0 %v692, 4
        %v866 = vpop.permute.xlu0 %865
        %867 = vrot.lane.b32.xlu0 %v695, 4
        %v868 = vpop.permute.xlu0 %867
        %869 = vrot.lane.b32.xlu0 %v697, 4
        %v870 = vpop.permute.xlu0 %869
        %871 = vrot.lane.b32.xlu0 %v700, 4
        %v872 = vpop.permute.xlu0 %871
        %873 = vrot.lane.b32.xlu0 %v702, 4
        %v874 = vpop.permute.xlu0 %873
        %875 = vrot.lane.b32.xlu0 %v705, 4
        %v876 = vpop.permute.xlu0 %875
        %877 = vrot.lane.b32.xlu0 %v707, 4
        %v878 = vpop.permute.xlu0 %877
        %879 = vrot.lane.b32.xlu0 %v710, 4
        %v880 = vpop.permute.xlu0 %879
        %881 = vrot.lane.b32.xlu0 %v712, 4
        %v882 = vpop.permute.xlu0 %881
        %883 = vrot.lane.b32.xlu0 %v715, 4
        %v884 = vpop.permute.xlu0 %883
        %885 = vrot.lane.b32.xlu0 %v717, 4
        %v886 = vpop.permute.xlu0 %885
        %887 = vrot.lane.b32.xlu0 %v720, 4
        %v888 = vpop.permute.xlu0 %887
        %889 = vrot.lane.b32.xlu0 %v722, 4
        %v890 = vpop.permute.xlu0 %889
        %891 = vrot.lane.b32.xlu0 %v725, 4
        %v892 = vpop.permute.xlu0 %891
        %893 = vrot.lane.b32.xlu0 %v727, 4
        %v894 = vpop.permute.xlu0 %893
        %895 = vrot.lane.b32.xlu0 %v730, 4
        %v896 = vpop.permute.xlu0 %895
        %897 = vrot.lane.b32.xlu0 %v732, 4
        %v898 = vpop.permute.xlu0 %897
        %899 = vrot.lane.b32.xlu0 %v735, 4
        %v900 = vpop.permute.xlu0 %899
        %901 = vrot.lane.b32.xlu0 %v737, 4
        %v902 = vpop.permute.xlu0 %901
        %903 = vrot.lane.b32.xlu0 %v740, 4
        %v904 = vpop.permute.xlu0 %903
        %905 = vrot.lane.b32.xlu0 %v742, 4
        %v906 = vpop.permute.xlu0 %905
        %907 = vrot.lane.b32.xlu0 %v745, 4
        %v908 = vpop.permute.xlu0 %907
        %909 = vrot.lane.b32.xlu0 %v747, 4
        %v910 = vpop.permute.xlu0 %909
        %947 = vrot.lane.b32.xlu0 %v751, 8
        %v948 = vpop.permute.xlu0 %947
        %949 = vrot.lane.b32.xlu0 %v753, 8
        %v950 = vpop.permute.xlu0 %949
        %951 = vrot.lane.b32.xlu0 %v756, 8
        %v952 = vpop.permute.xlu0 %951
        %953 = vrot.lane.b32.xlu0 %v758, 8
        %v954 = vpop.permute.xlu0 %953
        %955 = vrot.lane.b32.xlu0 %v761, 8
        %v956 = vpop.permute.xlu0 %955
        %957 = vrot.lane.b32.xlu0 %v763, 8
        %v958 = vpop.permute.xlu0 %957
        %959 = vrot.lane.b32.xlu0 %v766, 8
        %v960 = vpop.permute.xlu0 %959
        %961 = vrot.lane.b32.xlu0 %v768, 8
        %v962 = vpop.permute.xlu0 %961
        %963 = vrot.lane.b32.xlu0 %v771, 8
        %v964 = vpop.permute.xlu0 %963
        %965 = vrot.lane.b32.xlu0 %v773, 8
        %v966 = vpop.permute.xlu0 %965
        %967 = vrot.lane.b32.xlu0 %v776, 8
        %v968 = vpop.permute.xlu0 %967
        %969 = vrot.lane.b32.xlu0 %v778, 8
        %v970 = vpop.permute.xlu0 %969
        %971 = vrot.lane.b32.xlu0 %v781, 8
        %v972 = vpop.permute.xlu0 %971
        %973 = vrot.lane.b32.xlu0 %v783, 8
        %v974 = vpop.permute.xlu0 %973
        %975 = vrot.lane.b32.xlu0 %v786, 8
        %v976 = vpop.permute.xlu0 %975
        %977 = vrot.lane.b32.xlu0 %v788, 8
        %v978 = vpop.permute.xlu0 %977
        %979 = vrot.lane.b32.xlu0 %v791, 8
        %v980 = vpop.permute.xlu0 %979
        %981 = vrot.lane.b32.xlu0 %v793, 8
        %v982 = vpop.permute.xlu0 %981
        %983 = vrot.lane.b32.xlu0 %v796, 8
        %v984 = vpop.permute.xlu0 %983
        %985 = vrot.lane.b32.xlu0 %v798, 8
        %v986 = vpop.permute.xlu0 %985
        %987 = vrot.lane.b32.xlu0 %v801, 8
        %v988 = vpop.permute.xlu0 %987
        %989 = vrot.lane.b32.xlu0 %v803, 8
        %v990 = vpop.permute.xlu0 %989
        %991 = vrot.lane.b32.xlu0 %v806, 8
        %v992 = vpop.permute.xlu0 %991
        %993 = vrot.lane.b32.xlu0 %v808, 8
        %v994 = vpop.permute.xlu0 %993
        %995 = vrot.lane.b32.xlu0 %v811, 8
        %v996 = vpop.permute.xlu0 %995
        %997 = vrot.lane.b32.xlu0 %v813, 8
        %v998 = vpop.permute.xlu0 %997
        %999 = vrot.lane.b32.xlu0 %v816, 8
        %v1000 = vpop.permute.xlu0 %999
        %1001 = vrot.lane.b32.xlu0 %v818, 8
        %v1002 = vpop.permute.xlu0 %1001
        %1003 = vrot.lane.b32.xlu0 %v821, 8
        %v1004 = vpop.permute.xlu0 %1003
        %1005 = vrot.lane.b32.xlu0 %v823, 8
        %v1006 = vpop.permute.xlu0 %1005
        %1007 = vrot.lane.b32.xlu0 %v826, 8
        %v1008 = vpop.permute.xlu0 %1007
        %1009 = vrot.lane.b32.xlu0 %v828, 8
        %v1010 = vpop.permute.xlu0 %1009
        %1011 = vrot.lane.b32.xlu0 %v831, 8
        %v1012 = vpop.permute.xlu0 %1011
        %1013 = vrot.lane.b32.xlu0 %v833, 8
        %v1014 = vpop.permute.xlu0 %1013
        %1015 = vrot.lane.b32.xlu0 %v836, 8
        %v1016 = vpop.permute.xlu0 %1015
        %1017 = vrot.lane.b32.xlu0 %v838, 8
        %v1018 = vpop.permute.xlu0 %1017
        %v1055 = vsel %vm261, %v549, %v840
        %v1056 = vsel %vm261, %v550, %v842
        %v1057 = vsel %vm261, %v552, %v844
        %v1058 = vsel %vm261, %v553, %v846
        %v1059 = vsel %vm261, %v555, %v848
        %v1060 = vsel %vm261, %v556, %v850
        %v1061 = vsel %vm261, %v558, %v852
        %v1062 = vsel %vm261, %v559, %v854
        %v1063 = vsel %vm261, %v561, %v856
        %v1064 = vsel %vm261, %v562, %v858
        %v1065 = vsel %vm261, %v564, %v860
        %v1066 = vsel %vm261, %v565, %v862
        %v1067 = vsel %vm261, %v567, %v864
        %v1068 = vsel %vm261, %v568, %v866
        %v1069 = vsel %vm261, %v570, %v868
        %v1070 = vsel %vm261, %v571, %v870
        %v1071 = vsel %vm261, %v573, %v872
        %v1072 = vsel %vm261, %v574, %v874
        %v1073 = vsel %vm261, %v576, %v876
        %v1074 = vsel %vm261, %v577, %v878
        %v1075 = vsel %vm261, %v579, %v880
        %v1076 = vsel %vm261, %v580, %v882
        %v1077 = vsel %vm261, %v582, %v884
        %v1078 = vsel %vm261, %v583, %v886
        %v1079 = vsel %vm261, %v585, %v888
        %v1080 = vsel %vm261, %v586, %v890
        %v1081 = vsel %vm261, %v588, %v892
        %v1082 = vsel %vm261, %v589, %v894
        %v1083 = vsel %vm261, %v591, %v896
        %v1084 = vsel %vm261, %v592, %v898
        %v1085 = vsel %vm261, %v594, %v900
        %v1086 = vsel %vm261, %v595, %v902
        %v1087 = vsel %vm261, %v597, %v904
        %v1088 = vsel %vm261, %v598, %v906
        %v1089 = vsel %vm261, %v600, %v908
        %v1090 = vsel %vm261, %v601, %v910
        %vm1091 = vcmask 64512
        %v1092 = vsel %vm1091, %v1055, %v948
        %v1093 = vsel %vm1091, %v1056, %v950
        %v1094 = vsel %vm1091, %v1057, %v952
        %v1095 = vsel %vm1091, %v1058, %v954
        %v1096 = vsel %vm1091, %v1059, %v956
        %v1097 = vsel %vm1091, %v1060, %v958
        %v1098 = vsel %vm1091, %v1061, %v960
        %v1099 = vsel %vm1091, %v1062, %v962
        %v1100 = vsel %vm1091, %v1063, %v964
        %v1101 = vsel %vm1091, %v1064, %v966
        %v1102 = vsel %vm1091, %v1065, %v968
        %v1103 = vsel %vm1091, %v1066, %v970
        %v1104 = vsel %vm1091, %v1067, %v972
        %v1105 = vsel %vm1091, %v1068, %v974
        %v1106 = vsel %vm1091, %v1069, %v976
        %v1107 = vsel %vm1091, %v1070, %v978
        %v1108 = vsel %vm1091, %v1071, %v980
        %v1109 = vsel %vm1091, %v1072, %v982
        %v1110 = vsel %vm1091, %v1073, %v984
        %v1111 = vsel %vm1091, %v1074, %v986
        %v1112 = vsel %vm1091, %v1075, %v988
        %v1113 = vsel %vm1091, %v1076, %v990
        %v1114 = vsel %vm1091, %v1077, %v992
        %v1115 = vsel %vm1091, %v1078, %v994
        %v1116 = vsel %vm1091, %v1079, %v996
        %v1117 = vsel %vm1091, %v1080, %v998
        %v1118 = vsel %vm1091, %v1081, %v1000
        %v1119 = vsel %vm1091, %v1082, %v1002
        %v1120 = vsel %vm1091, %v1083, %v1004
        %v1121 = vsel %vm1091, %v1084, %v1006
        %v1122 = vsel %vm1091, %v1085, %v1008
        %v1123 = vsel %vm1091, %v1086, %v1010
        %v1124 = vsel %vm1091, %v1087, %v1012
        %v1125 = vsel %vm1091, %v1088, %v1014
        %v1126 = vsel %vm1091, %v1089, %v1016
        %v1127 = vsel %vm1091, %v1090, %v1018
        %1160 = vrot.lane.b32.xlu0 %v1094, 12
        %v1161 = vpop.permute.xlu0 %1160
        %1162 = vrot.lane.b32.xlu0 %v1095, 12
        %v1163 = vpop.permute.xlu0 %1162
        %1164 = vrot.lane.b32.xlu0 %v1096, 12
        %v1165 = vpop.permute.xlu0 %1164
        %1166 = vrot.lane.b32.xlu0 %v1097, 12
        %v1167 = vpop.permute.xlu0 %1166
        %1168 = vrot.lane.b32.xlu0 %v1098, 12
        %v1169 = vpop.permute.xlu0 %1168
        %1170 = vrot.lane.b32.xlu0 %v1099, 12
        %v1171 = vpop.permute.xlu0 %1170
        %1172 = vrot.lane.b32.xlu0 %v1100, 12
        %v1173 = vpop.permute.xlu0 %1172
        %1174 = vrot.lane.b32.xlu0 %v1101, 12
        %v1175 = vpop.permute.xlu0 %1174
        %1176 = vrot.lane.b32.xlu0 %v1102, 12
        %v1177 = vpop.permute.xlu0 %1176
        %1178 = vrot.lane.b32.xlu0 %v1103, 12
        %v1179 = vpop.permute.xlu0 %1178
        %1180 = vrot.lane.b32.xlu0 %v1104, 12
        %v1181 = vpop.permute.xlu0 %1180
        %1182 = vrot.lane.b32.xlu0 %v1105, 12
        %v1183 = vpop.permute.xlu0 %1182
        %1184 = vrot.lane.b32.xlu0 %v1106, 12
        %v1185 = vpop.permute.xlu0 %1184
        %1186 = vrot.lane.b32.xlu0 %v1107, 12
        %v1187 = vpop.permute.xlu0 %1186
        %1188 = vrot.lane.b32.xlu0 %v1108, 12
        %v1189 = vpop.permute.xlu0 %1188
        %1190 = vrot.lane.b32.xlu0 %v1109, 12
        %v1191 = vpop.permute.xlu0 %1190
        %1192 = vrot.lane.b32.xlu0 %v1110, 12
        %v1193 = vpop.permute.xlu0 %1192
        %1194 = vrot.lane.b32.xlu0 %v1111, 12
        %v1195 = vpop.permute.xlu0 %1194
        %1196 = vrot.lane.b32.xlu0 %v1112, 12
        %v1197 = vpop.permute.xlu0 %1196
        %1198 = vrot.lane.b32.xlu0 %v1113, 12
        %v1199 = vpop.permute.xlu0 %1198
        %1200 = vrot.lane.b32.xlu0 %v1114, 12
        %v1201 = vpop.permute.xlu0 %1200
        %1202 = vrot.lane.b32.xlu0 %v1115, 12
        %v1203 = vpop.permute.xlu0 %1202
        %1204 = vrot.lane.b32.xlu0 %v1116, 12
        %v1205 = vpop.permute.xlu0 %1204
        %1206 = vrot.lane.b32.xlu0 %v1117, 12
        %v1207 = vpop.permute.xlu0 %1206
        %1208 = vrot.lane.b32.xlu0 %v1118, 12
        %v1209 = vpop.permute.xlu0 %1208
        %1210 = vrot.lane.b32.xlu0 %v1119, 12
        %v1211 = vpop.permute.xlu0 %1210
        %1212 = vrot.lane.b32.xlu0 %v1120, 12
        %v1213 = vpop.permute.xlu0 %1212
        %1214 = vrot.lane.b32.xlu0 %v1121, 12
        %v1215 = vpop.permute.xlu0 %1214
        %1216 = vrot.lane.b32.xlu0 %v1122, 12
        %v1217 = vpop.permute.xlu0 %1216
        %1218 = vrot.lane.b32.xlu0 %v1123, 12
        %v1219 = vpop.permute.xlu0 %1218
        %1220 = vrot.lane.b32.xlu0 %v1124, 12
        %v1221 = vpop.permute.xlu0 %1220
        %1222 = vrot.lane.b32.xlu0 %v1125, 12
        %v1223 = vpop.permute.xlu0 %1222
        %1258 = vrot.lane.b32.xlu0 %v1096, 24
        %v1259 = vpop.permute.xlu0 %1258
        %1260 = vrot.lane.b32.xlu0 %v1097, 24
        %v1261 = vpop.permute.xlu0 %1260
        %1262 = vrot.lane.b32.xlu0 %v1098, 24
        %v1263 = vpop.permute.xlu0 %1262
        %1264 = vrot.lane.b32.xlu0 %v1099, 24
        %v1265 = vpop.permute.xlu0 %1264
        %1266 = vrot.lane.b32.xlu0 %v1100, 24
        %v1267 = vpop.permute.xlu0 %1266
        %1268 = vrot.lane.b32.xlu0 %v1101, 24
        %v1269 = vpop.permute.xlu0 %1268
        %1270 = vrot.lane.b32.xlu0 %v1102, 24
        %v1271 = vpop.permute.xlu0 %1270
        %1272 = vrot.lane.b32.xlu0 %v1103, 24
        %v1273 = vpop.permute.xlu0 %1272
        %1274 = vrot.lane.b32.xlu0 %v1104, 24
        %v1275 = vpop.permute.xlu0 %1274
        %1276 = vrot.lane.b32.xlu0 %v1105, 24
        %v1277 = vpop.permute.xlu0 %1276
        %1278 = vrot.lane.b32.xlu0 %v1106, 24
        %v1279 = vpop.permute.xlu0 %1278
        %1280 = vrot.lane.b32.xlu0 %v1107, 24
        %v1281 = vpop.permute.xlu0 %1280
        %1282 = vrot.lane.b32.xlu0 %v1108, 24
        %v1283 = vpop.permute.xlu0 %1282
        %1284 = vrot.lane.b32.xlu0 %v1109, 24
        %v1285 = vpop.permute.xlu0 %1284
        %1286 = vrot.lane.b32.xlu0 %v1110, 24
        %v1287 = vpop.permute.xlu0 %1286
        %1288 = vrot.lane.b32.xlu0 %v1111, 24
        %v1289 = vpop.permute.xlu0 %1288
        %1290 = vrot.lane.b32.xlu0 %v1112, 24
        %v1291 = vpop.permute.xlu0 %1290
        %1292 = vrot.lane.b32.xlu0 %v1113, 24
        %v1293 = vpop.permute.xlu0 %1292
        %1294 = vrot.lane.b32.xlu0 %v1114, 24
        %v1295 = vpop.permute.xlu0 %1294
        %1296 = vrot.lane.b32.xlu0 %v1115, 24
        %v1297 = vpop.permute.xlu0 %1296
        %1298 = vrot.lane.b32.xlu0 %v1116, 24
        %v1299 = vpop.permute.xlu0 %1298
        %1300 = vrot.lane.b32.xlu0 %v1117, 24
        %v1301 = vpop.permute.xlu0 %1300
        %1302 = vrot.lane.b32.xlu0 %v1118, 24
        %v1303 = vpop.permute.xlu0 %1302
        %1304 = vrot.lane.b32.xlu0 %v1119, 24
        %v1305 = vpop.permute.xlu0 %1304
        %1306 = vrot.lane.b32.xlu0 %v1120, 24
        %v1307 = vpop.permute.xlu0 %1306
        %1308 = vrot.lane.b32.xlu0 %v1121, 24
        %v1309 = vpop.permute.xlu0 %1308
        %1310 = vrot.lane.b32.xlu0 %v1122, 24
        %v1311 = vpop.permute.xlu0 %1310
        %1312 = vrot.lane.b32.xlu0 %v1123, 24
        %v1313 = vpop.permute.xlu0 %1312
        %1314 = vrot.lane.b32.xlu0 %v1124, 24
        %v1315 = vpop.permute.xlu0 %1314
        %1316 = vrot.lane.b32.xlu0 %v1125, 24
        %v1317 = vpop.permute.xlu0 %1316
        %1318 = vrot.lane.b32.xlu0 %v1126, 24
        %v1319 = vpop.permute.xlu0 %1318
        %1320 = vrot.lane.b32.xlu0 %v1127, 24
        %v1321 = vpop.permute.xlu0 %1320
        %vm1354 = vcmask 97280
        %v1355 = vsel %vm1354, %v1092, %v1161
        %v1356 = vsel %vm1354, %v1093, %v1163
        %v1357 = vsel %vm1354, %v1094, %v1165
        %v1358 = vsel %vm1354, %v1095, %v1167
        %v1359 = vsel %vm1354, %v1096, %v1169
        %v1360 = vsel %vm1354, %v1097, %v1171
        %v1361 = vsel %vm1354, %v1098, %v1173
        %v1362 = vsel %vm1354, %v1099, %v1175
        %v1363 = vsel %vm1354, %v1100, %v1177
        %v1364 = vsel %vm1354, %v1101, %v1179
        %v1365 = vsel %vm1354, %v1102, %v1181
        %v1366 = vsel %vm1354, %v1103, %v1183
        %v1367 = vsel %vm1354, %v1104, %v1185
        %v1368 = vsel %vm1354, %v1105, %v1187
        %v1369 = vsel %vm1354, %v1106, %v1189
        %v1370 = vsel %vm1354, %v1107, %v1191
        %v1371 = vsel %vm1354, %v1108, %v1193
        %v1372 = vsel %vm1354, %v1109, %v1195
        %v1373 = vsel %vm1354, %v1110, %v1197
        %v1374 = vsel %vm1354, %v1111, %v1199
        %v1375 = vsel %vm1354, %v1112, %v1201
        %v1376 = vsel %vm1354, %v1113, %v1203
        %v1377 = vsel %vm1354, %v1114, %v1205
        %v1378 = vsel %vm1354, %v1115, %v1207
        %v1379 = vsel %vm1354, %v1116, %v1209
        %v1380 = vsel %vm1354, %v1117, %v1211
        %v1381 = vsel %vm1354, %v1118, %v1213
        %v1382 = vsel %vm1354, %v1119, %v1215
        %v1383 = vsel %vm1354, %v1120, %v1217
        %v1384 = vsel %vm1354, %v1121, %v1219
        %v1385 = vsel %vm1354, %v1122, %v1221
        %v1386 = vsel %vm1354, %v1123, %v1223
        %vm1387 = vcmask 195584
        %v1388 = vsel %vm1387, %v1355, %v1259
        %v1389 = vsel %vm1387, %v1356, %v1261
        %v1390 = vsel %vm1387, %v1357, %v1263
        %v1391 = vsel %vm1387, %v1358, %v1265
        %v1392 = vsel %vm1387, %v1359, %v1267
        %v1393 = vsel %vm1387, %v1360, %v1269
        %v1394 = vsel %vm1387, %v1361, %v1271
        %v1395 = vsel %vm1387, %v1362, %v1273
        %v1396 = vsel %vm1387, %v1363, %v1275
        %v1397 = vsel %vm1387, %v1364, %v1277
        %v1398 = vsel %vm1387, %v1365, %v1279
        %v1399 = vsel %vm1387, %v1366, %v1281
        %v1400 = vsel %vm1387, %v1367, %v1283
        %v1401 = vsel %vm1387, %v1368, %v1285
        %v1402 = vsel %vm1387, %v1369, %v1287
        %v1403 = vsel %vm1387, %v1370, %v1289
        %v1404 = vsel %vm1387, %v1371, %v1291
        %v1405 = vsel %vm1387, %v1372, %v1293
        %v1406 = vsel %vm1387, %v1373, %v1295
        %v1407 = vsel %vm1387, %v1374, %v1297
        %v1408 = vsel %vm1387, %v1375, %v1299
        %v1409 = vsel %vm1387, %v1376, %v1301
        %v1410 = vsel %vm1387, %v1377, %v1303
        %v1411 = vsel %vm1387, %v1378, %v1305
        %v1412 = vsel %vm1387, %v1379, %v1307
        %v1413 = vsel %vm1387, %v1380, %v1309
        %v1414 = vsel %vm1387, %v1381, %v1311
        %v1415 = vsel %vm1387, %v1382, %v1313
        %v1416 = vsel %vm1387, %v1383, %v1315
        %v1417 = vsel %vm1387, %v1384, %v1317
        %v1418 = vsel %vm1387, %v1385, %v1319
        %v1419 = vsel %vm1387, %v1386, %v1321
        %v1420 = vpack.c.bf16 %v1389, %v1388
        %v1421 = vpack.c.bf16 %v1391, %v1390
        %v1422 = vpack.c.bf16 %v1393, %v1392
        %v1423 = vpack.c.bf16 %v1395, %v1394
        %v1424 = vpack.c.bf16 %v1397, %v1396
        %v1425 = vpack.c.bf16 %v1399, %v1398
        %v1426 = vpack.c.bf16 %v1401, %v1400
        %v1427 = vpack.c.bf16 %v1403, %v1402
        %v1428 = vpack.c.bf16 %v1405, %v1404
        %v1429 = vpack.c.bf16 %v1407, %v1406
        %v1430 = vpack.c.bf16 %v1409, %v1408
        %v1431 = vpack.c.bf16 %v1411, %v1410
        %v1432 = vpack.c.bf16 %v1413, %v1412
        %v1433 = vpack.c.bf16 %v1415, %v1414
        %v1434 = vpack.c.bf16 %v1417, %v1416
        %v1435 = vpack.c.bf16 %v1419, %v1418
        %vm1436 = vcmask 293888
        %v1438 = vsel %vm1436, %v1420, 0
        %v1441 = vsel %vm1436, %v1421, 0
        %v1444 = vsel %vm1436, %v1422, 0
        %v1447 = vsel %vm1436, %v1423, 0
        %v1450 = vsel %vm1436, %v1424, 0
        %v1453 = vsel %vm1436, %v1425, 0
        %v1456 = vsel %vm1436, %v1426, 0
        %v1459 = vsel %vm1436, %v1427, 0
        %v1462 = vsel %vm1436, %v1428, 0
        %v1465 = vsel %vm1436, %v1429, 0
        %v1468 = vsel %vm1436, %v1430, 0
        %v1471 = vsel %vm1436, %v1431, 0
        %v1474 = vsel %vm1436, %v1432, 0
        %v1477 = vsel %vm1436, %v1433, 0
        %v1480 = vsel %vm1436, %v1434, 0
        %v1483 = vsel %vm1436, %v1435, 0
        %vm1485 = vcmask 1041408
        %v1487 = vsel %vm1485, %v396, 0
        %1489 = vmatprep.subr.bf16.mxu0 0
        %1490 = vmatpush1.bf16.msra.mxu0 %v394
        %1491 = vmatprep.subr.bf16.mxu0 0
        %1492 = vmatpush1.bf16.msra.mxu0 %v395
        %1493 = vmatprep.subr.bf16.mxu0 0
        %1494 = vmatpush1.bf16.msra.mxu0 %v1487
        %1495 = vmatprep.subr.bf16.mxu0 0
        %1496 = vmatpush1.bf16.msra.mxu0 0
        %1497 = vmatprep.subr.bf16.mxu0 0
        %1498 = vmatpush1.bf16.msra.mxu0 0
        %1499 = vmatprep.subr.bf16.mxu0 0
        %1500 = vmatpush1.bf16.msra.mxu0 0
        %1501 = vmatprep.subr.bf16.mxu0 0
        %1502 = vmatpush1.bf16.msra.mxu0 0
        %1503 = vmatprep.subr.bf16.mxu0 0
        %1504 = vmatpush1.bf16.msra.mxu0 0
        %1505 = vmatprep.subr.bf16.mxu0 0
        %1506 = vmatpush1.bf16.msra.mxu0 0
        %1507 = vmatprep.subr.bf16.mxu0 0
        %1508 = vmatpush1.bf16.msra.mxu0 0
        %1509 = vmatprep.subr.bf16.mxu0 0
        %1510 = vmatpush1.bf16.msra.mxu0 0
        %1511 = vmatprep.subr.bf16.mxu0 0
        %1512 = vmatpush1.bf16.msra.mxu0 0
        %1513 = vmatprep.subr.bf16.mxu0 0
        %1514 = vmatpush1.bf16.msra.mxu0 0
        %1515 = vmatprep.subr.bf16.mxu0 0
        %1516 = vmatpush1.bf16.msra.mxu0 0
        %1517 = vmatprep.subr.bf16.mxu0 0
        %1518 = vmatpush1.bf16.msra.mxu0 0
        %1519 = vmatprep.subr.bf16.mxu0 0
        %1520 = vmatpush1.bf16.msra.mxu0 0
        %1521 = vmatprep.mubr.bf16.mxu0 0
        %1522 = vmatmul.mubr.bf16.gmra.mrb[0].mxu0 %v1438
        %v1523 = vpop.f32.mrb[0].mxu0
        %v1524 = vadd.f32 0.0, %v1523
        %v1525 = vpop.f32.mrb[0].mxu0
        %v1526 = vpop.f32.mrb[0].mxu0
        %v1527 = vadd.f32 0.0, %v1526
        %v1528 = vpop.f32.mrb[0].mxu0
        %1529 = vmatprep.mubr.bf16.mxu0 0
        %1530 = vmatmul.mubr.bf16.gmra.mrb[0].mxu0 %v1441
        %v1531 = vpop.f32.mrb[0].mxu0
        %v1532 = vadd.f32 0.0, %v1531
        %v1533 = vpop.f32.mrb[0].mxu0
        %v1534 = vpop.f32.mrb[0].mxu0
        %v1535 = vadd.f32 0.0, %v1534
        %v1536 = vpop.f32.mrb[0].mxu0
        %1537 = vmatprep.mubr.bf16.mxu0 0
        %1538 = vmatmul.mubr.bf16.gmra.mrb[0].mxu0 %v1444
        %v1539 = vpop.f32.mrb[0].mxu0
        %v1540 = vadd.f32 0.0, %v1539
        %v1541 = vpop.f32.mrb[0].mxu0
        %v1542 = vpop.f32.mrb[0].mxu0
        %v1543 = vadd.f32 0.0, %v1542
        %v1544 = vpop.f32.mrb[0].mxu0
        %1545 = vmatprep.mubr.bf16.mxu0 0
        %1546 = vmatmul.mubr.bf16.gmra.mrb[0].mxu0 %v1447
        %v1547 = vpop.f32.mrb[0].mxu0
        %v1548 = vadd.f32 0.0, %v1547
        %v1549 = vpop.f32.mrb[0].mxu0
        %v1550 = vpop.f32.mrb[0].mxu0
        %v1551 = vadd.f32 0.0, %v1550
        %v1552 = vpop.f32.mrb[0].mxu0
        %1553 = vmatprep.mubr.bf16.mxu0 0
        %1554 = vmatmul.mubr.bf16.gmra.mrb[0].mxu0 %v1450
        %v1555 = vpop.f32.mrb[0].mxu0
        %v1556 = vadd.f32 0.0, %v1555
        %v1557 = vpop.f32.mrb[0].mxu0
        %v1558 = vpop.f32.mrb[0].mxu0
        %v1559 = vadd.f32 0.0, %v1558
        %v1560 = vpop.f32.mrb[0].mxu0
        %1561 = vmatprep.mubr.bf16.mxu0 0
        %1562 = vmatmul.mubr.bf16.gmra.mrb[0].mxu0 %v1453
        %v1563 = vpop.f32.mrb[0].mxu0
        %v1564 = vadd.f32 0.0, %v1563
        %v1565 = vpop.f32.mrb[0].mxu0
        %v1566 = vpop.f32.mrb[0].mxu0
        %v1567 = vadd.f32 0.0, %v1566
        %v1568 = vpop.f32.mrb[0].mxu0
        %1569 = vmatprep.mubr.bf16.mxu0 0
        %1570 = vmatmul.mubr.bf16.gmra.mrb[0].mxu0 %v1456
        %v1571 = vpop.f32.mrb[0].mxu0
        %v1572 = vadd.f32 0.0, %v1571
        %v1573 = vpop.f32.mrb[0].mxu0
        %v1574 = vpop.f32.mrb[0].mxu0
        %v1575 = vadd.f32 0.0, %v1574
        %v1576 = vpop.f32.mrb[0].mxu0
        %1577 = vmatprep.mubr.bf16.mxu0 0
        %1578 = vmatmul.mubr.bf16.gmra.mrb[0].mxu0 %v1459
        %v1579 = vpop.f32.mrb[0].mxu0
        %v1580 = vadd.f32 0.0, %v1579
        %v1581 = vpop.f32.mrb[0].mxu0
        %v1582 = vpop.f32.mrb[0].mxu0
        %v1583 = vadd.f32 0.0, %v1582
        %v1584 = vpop.f32.mrb[0].mxu0
        %1585 = vmatprep.mubr.bf16.mxu0 0
        %1586 = vmatmul.mubr.bf16.gmra.mrb[0].mxu0 %v1462
        %v1587 = vpop.f32.mrb[0].mxu0
        %v1588 = vadd.f32 0.0, %v1587
        %v1589 = vpop.f32.mrb[0].mxu0
        %v1590 = vpop.f32.mrb[0].mxu0
        %v1591 = vadd.f32 0.0, %v1590
        %v1592 = vpop.f32.mrb[0].mxu0
        %1593 = vmatprep.mubr.bf16.mxu0 0
        %1594 = vmatmul.mubr.bf16.gmra.mrb[0].mxu0 %v1465
        %v1595 = vpop.f32.mrb[0].mxu0
        %v1596 = vadd.f32 0.0, %v1595
        %v1597 = vpop.f32.mrb[0].mxu0
        %v1598 = vpop.f32.mrb[0].mxu0
        %v1599 = vadd.f32 0.0, %v1598
        %v1600 = vpop.f32.mrb[0].mxu0
        %1601 = vmatprep.mubr.bf16.mxu0 0
        %1602 = vmatmul.mubr.bf16.gmra.mrb[0].mxu0 %v1468
        %v1603 = vpop.f32.mrb[0].mxu0
        %v1604 = vadd.f32 0.0, %v1603
        %v1605 = vpop.f32.mrb[0].mxu0
        %v1606 = vpop.f32.mrb[0].mxu0
        %v1607 = vadd.f32 0.0, %v1606
        %v1608 = vpop.f32.mrb[0].mxu0
        %1609 = vmatprep.mubr.bf16.mxu0 0
        %1610 = vmatmul.mubr.bf16.gmra.mrb[0].mxu0 %v1471
        %v1611 = vpop.f32.mrb[0].mxu0
        %v1612 = vadd.f32 0.0, %v1611
        %v1613 = vpop.f32.mrb[0].mxu0
        %v1614 = vpop.f32.mrb[0].mxu0
        %v1615 = vadd.f32 0.0, %v1614
        %v1616 = vpop.f32.mrb[0].mxu0
        %1617 = vmatprep.mubr.bf16.mxu0 0
        %1618 = vmatmul.mubr.bf16.gmra.mrb[0].mxu0 %v1474
        %v1619 = vpop.f32.mrb[0].mxu0
        %v1620 = vadd.f32 0.0, %v1619
        %v1621 = vpop.f32.mrb[0].mxu0
        %v1622 = vpop.f32.mrb[0].mxu0
        %v1623 = vadd.f32 0.0, %v1622
        %v1624 = vpop.f32.mrb[0].mxu0
        %1625 = vmatprep.mubr.bf16.mxu0 0
        %1626 = vmatmul.mubr.bf16.gmra.mrb[0].mxu0 %v1477
        %v1627 = vpop.f32.mrb[0].mxu0
        %v1628 = vadd.f32 0.0, %v1627
        %v1629 = vpop.f32.mrb[0].mxu0
        %v1630 = vpop.f32.mrb[0].mxu0
        %v1631 = vadd.f32 0.0, %v1630
        %v1632 = vpop.f32.mrb[0].mxu0
        %1633 = vmatprep.mubr.bf16.mxu0 0
        %1634 = vmatmul.mubr.bf16.gmra.mrb[0].mxu0 %v1480
        %v1635 = vpop.f32.mrb[0].mxu0
        %v1636 = vadd.f32 0.0, %v1635
        %v1637 = vpop.f32.mrb[0].mxu0
        %v1638 = vpop.f32.mrb[0].mxu0
        %v1639 = vadd.f32 0.0, %v1638
        %v1640 = vpop.f32.mrb[0].mxu0
        %1641 = vmatprep.mubr.bf16.mxu0 0
        %1642 = vmatmul.mubr.bf16.gmra.mrb[0].mxu0 %v1483
        %v1643 = vpop.f32.mrb[0].mxu0
        %v1644 = vadd.f32 0.0, %v1643
        %v1645 = vpop.f32.mrb[0].mxu0
        %v1646 = vpop.f32.mrb[0].mxu0
        %v1647 = vadd.f32 0.0, %v1646
        %v1648 = vpop.f32.mrb[0].mxu0
        %1649 = vdwg.mxu0
        %v1650 = vpack.c.bf16 %v1527, %v1524
        %v1651 = vpack.c.bf16 %v1535, %v1532
        %v1652 = vpack.c.bf16 %v1543, %v1540
        %v1653 = vpack.c.bf16 %v1551, %v1548
        %v1654 = vpack.c.bf16 %v1559, %v1556
        %v1655 = vpack.c.bf16 %v1567, %v1564
        %v1656 = vpack.c.bf16 %v1575, %v1572
        %v1657 = vpack.c.bf16 %v1583, %v1580
        %v1658 = vpack.c.bf16 %v1591, %v1588
        %v1659 = vpack.c.bf16 %v1599, %v1596
        %v1660 = vpack.c.bf16 %v1607, %v1604
        %v1661 = vpack.c.bf16 %v1615, %v1612
        %v1662 = vpack.c.bf16 %v1623, %v1620
        %v1663 = vpack.c.bf16 %v1631, %v1628
        %v1664 = vpack.c.bf16 %v1639, %v1636
        %v1665 = vpack.c.bf16 %v1647, %v1644
        %v1682 = vunpack.c.l.b16 %v1650
        %v1683 = vunpack.c.h.b16 %v1650
        %v1684 = vunpack.c.l.b16 %v1651
        %v1685 = vunpack.c.h.b16 %v1651
        %v1686 = vunpack.c.l.b16 %v1652
        %v1687 = vunpack.c.h.b16 %v1652
        %v1688 = vunpack.c.l.b16 %v1653
        %v1689 = vunpack.c.h.b16 %v1653
        %v1690 = vunpack.c.l.b16 %v1654
        %v1691 = vunpack.c.h.b16 %v1654
        %v1692 = vunpack.c.l.b16 %v1655
        %v1693 = vunpack.c.h.b16 %v1655
        %v1694 = vunpack.c.l.b16 %v1656
        %v1695 = vunpack.c.h.b16 %v1656
        %v1696 = vunpack.c.l.b16 %v1657
        %v1697 = vunpack.c.h.b16 %v1657
        %v1698 = vunpack.c.l.b16 %v1658
        %v1699 = vunpack.c.h.b16 %v1658
        %v1700 = vunpack.c.l.b16 %v1659
        %v1701 = vunpack.c.h.b16 %v1659
        %v1702 = vunpack.c.l.b16 %v1660
        %v1703 = vunpack.c.h.b16 %v1660
        %v1704 = vunpack.c.l.b16 %v1661
        %v1705 = vunpack.c.h.b16 %v1661
        %v1706 = vunpack.c.l.b16 %v1662
        %v1707 = vunpack.c.h.b16 %v1662
        %v1708 = vunpack.c.l.b16 %v1663
        %v1709 = vunpack.c.h.b16 %v1663
        %v1710 = vunpack.c.l.b16 %v1664
        %v1711 = vunpack.c.h.b16 %v1664
        %v1712 = vunpack.c.l.b16 %v1665
        %v1713 = vunpack.c.h.b16 %v1665
        %v1714 = vpack.c.b16 %v1682, %v1682
        %v1715 = vpack.c.b16 %v1683, %v1683
        %v1716 = vpack.c.b16 %v1684, %v1684
        %v1717 = vpack.c.b16 %v1685, %v1685
        %v1718 = vpack.c.b16 %v1686, %v1686
        %v1719 = vpack.c.b16 %v1687, %v1687
        %v1720 = vpack.c.b16 %v1688, %v1688
        %v1721 = vpack.c.b16 %v1689, %v1689
        %v1722 = vpack.c.b16 %v1690, %v1690
        %v1723 = vpack.c.b16 %v1691, %v1691
        %v1724 = vpack.c.b16 %v1692, %v1692
        %v1725 = vpack.c.b16 %v1693, %v1693
        %v1726 = vpack.c.b16 %v1694, %v1694
        %v1727 = vpack.c.b16 %v1695, %v1695
        %v1728 = vpack.c.b16 %v1696, %v1696
        %v1729 = vpack.c.b16 %v1697, %v1697
        %v1730 = vpack.c.b16 %v1698, %v1698
        %v1731 = vpack.c.b16 %v1699, %v1699
        %v1732 = vpack.c.b16 %v1700, %v1700
        %v1733 = vpack.c.b16 %v1701, %v1701
        %v1734 = vpack.c.b16 %v1702, %v1702
        %v1735 = vpack.c.b16 %v1703, %v1703
        %v1736 = vpack.c.b16 %v1704, %v1704
        %v1737 = vpack.c.b16 %v1705, %v1705
        %v1738 = vpack.c.b16 %v1706, %v1706
        %v1739 = vpack.c.b16 %v1707, %v1707
        %v1740 = vpack.c.b16 %v1708, %v1708
        %v1741 = vpack.c.b16 %v1709, %v1709
        %v1742 = vpack.c.b16 %v1710, %v1710
        %v1743 = vpack.c.b16 %v1711, %v1711
        %v1744 = vpack.c.b16 %v1712, %v1712
        %v1745 = vpack.c.b16 %v1713, %v1713
        %1778 = vst [vmem:[%s243] sm:$0xf] %v1714
        %1779 = vst [vmem:[%s243 + $0x4] sm:$0xf] %v1715
        %1780 = vst [vmem:[%s243 + $0x8] sm:$0xf] %v1716
        %1781 = vst [vmem:[%s243 + $0xc] sm:$0xf] %v1717
        %1782 = vst [vmem:[%s243 + $0x10] sm:$0xf] %v1718
        %1783 = vst [vmem:[%s243 + $0x14] sm:$0xf] %v1719
        %1784 = vst [vmem:[%s243 + $0x18] sm:$0xf] %v1720
        %1785 = vst [vmem:[%s243 + $0x1c] sm:$0xf] %v1721
        %1786 = vst [vmem:[%s243 + $0x20] sm:$0xf] %v1722
        %1787 = vst [vmem:[%s243 + $0x24] sm:$0xf] %v1723
        %1788 = vst [vmem:[%s243 + $0x28] sm:$0xf] %v1724
        %1789 = vst [vmem:[%s243 + $0x2c] sm:$0xf] %v1725
        %1790 = vst [vmem:[%s243 + $0x30] sm:$0xf] %v1726
        %1791 = vst [vmem:[%s243 + $0x34] sm:$0xf] %v1727
        %1792 = vst [vmem:[%s243 + $0x38] sm:$0xf] %v1728
        %1793 = vst [vmem:[%s243 + $0x3c] sm:$0xf] %v1729
        %1794 = vst [vmem:[%s243 + $0x40] sm:$0xf] %v1730
        %1795 = vst [vmem:[%s243 + $0x44] sm:$0xf] %v1731
        %1796 = vst [vmem:[%s243 + $0x48] sm:$0xf] %v1732
        %1797 = vst [vmem:[%s243 + $0x4c] sm:$0xf] %v1733
        %1798 = vst [vmem:[%s243 + $0x50] sm:$0xf] %v1734
        %1799 = vst [vmem:[%s243 + $0x54] sm:$0xf] %v1735
        %1800 = vst [vmem:[%s243 + $0x58] sm:$0xf] %v1736
        %1801 = vst [vmem:[%s243 + $0x5c] sm:$0xf] %v1737
        %1802 = vst [vmem:[%s243 + $0x60] sm:$0xf] %v1738
        %1803 = vst [vmem:[%s243 + $0x64] sm:$0xf] %v1739
        %1804 = vst [vmem:[%s243 + $0x68] sm:$0xf] %v1740
        %1805 = vst [vmem:[%s243 + $0x6c] sm:$0xf] %v1741
        %1806 = vst [vmem:[%s243 + $0x70] sm:$0xf] %v1742
        %1807 = vst [vmem:[%s243 + $0x74] sm:$0xf] %v1743
        %1808 = vst [vmem:[%s243 + $0x78] sm:$0xf] %v1744
        %1809 = vst [vmem:[%s243 + $0x7c] sm:$0xf] %v1745
        %s1810 = sand.u32 %s147, 1
        %s1811 = scalar_lea.sflag [#allocation4], %s1810
        %s1812 = sand.u32 %s147, 1
        %s1813 = smul.addr %s1812, 128
        %s1814 = scalar_lea.vmem [#allocation3], %s1813
        // Predicated region
        $region41: #{tpu_custom_call.1} parent=39 // pred_check
          %p1815 = pneg %p157
        $region42: #{tpu_custom_call.1} parent=39 // pred_check_branch
          %1817 = sbr.rel (%p1815) target = $region44
        $region43: #{tpu_custom_call.1} parent=39 // pred_region
          %s1819 = ssub.s32 2048, 2048
          %1820 = vsyncadd %s1811, %s1819
          %s1821 = smul.addr %s19, 32
          %s1822 = smul.addr %s1821, 64
          %s1823 = scalar_lea.hbm %s5, %s1822
          %s1824 = sshll.u32 %s1814, 4
          %s1825 = int_to_ptr.vmem [resolvable:$true] %s1824
          %1830 = dma.vmem_to_hbm [thread:$0]  %s1825, 2048, %s1823, %s1811, 64, 64, 4
        $region44: #{tpu_custom_call.1} parent=39 // pred_fallthru
          _
      $region40: #{tpu_custom_call.1} parent=5 // pred_fallthru
        _
      %p1831 = scmp.le.s32.totalorder 2, %s14
      // Predicated region
      $region45: #{tpu_custom_call.1} parent=5 // pred_check
        %p1832 = pneg %p1831
      $region46: #{tpu_custom_call.1} parent=5 // pred_check_branch
        %1834 = sbr.rel (%p1832) target = $region48
      $region47: #{tpu_custom_call.1} parent=5 // pred_region
        %s1835 = ssub.s32 %s14, 2
        // Predicated region
        $region49: #{tpu_custom_call.1} parent=47 // pred_check
          %p1836 = pneg %p163
        $region50: #{tpu_custom_call.1} parent=47 // pred_check_branch
          %1838 = sbr.rel (%p1836) target = $region52
        $region51: #{tpu_custom_call.1} parent=47 // pred_region
          %s1839 = sand.u32 %s148, 1
          %s1840 = scalar_lea.sflag [#allocation4], %s1839
          %s1841 = sand.u32 %s148, 1
          %s1842 = smul.addr %s1841, 128
          %s1843 = scalar_lea.vmem [#allocation3], %s1842
          %1844 = dma.done %s1840, 2048
        $region52: #{tpu_custom_call.1} parent=47 // pred_fallthru
          _
      $region48: #{tpu_custom_call.1} parent=5 // pred_fallthru
        _
    $region6: #{tpu_custom_call.1} parent=1 // loop_footer
      %s18 = sadd.s32 1, %s14
    $region7: #{tpu_custom_call.1} parent=1 // loop_footer_branch
      %13 = sbr.rel target = $region3
    $region8: #{tpu_custom_call.1} parent=1 // loop_exit
      _
    %1845 = vsyncpa [#allocation4], 1
    %s1846 = scalar_lea.sflag [#allocation4], 1
    %1847 = vsyncpa %s1846, 1

</llo_original>
